<compile_context>
chip_gen: v7x
topology: tpu7x:2x2x1
jax: 0.10.0
libtpu: 0.0.40
codegen_flags: <defaults>
</compile_context>

<pallas_src>
import functools

import jax
import jax.numpy as jnp
from jax import lax
from jax.experimental import pallas as pl
from jax.experimental.pallas import tpu as pltpu


# ------------------------------ tiling helpers ------------------------------

def _round_up(x, m):
    return ((x + m - 1) // m) * m


def _pick_row_tile(m, cap=1024):
    """Largest multiple-of-8 divisor of m that is <= cap, preferring >=2 grid
    steps (v7x has 2 TensorCores; a 1-step grid leaves one idle)."""
    divs = [t for t in range(8, min(m, cap) + 1, 8) if m % t == 0]
    if not divs:
        return m
    multi = [t for t in divs if m // t >= 2]
    return max(multi) if multi else max(divs)


def _pick_lane_tile(m, cap=512):
    """Lane (last-dim) tile for the lane-dense decoder output: a multiple of
    128 dividing m, else the full extent (block == full dim is always legal)."""
    if m % 128:
        return m
    divs = [t for t in range(128, min(m, cap) + 1, 128) if m % t == 0]
    if not divs:
        return m
    multi = [t for t in divs if m // t >= 2]
    return max(multi) if multi else max(divs)


# ------------------------------ Pallas kernels ------------------------------

def _audio_encoder_kernel(fr_ref, w1_ref, w2_ref, o_ref):
    # Encoder: frames @ W1 -> ReLU -> @ W2 -> ReLU   (all f32, MXU accumulate)
    h = jnp.maximum(jnp.dot(fr_ref[...], w1_ref[...],
                            preferred_element_type=jnp.float32), 0.0)
    o_ref[...] = jnp.maximum(jnp.dot(h, w2_ref[...],
                                     preferred_element_type=jnp.float32), 0.0)


def _radio_branch_kernel(fr_ref, w1_ref, w2_ref, wbn_ref, wout_ref, o_ref):
    # Radio encoder fused with the (simplified) radio DPRNN projections:
    # four chained matmuls, intermediates never leave VMEM.
    h = jnp.maximum(jnp.dot(fr_ref[...], w1_ref[...],
                            preferred_element_type=jnp.float32), 0.0)
    e = jnp.maximum(jnp.dot(h, w2_ref[...],
                            preferred_element_type=jnp.float32), 0.0)
    d = jnp.maximum(jnp.dot(e, wbn_ref[...],
                            preferred_element_type=jnp.float32), 0.0)
    o_ref[...] = jnp.dot(d, wout_ref[...], preferred_element_type=jnp.float32)


def _gn_dprnn_kernel(x_ref, g_ref, b_ref, wbn_ref, wout_ref, o_ref, *,
                     n_valid, eps):
    # GroupNorm(1, C) over one batch item's (L, C) frame-major block (masking
    # the padded frames), fused with the (simplified) audio DPRNN projections.
    x = x_ref[...]                                        # (Lp, C)
    lp, c = x.shape
    row = lax.broadcasted_iota(jnp.int32, (lp, c), 0)
    valid = row < n_valid
    cnt = jnp.float32(n_valid * c)
    mean = jnp.sum(jnp.where(valid, x, 0.0)) / cnt
    var = jnp.sum(jnp.where(valid, (x - mean) ** 2, 0.0)) / cnt
    xn = (x - mean) * lax.rsqrt(var + eps) * g_ref[...] + b_ref[...]
    h = jnp.maximum(jnp.dot(xn, wbn_ref[...],
                            preferred_element_type=jnp.float32), 0.0)
    o_ref[...] = jnp.dot(h, wout_ref[...], preferred_element_type=jnp.float32)


def _fusion_mask_decoder_kernel(fus_ref, mix_ref, wbn_ref, wout_ref, wmask_ref,
                                basis_t_ref, o_ref, *, num_spk):
    # Fusion DPRNN (simplified) + mask_conv1x1 + ReLU + masking + basis decode.
    # Output is lane-dense: (S, W, frames) with frames on lanes.
    x = fus_ref[...]                                      # (RT, F)
    mix = mix_ref[...]                                    # (RT, Ca)
    h = jnp.maximum(jnp.dot(x, wbn_ref[...],
                            preferred_element_type=jnp.float32), 0.0)
    basis_t = basis_t_ref[...]                            # (W, Ca)
    for s in range(num_spk):
        ys = jnp.dot(h, wout_ref[s], preferred_element_type=jnp.float32)   # (RT, F)
        score = jnp.maximum(
            jnp.dot(ys, wmask_ref[...], preferred_element_type=jnp.float32),
            0.0)                                          # est_mask (RT, Ca)
        masked = score * mix                              # mixture_w * est_mask
        # frames_s = basis^T @ masked^T -> (W, RT), frames on lanes
        fr = lax.dot_general(basis_t, masked, (((1,), (1,)), ((), ())),
                             preferred_element_type=jnp.float32)
        o_ref[s, :, :] = fr


# ------------------------------ kernel wrappers ------------------------------

def pallas_audio_encoder(frames, w1, w2):
    """frames: (M, W) f32 -> mixture_w frame-major (M, N) f32."""
    M, W = frames.shape
    H = w1.shape[1]
    N = w2.shape[1]
    rt = _pick_row_tile(M)
    return pl.pallas_call(
        _audio_encoder_kernel,
        out_shape=jax.ShapeDtypeStruct((M, N), jnp.float32),
        grid=(M // rt,),
        in_specs=[pl.BlockSpec((rt, W), lambda i: (i, 0)),
                  pl.BlockSpec((W, H), lambda i: (0, 0)),
                  pl.BlockSpec((H, N), lambda i: (0, 0))],
        out_specs=pl.BlockSpec((rt, N), lambda i: (i, 0)),
        compiler_params=pltpu.CompilerParams(
            dimension_semantics=("parallel",)),
    )(frames, w1, w2)


def pallas_radio_branch(frames, w1, w2, wbn, wout):
    """frames: (M, W) -> radio feature frame-major (M, Cr)."""
    M, W = frames.shape
    H = w1.shape[1]
    C = w2.shape[1]
    rt = _pick_row_tile(M)
    return pl.pallas_call(
        _radio_branch_kernel,
        out_shape=jax.ShapeDtypeStruct((M, C), jnp.float32),
        grid=(M // rt,),
        in_specs=[pl.BlockSpec((rt, W), lambda i: (i, 0)),
                  pl.BlockSpec((W, H), lambda i: (0, 0)),
                  pl.BlockSpec((H, C), lambda i: (0, 0)),
                  pl.BlockSpec((C, C), lambda i: (0, 0)),
                  pl.BlockSpec((C, C), lambda i: (0, 0))],
        out_specs=pl.BlockSpec((rt, C), lambda i: (i, 0)),
        compiler_params=pltpu.CompilerParams(
            dimension_semantics=("parallel",)),
    )(frames, w1, w2, wbn, wout)


def pallas_groupnorm_dprnn(mix_flat, gamma, beta, wbn, wout, *, batch, lp,
                           n_valid, eps=1e-8):
    """mix_flat: (batch*lp, C) frame-major; per-batch GroupNorm + projections."""
    M, C = mix_flat.shape
    return pl.pallas_call(
        functools.partial(_gn_dprnn_kernel, n_valid=n_valid, eps=eps),
        out_shape=jax.ShapeDtypeStruct((M, C), jnp.float32),
        grid=(batch,),
        in_specs=[pl.BlockSpec((lp, C), lambda b: (b, 0)),
                  pl.BlockSpec((1, C), lambda b: (0, 0)),
                  pl.BlockSpec((1, C), lambda b: (0, 0)),
                  pl.BlockSpec((C, C), lambda b: (0, 0)),
                  pl.BlockSpec((C, C), lambda b: (0, 0))],
        out_specs=pl.BlockSpec((lp, C), lambda b: (b, 0)),
        compiler_params=pltpu.CompilerParams(
            dimension_semantics=("parallel",)),
    )(mix_flat, gamma, beta, wbn, wout)


def pallas_fusion_mask_decoder(fusion_flat, mix_flat, wbn, wout_s, wmask,
                               basis_t, num_spk):
    """fusion_flat: (M, F); mix_flat: (M, Ca); returns frames (S, W, M)."""
    M, F = fusion_flat.shape
    Ca = mix_flat.shape[1]
    W = basis_t.shape[0]
    rt = _pick_lane_tile(M)
    return pl.pallas_call(
        functools.partial(_fusion_mask_decoder_kernel, num_spk=num_spk),
        out_shape=jax.ShapeDtypeStruct((num_spk, W, M), jnp.float32),
        grid=(M // rt,),
        in_specs=[pl.BlockSpec((rt, F), lambda i: (i, 0)),
                  pl.BlockSpec((rt, Ca), lambda i: (i, 0)),
                  pl.BlockSpec((F, F), lambda i: (0, 0)),
                  pl.BlockSpec((num_spk, F, F), lambda i: (0, 0, 0)),
                  pl.BlockSpec((F, Ca), lambda i: (0, 0)),
                  pl.BlockSpec((W, Ca), lambda i: (0, 0))],
        out_specs=pl.BlockSpec((num_spk, W, rt), lambda i: (0, 0, i)),
        compiler_params=pltpu.CompilerParams(
            dimension_semantics=("parallel",)),
    )(fusion_flat, mix_flat, wbn, wout_s, wmask, basis_t)


# --------------------------------- JAX glue ----------------------------------

def frame_signal(x, W, hop):
    """x: (B, T) -> (B, L, W), L = (T - W)//hop + 1 (truncates trailing samples,
    matching Conv1d(kernel=W, stride=hop))."""
    T = x.shape[-1]
    L = (T - W) // hop + 1
    idx = jnp.arange(L)[:, None] * hop + jnp.arange(W)[None, :]
    return x[:, idx], L


def overlap_add(frames, hop):
    """frames: (B, S, L, W) -> (B, S, T) with T = (L-1)*hop + W."""
    B, S, L, W = frames.shape
    T = (L - 1) * hop + W
    idx = (jnp.arange(L)[:, None] * hop + jnp.arange(W)[None, :]).reshape(-1)
    out = jnp.zeros((B, S, T), jnp.float32)
    return out.at[:, :, idx].add(frames.reshape(B, S, L * W))


# -------------------------------- parameters ---------------------------------

def init_params(key, num_spk=2, audio_enc_dim=64, radio_enc_dim=16, win_len=16):
    fusion_dim = audio_enc_dim + num_spk * radio_enc_dim

    def nrm(k, shape, scale=0.05):
        return scale * jax.random.normal(k, shape, jnp.float32)

    keys = jax.random.split(key, 12)
    return {
        # Encoder conv weights stored as (in_features, out_features) matmul mats
        'audio_enc_w1': nrm(keys[0], (win_len, 4 * audio_enc_dim)),
        'audio_enc_w2': nrm(keys[1], (4 * audio_enc_dim, audio_enc_dim)),
        'radio_enc_w1': nrm(keys[2], (win_len, 4 * radio_enc_dim)),
        'radio_enc_w2': nrm(keys[3], (4 * radio_enc_dim, radio_enc_dim)),
        # GroupNorm(1, audio_enc_dim): PyTorch default affine init (frame-major)
        'ln_gamma': jnp.ones((1, audio_enc_dim), jnp.float32),
        'ln_beta': jnp.zeros((1, audio_enc_dim), jnp.float32),
        # DPRNN_base (simplified) projections
        'audio_dprnn_bn': nrm(keys[4], (audio_enc_dim, audio_enc_dim)),
        'audio_dprnn_out': nrm(keys[5], (audio_enc_dim, audio_enc_dim)),
        'radio_dprnn_bn': nrm(keys[6], (radio_enc_dim, radio_enc_dim)),
        'radio_dprnn_out': nrm(keys[7], (radio_enc_dim, radio_enc_dim)),
        'fusion_dprnn_bn': nrm(keys[8], (fusion_dim, fusion_dim)),
        'fusion_dprnn_out': nrm(keys[9], (fusion_dim, num_spk * fusion_dim)),
        # mask_conv1x1: Conv1d(fusion_dim, audio_enc_dim, 1, bias=False)
        'mask_w': nrm(keys[10], (fusion_dim, audio_enc_dim)),
        # Decoder basis_signals: Linear(audio_enc_dim, win_len, bias=False)
        'basis_w': nrm(keys[11], (audio_enc_dim, win_len)),
    }


# ---------------------------------- forward ----------------------------------

def radioses_forward(params, audio, radio, num_spk=2, audio_enc_dim=64,
                     radio_enc_dim=16, win_len=16):
    """audio: (B, 1, T); radio: (B, num_spk, T_r)  ->  (B, num_spk, T)."""
    B = audio.shape[0]
    hop = win_len // 2
    fusion_dim = audio_enc_dim + num_spk * radio_enc_dim

    # ---- radio branch: 'B N L -> (B N) () L', encoder + DPRNN fused ----
    # TODO(synk): DPRNN_base source (segmentation + dual-path RNN stack) was not
    # provided; approximated by per-frame bottleneck+output projections.
    Nr = radio.shape[1]
    radio_frames, Lr = frame_signal(radio.reshape(B * Nr, -1), win_len, hop)
    r_rows = B * Nr * Lr
    Mr = _round_up(r_rows, 8)
    radio_frames = radio_frames.reshape(r_rows, win_len)
    if Mr != r_rows:
        radio_frames = jnp.pad(radio_frames, ((0, Mr - r_rows), (0, 0)))
    radio_feat = pallas_radio_branch(
        radio_frames, params['radio_enc_w1'], params['radio_enc_w2'],
        params['radio_dprnn_bn'], params['radio_dprnn_out'])        # (Mr, Cr)

    # ---- audio branch (frame-major, padded once, carried everywhere) ----
    audio_frames, La = frame_signal(audio[:, 0, :], win_len, hop)   # (B, La, W)
    Lp = _round_up(La, 8)
    if Lp != La:
        audio_frames = jnp.pad(audio_frames, ((0, 0), (0, Lp - La), (0, 0)))
    Ma = B * Lp
    audio_frames = audio_frames.reshape(Ma, win_len)

    mixture_w = pallas_audio_encoder(
        audio_frames, params['audio_enc_w1'], params['audio_enc_w2'])  # (Ma, Ca)
    audio_feat = pallas_groupnorm_dprnn(
        mixture_w, params['ln_gamma'], params['ln_beta'],
        params['audio_dprnn_bn'], params['audio_dprnn_out'],
        batch=B, lp=Lp, n_valid=La)                                    # (Ma, Ca)

    # F.interpolate(..., mode='nearest') Lr -> La as a frame (row) gather, then
    # '(B N) C L -> B (N C) L' as a frame-major channel concat.
    src = jnp.floor(jnp.arange(La) * (Lr / La)).astype(jnp.int32)      # (La,)
    rows = jnp.arange(B * Nr)[:, None] * Lr + src[None, :]             # (B*Nr, La)
    radio_interp = radio_feat[rows]                                    # (B*Nr, La, Cr)
    radio_interp = radio_interp.reshape(B, Nr, La, radio_enc_dim)
    radio_interp = radio_interp.transpose(0, 2, 1, 3).reshape(
        B, La, Nr * radio_enc_dim)
    radio_interp = jnp.pad(radio_interp, ((0, 0), (0, Lp - La), (0, 0)))
    radio_interp = radio_interp.reshape(Ma, Nr * radio_enc_dim)

    fusion_feat = jnp.concatenate([audio_feat, radio_interp], axis=1)  # (Ma, F)

    # fusion DPRNN (simplified) + mask_conv1x1 + ReLU + masking + basis decode
    # fused into one kernel; output is lane-dense (S, W, Ma).
    wout_s = params['fusion_dprnn_out'].reshape(
        fusion_dim, num_spk, fusion_dim).transpose(1, 0, 2)            # (S, F, F)
    basis_t = params['basis_w'].T                                      # (W, Ca)
    dec = pallas_fusion_mask_decoder(
        fusion_feat, mixture_w, params['fusion_dprnn_bn'], wout_s,
        params['mask_w'], basis_t, num_spk)                            # (S, W, Ma)

    # (S, W, B, Lp) -> (B, S, La, W) -> overlap-add to (B, S, T)
    frames = dec.reshape(num_spk, win_len, B, Lp).transpose(2, 0, 3, 1)
    frames = frames[:, :, :La, :]
    return overlap_add(frames, hop)


# ------------------------------------ main ------------------------------------

if __name__ == "__main__":
    key = jax.random.PRNGKey(0)
    k_audio, k_radio, k_params = jax.random.split(key, 3)

    B, num_spk = 2, 2
    T_audio, T_radio = 512, 256
    audio = jax.random.normal(k_audio, (B, 1, T_audio), jnp.float32)
    radio = jax.random.normal(k_radio, (B, num_spk, T_radio), jnp.float32)
    params = init_params(k_params)

    fwd = jax.jit(radioses_forward)
    out = jax.block_until_ready(fwd(params, audio, radio))
    assert out.shape == (B, num_spk, T_audio), out.shape
    assert bool(jnp.isfinite(out).all())
    print("KERNEL_OK")
</pallas_src>

<mosaic_0001>
module attributes {stable_mosaic.version = 11 : i64} {
  func.func @_radio_branch_kernel(%arg0: i32, %arg1: memref<64x16xf32, #tpu.memory_space<vmem>>, %arg2: memref<16x64xf32, #tpu.memory_space<vmem>>, %arg3: memref<64x16xf32, #tpu.memory_space<vmem>>, %arg4: memref<16x16xf32, #tpu.memory_space<vmem>>, %arg5: memref<16x16xf32, #tpu.memory_space<vmem>>, %arg6: memref<64x16xf32, #tpu.memory_space<vmem>>) attributes {dimension_semantics = [#tpu.dimension_semantics<parallel>], iteration_bounds = array<i64: 2>, scalar_prefetch = 0 : i64, scratch_operands = 0 : i64, tpu.core_type = #tpu.core_type<tc>, window_params = [{transform_indices = @transform_0, window_bounds = array<i64: 64, 16>}, {pipeline_mode = #tpu.pipeline_mode<synchronous>, transform_indices = @transform_1, window_bounds = array<i64: 16, 64>}, {pipeline_mode = #tpu.pipeline_mode<synchronous>, transform_indices = @transform_2, window_bounds = array<i64: 64, 16>}, {pipeline_mode = #tpu.pipeline_mode<synchronous>, transform_indices = @transform_3, window_bounds = array<i64: 16, 16>}, {pipeline_mode = #tpu.pipeline_mode<synchronous>, transform_indices = @transform_4, window_bounds = array<i64: 16, 16>}, {transform_indices = @transform_5, window_bounds = array<i64: 64, 16>}]} {
    %c0 = arith.constant 0 : index
    %c0_0 = arith.constant 0 : index
    %0 = vector.load %arg1[%c0, %c0_0] : memref<64x16xf32, #tpu.memory_space<vmem>>, vector<64x16xf32>
    %c0_1 = arith.constant 0 : index
    %c0_2 = arith.constant 0 : index
    %1 = vector.load %arg2[%c0_1, %c0_2] : memref<16x64xf32, #tpu.memory_space<vmem>>, vector<16x64xf32>
    %cst = arith.constant dense<0.000000e+00> : vector<64x64xf32>
    %2 = tpu.matmul %0, %1, %cst {dimension_numbers = #tpu.dot_dimension_numbers<[1], [0], [0], [1], [0, 0, 1, 1], [], []>} : vector<64x16xf32>, vector<16x64xf32>, vector<64x64xf32> -> vector<64x64xf32>
    %cst_3 = arith.constant 0.000000e+00 : f32
    %3 = vector.broadcast %cst_3 : f32 to vector<64x64xf32>
    %4 = arith.maximumf %2, %3 : vector<64x64xf32>
    %c0_4 = arith.constant 0 : index
    %c0_5 = arith.constant 0 : index
    %5 = vector.load %arg3[%c0_4, %c0_5] : memref<64x16xf32, #tpu.memory_space<vmem>>, vector<64x16xf32>
    %cst_6 = arith.constant dense<0.000000e+00> : vector<64x16xf32>
    %6 = tpu.matmul %4, %5, %cst_6 {dimension_numbers = #tpu.dot_dimension_numbers<[1], [0], [0], [1], [0, 0, 1, 1], [], []>} : vector<64x64xf32>, vector<64x16xf32>, vector<64x16xf32> -> vector<64x16xf32>
    %cst_7 = arith.constant 0.000000e+00 : f32
    %7 = vector.broadcast %cst_7 : f32 to vector<64x16xf32>
    %8 = arith.maximumf %6, %7 : vector<64x16xf32>
    %c0_8 = arith.constant 0 : index
    %c0_9 = arith.constant 0 : index
    %9 = vector.load %arg4[%c0_8, %c0_9] : memref<16x16xf32, #tpu.memory_space<vmem>>, vector<16x16xf32>
    %cst_10 = arith.constant dense<0.000000e+00> : vector<64x16xf32>
    %10 = tpu.matmul %8, %9, %cst_10 {dimension_numbers = #tpu.dot_dimension_numbers<[1], [0], [0], [1], [0, 0, 1, 1], [], []>} : vector<64x16xf32>, vector<16x16xf32>, vector<64x16xf32> -> vector<64x16xf32>
    %cst_11 = arith.constant 0.000000e+00 : f32
    %11 = vector.broadcast %cst_11 : f32 to vector<64x16xf32>
    %12 = arith.maximumf %10, %11 : vector<64x16xf32>
    %c0_12 = arith.constant 0 : index
    %c0_13 = arith.constant 0 : index
    %13 = vector.load %arg5[%c0_12, %c0_13] : memref<16x16xf32, #tpu.memory_space<vmem>>, vector<16x16xf32>
    %cst_14 = arith.constant dense<0.000000e+00> : vector<64x16xf32>
    %14 = tpu.matmul %12, %13, %cst_14 {dimension_numbers = #tpu.dot_dimension_numbers<[1], [0], [0], [1], [0, 0, 1, 1], [], []>} : vector<64x16xf32>, vector<16x16xf32>, vector<64x16xf32> -> vector<64x16xf32>
    %c0_15 = arith.constant 0 : index
    %c0_16 = arith.constant 0 : index
    %15 = vector.load %arg6[%c0_15, %c0_16] : memref<64x16xf32, #tpu.memory_space<vmem>>, vector<64x16xf32>
    tpu.vector_store %arg6[%c0_15, %c0_16], %14 {strides = array<i32>} : memref<64x16xf32, #tpu.memory_space<vmem>>, vector<64x16xf32>,
    return
  }
  func.func @transform_0(%arg0: i32) -> (i32, i32) {
    %c0_i32 = arith.constant 0 : i32
    %c0_i32_0 = arith.constant 0 : i32
    return %arg0, %c0_i32 : i32, i32
  }
  func.func @transform_1(%arg0: i32) -> (i32, i32) {
    %c0_i32 = arith.constant 0 : i32
    %c0_i32_0 = arith.constant 0 : i32
    %c0_i32_1 = arith.constant 0 : i32
    return %c0_i32, %c0_i32_0 : i32, i32
  }
  func.func @transform_2(%arg0: i32) -> (i32, i32) {
    %c0_i32 = arith.constant 0 : i32
    %c0_i32_0 = arith.constant 0 : i32
    %c0_i32_1 = arith.constant 0 : i32
    return %c0_i32, %c0_i32_0 : i32, i32
  }
  func.func @transform_3(%arg0: i32) -> (i32, i32) {
    %c0_i32 = arith.constant 0 : i32
    %c0_i32_0 = arith.constant 0 : i32
    %c0_i32_1 = arith.constant 0 : i32
    return %c0_i32, %c0_i32_0 : i32, i32
  }
  func.func @transform_4(%arg0: i32) -> (i32, i32) {
    %c0_i32 = arith.constant 0 : i32
    %c0_i32_0 = arith.constant 0 : i32
    %c0_i32_1 = arith.constant 0 : i32
    return %c0_i32, %c0_i32_0 : i32, i32
  }
  func.func @transform_5(%arg0: i32) -> (i32, i32) {
    %c0_i32 = arith.constant 0 : i32
    %c0_i32_0 = arith.constant 0 : i32
    return %arg0, %c0_i32 : i32, i32
  }
}

module attributes {stable_mosaic.version = 11 : i64} {
  func.func @_audio_encoder_kernel(%arg0: i32, %arg1: memref<64x16xf32, #tpu.memory_space<vmem>>, %arg2: memref<16x256xf32, #tpu.memory_space<vmem>>, %arg3: memref<256x64xf32, #tpu.memory_space<vmem>>, %arg4: memref<64x64xf32, #tpu.memory_space<vmem>>) attributes {dimension_semantics = [#tpu.dimension_semantics<parallel>], iteration_bounds = array<i64: 2>, scalar_prefetch = 0 : i64, scratch_operands = 0 : i64, tpu.core_type = #tpu.core_type<tc>, window_params = [{transform_indices = @transform_0, window_bounds = array<i64: 64, 16>}, {pipeline_mode = #tpu.pipeline_mode<synchronous>, transform_indices = @transform_1, window_bounds = array<i64: 16, 256>}, {pipeline_mode = #tpu.pipeline_mode<synchronous>, transform_indices = @transform_2, window_bounds = array<i64: 256, 64>}, {transform_indices = @transform_3, window_bounds = array<i64: 64, 64>}]} {
    %c0 = arith.constant 0 : index
    %c0_0 = arith.constant 0 : index
    %0 = vector.load %arg1[%c0, %c0_0] : memref<64x16xf32, #tpu.memory_space<vmem>>, vector<64x16xf32>
    %c0_1 = arith.constant 0 : index
    %c0_2 = arith.constant 0 : index
    %1 = vector.load %arg2[%c0_1, %c0_2] : memref<16x256xf32, #tpu.memory_space<vmem>>, vector<16x256xf32>
    %cst = arith.constant dense<0.000000e+00> : vector<64x256xf32>
    %2 = tpu.matmul %0, %1, %cst {dimension_numbers = #tpu.dot_dimension_numbers<[1], [0], [0], [1], [0, 0, 1, 1], [], []>} : vector<64x16xf32>, vector<16x256xf32>, vector<64x256xf32> -> vector<64x256xf32>
    %cst_3 = arith.constant 0.000000e+00 : f32
    %3 = vector.broadcast %cst_3 : f32 to vector<64x256xf32>
    %4 = arith.maximumf %2, %3 : vector<64x256xf32>
    %c0_4 = arith.constant 0 : index
    %c0_5 = arith.constant 0 : index
    %5 = vector.load %arg3[%c0_4, %c0_5] : memref<256x64xf32, #tpu.memory_space<vmem>>, vector<256x64xf32>
    %cst_6 = arith.constant dense<0.000000e+00> : vector<64x64xf32>
    %6 = tpu.matmul %4, %5, %cst_6 {dimension_numbers = #tpu.dot_dimension_numbers<[1], [0], [0], [1], [0, 0, 1, 1], [], []>} : vector<64x256xf32>, vector<256x64xf32>, vector<64x64xf32> -> vector<64x64xf32>
    %cst_7 = arith.constant 0.000000e+00 : f32
    %7 = vector.broadcast %cst_7 : f32 to vector<64x64xf32>
    %8 = arith.maximumf %6, %7 : vector<64x64xf32>
    %c0_8 = arith.constant 0 : index
    %c0_9 = arith.constant 0 : index
    %9 = vector.load %arg4[%c0_8, %c0_9] : memref<64x64xf32, #tpu.memory_space<vmem>>, vector<64x64xf32>
    tpu.vector_store %arg4[%c0_8, %c0_9], %8 {strides = array<i32>} : memref<64x64xf32, #tpu.memory_space<vmem>>, vector<64x64xf32>,
    return
  }
  func.func @transform_0(%arg0: i32) -> (i32, i32) {
    %c0_i32 = arith.constant 0 : i32
    %c0_i32_0 = arith.constant 0 : i32
    return %arg0, %c0_i32 : i32, i32
  }
  func.func @transform_1(%arg0: i32) -> (i32, i32) {
    %c0_i32 = arith.constant 0 : i32
    %c0_i32_0 = arith.constant 0 : i32
    %c0_i32_1 = arith.constant 0 : i32
    return %c0_i32, %c0_i32_0 : i32, i32
  }
  func.func @transform_2(%arg0: i32) -> (i32, i32) {
    %c0_i32 = arith.constant 0 : i32
    %c0_i32_0 = arith.constant 0 : i32
    %c0_i32_1 = arith.constant 0 : i32
    return %c0_i32, %c0_i32_0 : i32, i32
  }
  func.func @transform_3(%arg0: i32) -> (i32, i32) {
    %c0_i32 = arith.constant 0 : i32
    %c0_i32_0 = arith.constant 0 : i32
    return %arg0, %c0_i32 : i32, i32
  }
}

module attributes {stable_mosaic.version = 11 : i64} {
  func.func @_gn_dprnn_kernel(%arg0: i32, %arg1: memref<64x64xf32, #tpu.memory_space<vmem>>, %arg2: memref<1x64xf32, #tpu.memory_space<vmem>>, %arg3: memref<1x64xf32, #tpu.memory_space<vmem>>, %arg4: memref<64x64xf32, #tpu.memory_space<vmem>>, %arg5: memref<64x64xf32, #tpu.memory_space<vmem>>, %arg6: memref<64x64xf32, #tpu.memory_space<vmem>>) attributes {dimension_semantics = [#tpu.dimension_semantics<parallel>], iteration_bounds = array<i64: 2>, scalar_prefetch = 0 : i64, scratch_operands = 0 : i64, tpu.core_type = #tpu.core_type<tc>, window_params = [{transform_indices = @transform_0, window_bounds = array<i64: 64, 64>}, {pipeline_mode = #tpu.pipeline_mode<synchronous>, transform_indices = @transform_1, window_bounds = array<i64: 1, 64>}, {pipeline_mode = #tpu.pipeline_mode<synchronous>, transform_indices = @transform_2, window_bounds = array<i64: 1, 64>}, {pipeline_mode = #tpu.pipeline_mode<synchronous>, transform_indices = @transform_3, window_bounds = array<i64: 64, 64>}, {pipeline_mode = #tpu.pipeline_mode<synchronous>, transform_indices = @transform_4, window_bounds = array<i64: 64, 64>}, {transform_indices = @transform_5, window_bounds = array<i64: 64, 64>}]} {
    %c0 = arith.constant 0 : index
    %c0_0 = arith.constant 0 : index
    %0 = vector.load %arg1[%c0, %c0_0] : memref<64x64xf32, #tpu.memory_space<vmem>>, vector<64x64xf32>
    %1 = tpu.iota {dimensions = array<i32: 0>} : vector<64x64xi32>
    %c63_i32 = arith.constant 63 : i32
    %2 = vector.broadcast %c63_i32 : i32 to vector<64x64xi32>
    %3 = arith.cmpi slt, %1, %2 : vector<64x64xi32>
    %cst = arith.constant 0.000000e+00 : f32
    %4 = vector.broadcast %cst : f32 to vector<64x64xf32>
    %5 = arith.select %3, %0, %4 : vector<64x64xi1>, vector<64x64xf32>
    %6 = vector.shape_cast %5 : vector<64x64xf32> to vector<1x64x64xf32>
    %cst_1 = arith.constant dense<0.000000e+00> : vector<1xf32>
    %7 = vector.multi_reduction <add>, %6, %cst_1 [1, 2] : vector<1x64x64xf32> to vector<1xf32>
    %8 = vector.shape_cast %7 : vector<1xf32> to vector<1x1x1xf32>
    %9 = vector.extract %8[0, 0, 0] : f32 from vector<1x1x1xf32>
    %cst_2 = arith.constant 4.032000e+03 : f32
    %10 = arith.divf %9, %cst_2 : f32
    %11 = vector.broadcast %10 : f32 to vector<64x64xf32>
    %12 = arith.subf %0, %11 : vector<64x64xf32>
    %13 = arith.mulf %12, %12 : vector<64x64xf32>
    %cst_3 = arith.constant 0.000000e+00 : f32
    %14 = vector.broadcast %cst_3 : f32 to vector<64x64xf32>
    %15 = arith.select %3, %13, %14 : vector<64x64xi1>, vector<64x64xf32>
    %16 = vector.shape_cast %15 : vector<64x64xf32> to vector<1x64x64xf32>
    %cst_4 = arith.constant dense<0.000000e+00> : vector<1xf32>
    %17 = vector.multi_reduction <add>, %16, %cst_4 [1, 2] : vector<1x64x64xf32> to vector<1xf32>
    %18 = vector.shape_cast %17 : vector<1xf32> to vector<1x1x1xf32>
    %19 = vector.extract %18[0, 0, 0] : f32 from vector<1x1x1xf32>
    %cst_5 = arith.constant 4.032000e+03 : f32
    %20 = arith.divf %19, %cst_5 : f32
    %21 = vector.broadcast %10 : f32 to vector<64x64xf32>
    %22 = arith.subf %0, %21 : vector<64x64xf32>
    %cst_6 = arith.constant 9.99999993E-9 : f32
    %23 = arith.addf %20, %cst_6 : f32
    %24 = math.rsqrt %23 : f32
    %25 = vector.broadcast %24 : f32 to vector<64x64xf32>
    %26 = arith.mulf %22, %25 : vector<64x64xf32>
    %c0_7 = arith.constant 0 : index
    %c0_8 = arith.constant 0 : index
    %27 = vector.load %arg2[%c0_7, %c0_8] : memref<1x64xf32, #tpu.memory_space<vmem>>, vector<1x64xf32>
    %28 = vector.broadcast %27 : vector<1x64xf32> to vector<64x64xf32>
    %29 = arith.mulf %26, %28 : vector<64x64xf32>
    %c0_9 = arith.constant 0 : index
    %c0_10 = arith.constant 0 : index
    %30 = vector.load %arg3[%c0_9, %c0_10] : memref<1x64xf32, #tpu.memory_space<vmem>>, vector<1x64xf32>
    %31 = vector.broadcast %30 : vector<1x64xf32> to vector<64x64xf32>
    %32 = arith.addf %29, %31 : vector<64x64xf32>
    %c0_11 = arith.constant 0 : index
    %c0_12 = arith.constant 0 : index
    %33 = vector.load %arg4[%c0_11, %c0_12] : memref<64x64xf32, #tpu.memory_space<vmem>>, vector<64x64xf32>
    %cst_13 = arith.constant dense<0.000000e+00> : vector<64x64xf32>
    %34 = tpu.matmul %32, %33, %cst_13 {dimension_numbers = #tpu.dot_dimension_numbers<[1], [0], [0], [1], [0, 0, 1, 1], [], []>} : vector<64x64xf32>, vector<64x64xf32>, vector<64x64xf32> -> vector<64x64xf32>
    %cst_14 = arith.constant 0.000000e+00 : f32
    %35 = vector.broadcast %cst_14 : f32 to vector<64x64xf32>
    %36 = arith.maximumf %34, %35 : vector<64x64xf32>
    %c0_15 = arith.constant 0 : index
    %c0_16 = arith.constant 0 : index
    %37 = vector.load %arg5[%c0_15, %c0_16] : memref<64x64xf32, #tpu.memory_space<vmem>>, vector<64x64xf32>
    %cst_17 = arith.constant dense<0.000000e+00> : vector<64x64xf32>
    %38 = tpu.matmul %36, %37, %cst_17 {dimension_numbers = #tpu.dot_dimension_numbers<[1], [0], [0], [1], [0, 0, 1, 1], [], []>} : vector<64x64xf32>, vector<64x64xf32>, vector<64x64xf32> -> vector<64x64xf32>
    %c0_18 = arith.constant 0 : index
    %c0_19 = arith.constant 0 : index
    %39 = vector.load %arg6[%c0_18, %c0_19] : memref<64x64xf32, #tpu.memory_space<vmem>>, vector<64x64xf32>
    tpu.vector_store %arg6[%c0_18, %c0_19], %38 {strides = array<i32>} : memref<64x64xf32, #tpu.memory_space<vmem>>, vector<64x64xf32>,
    return
  }
  func.func @transform_0(%arg0: i32) -> (i32, i32) {
    %c0_i32 = arith.constant 0 : i32
    %c0_i32_0 = arith.constant 0 : i32
    return %arg0, %c0_i32 : i32, i32
  }
  func.func @transform_1(%arg0: i32) -> (i32, i32) {
    %c0_i32 = arith.constant 0 : i32
    %c0_i32_0 = arith.constant 0 : i32
    %c0_i32_1 = arith.constant 0 : i32
    return %c0_i32, %c0_i32_0 : i32, i32
  }
  func.func @transform_2(%arg0: i32) -> (i32, i32) {
    %c0_i32 = arith.constant 0 : i32
    %c0_i32_0 = arith.constant 0 : i32
    %c0_i32_1 = arith.constant 0 : i32
    return %c0_i32, %c0_i32_0 : i32, i32
  }
  func.func @transform_3(%arg0: i32) -> (i32, i32) {
    %c0_i32 = arith.constant 0 : i32
    %c0_i32_0 = arith.constant 0 : i32
    %c0_i32_1 = arith.constant 0 : i32
    return %c0_i32, %c0_i32_0 : i32, i32
  }
  func.func @transform_4(%arg0: i32) -> (i32, i32) {
    %c0_i32 = arith.constant 0 : i32
    %c0_i32_0 = arith.constant 0 : i32
    %c0_i32_1 = arith.constant 0 : i32
    return %c0_i32, %c0_i32_0 : i32, i32
  }
  func.func @transform_5(%arg0: i32) -> (i32, i32) {
    %c0_i32 = arith.constant 0 : i32
    %c0_i32_0 = arith.constant 0 : i32
    return %arg0, %c0_i32 : i32, i32
  }
}

module attributes {stable_mosaic.version = 11 : i64} {
  func.func @_fusion_mask_decoder_kernel(%arg0: i32, %arg1: memref<128x96xf32, #tpu.memory_space<vmem>>, %arg2: memref<128x64xf32, #tpu.memory_space<vmem>>, %arg3: memref<96x96xf32, #tpu.memory_space<vmem>>, %arg4: memref<2x96x96xf32, #tpu.memory_space<vmem>>, %arg5: memref<96x64xf32, #tpu.memory_space<vmem>>, %arg6: memref<16x64xf32, #tpu.memory_space<vmem>>, %arg7: memref<2x16x128xf32, #tpu.memory_space<vmem>>) attributes {dimension_semantics = [#tpu.dimension_semantics<parallel>], iteration_bounds = array<i64: 1>, scalar_prefetch = 0 : i64, scratch_operands = 0 : i64, tpu.core_type = #tpu.core_type<tc>, window_params = [{transform_indices = @transform_0, window_bounds = array<i64: 128, 96>}, {transform_indices = @transform_1, window_bounds = array<i64: 128, 64>}, {pipeline_mode = #tpu.pipeline_mode<synchronous>, transform_indices = @transform_2, window_bounds = array<i64: 96, 96>}, {pipeline_mode = #tpu.pipeline_mode<synchronous>, transform_indices = @transform_3, window_bounds = array<i64: 2, 96, 96>}, {pipeline_mode = #tpu.pipeline_mode<synchronous>, transform_indices = @transform_4, window_bounds = array<i64: 96, 64>}, {pipeline_mode = #tpu.pipeline_mode<synchronous>, transform_indices = @transform_5, window_bounds = array<i64: 16, 64>}, {transform_indices = @transform_6, window_bounds = array<i64: 2, 16, 128>}]} {
    %c0 = arith.constant 0 : index
    %c0_0 = arith.constant 0 : index
    %0 = vector.load %arg1[%c0, %c0_0] : memref<128x96xf32, #tpu.memory_space<vmem>>, vector<128x96xf32>
    %c0_1 = arith.constant 0 : index
    %c0_2 = arith.constant 0 : index
    %1 = vector.load %arg2[%c0_1, %c0_2] : memref<128x64xf32, #tpu.memory_space<vmem>>, vector<128x64xf32>
    %c0_3 = arith.constant 0 : index
    %c0_4 = arith.constant 0 : index
    %2 = vector.load %arg3[%c0_3, %c0_4] : memref<96x96xf32, #tpu.memory_space<vmem>>, vector<96x96xf32>
    %cst = arith.constant dense<0.000000e+00> : vector<128x96xf32>
    %3 = tpu.matmul %0, %2, %cst {dimension_numbers = #tpu.dot_dimension_numbers<[1], [0], [0], [1], [0, 0, 1, 1], [], []>} : vector<128x96xf32>, vector<96x96xf32>, vector<128x96xf32> -> vector<128x96xf32>
    %cst_5 = arith.constant 0.000000e+00 : f32
    %4 = vector.broadcast %cst_5 : f32 to vector<128x96xf32>
    %5 = arith.maximumf %3, %4 : vector<128x96xf32>
    %c0_6 = arith.constant 0 : index
    %c0_7 = arith.constant 0 : index
    %6 = vector.load %arg6[%c0_6, %c0_7] : memref<16x64xf32, #tpu.memory_space<vmem>>, vector<16x64xf32>
    %c0_8 = arith.constant 0 : index
    %c0_9 = arith.constant 0 : index
    %c0_10 = arith.constant 0 : index
    %7 = vector.load %arg4[%c0_8, %c0_9, %c0_10] : memref<2x96x96xf32, #tpu.memory_space<vmem>>, vector<1x96x96xf32>
    %8 = vector.shape_cast %7 : vector<1x96x96xf32> to vector<96x96xf32>
    %cst_11 = arith.constant dense<0.000000e+00> : vector<128x96xf32>
    %9 = tpu.matmul %5, %8, %cst_11 {dimension_numbers = #tpu.dot_dimension_numbers<[1], [0], [0], [1], [0, 0, 1, 1], [], []>} : vector<128x96xf32>, vector<96x96xf32>, vector<128x96xf32> -> vector<128x96xf32>
    %c0_12 = arith.constant 0 : index
    %c0_13 = arith.constant 0 : index
    %10 = vector.load %arg5[%c0_12, %c0_13] : memref<96x64xf32, #tpu.memory_space<vmem>>, vector<96x64xf32>
    %cst_14 = arith.constant dense<0.000000e+00> : vector<128x64xf32>
    %11 = tpu.matmul %9, %10, %cst_14 {dimension_numbers = #tpu.dot_dimension_numbers<[1], [0], [0], [1], [0, 0, 1, 1], [], []>} : vector<128x96xf32>, vector<96x64xf32>, vector<128x64xf32> -> vector<128x64xf32>
    %cst_15 = arith.constant 0.000000e+00 : f32
    %12 = vector.broadcast %cst_15 : f32 to vector<128x64xf32>
    %13 = arith.maximumf %11, %12 : vector<128x64xf32>
    %14 = arith.mulf %13, %1 : vector<128x64xf32>
    %cst_16 = arith.constant dense<0.000000e+00> : vector<16x128xf32>
    %15 = tpu.matmul %6, %14, %cst_16 {dimension_numbers = #tpu.dot_dimension_numbers<[1], [1], [0], [0], [0, 0, 1, 0], [], []>} : vector<16x64xf32>, vector<128x64xf32>, vector<16x128xf32> -> vector<16x128xf32>
    %c0_17 = arith.constant 0 : index
    %c0_18 = arith.constant 0 : index
    %c0_19 = arith.constant 0 : index
    %16 = vector.load %arg7[%c0_17, %c0_18, %c0_19] : memref<2x16x128xf32, #tpu.memory_space<vmem>>, vector<1x16x128xf32>
    %17 = vector.shape_cast %16 : vector<1x16x128xf32> to vector<16x128xf32>
    %18 = vector.shape_cast %15 : vector<16x128xf32> to vector<1x16x128xf32>
    tpu.vector_store %arg7[%c0_17, %c0_18, %c0_19], %18 {strides = array<i32>} : memref<2x16x128xf32, #tpu.memory_space<vmem>>, vector<1x16x128xf32>,
    %c1 = arith.constant 1 : index
    %c0_20 = arith.constant 0 : index
    %c0_21 = arith.constant 0 : index
    %19 = vector.load %arg4[%c1, %c0_20, %c0_21] : memref<2x96x96xf32, #tpu.memory_space<vmem>>, vector<1x96x96xf32>
    %20 = vector.shape_cast %19 : vector<1x96x96xf32> to vector<96x96xf32>
    %cst_22 = arith.constant dense<0.000000e+00> : vector<128x96xf32>
    %21 = tpu.matmul %5, %20, %cst_22 {dimension_numbers = #tpu.dot_dimension_numbers<[1], [0], [0], [1], [0, 0, 1, 1], [], []>} : vector<128x96xf32>, vector<96x96xf32>, vector<128x96xf32> -> vector<128x96xf32>
    %c0_23 = arith.constant 0 : index
    %c0_24 = arith.constant 0 : index
    %22 = vector.load %arg5[%c0_23, %c0_24] : memref<96x64xf32, #tpu.memory_space<vmem>>, vector<96x64xf32>
    %cst_25 = arith.constant dense<0.000000e+00> : vector<128x64xf32>
    %23 = tpu.matmul %21, %22, %cst_25 {dimension_numbers = #tpu.dot_dimension_numbers<[1], [0], [0], [1], [0, 0, 1, 1], [], []>} : vector<128x96xf32>, vector<96x64xf32>, vector<128x64xf32> -> vector<128x64xf32>
    %cst_26 = arith.constant 0.000000e+00 : f32
    %24 = vector.broadcast %cst_26 : f32 to vector<128x64xf32>
    %25 = arith.maximumf %23, %24 : vector<128x64xf32>
    %26 = arith.mulf %25, %1 : vector<128x64xf32>
    %cst_27 = arith.constant dense<0.000000e+00> : vector<16x128xf32>
    %27 = tpu.matmul %6, %26, %cst_27 {dimension_numbers = #tpu.dot_dimension_numbers<[1], [1], [0], [0], [0, 0, 1, 0], [], []>} : vector<16x64xf32>, vector<128x64xf32>, vector<16x128xf32> -> vector<16x128xf32>
    %c1_28 = arith.constant 1 : index
    %c0_29 = arith.constant 0 : index
    %c0_30 = arith.constant 0 : index
    %28 = vector.load %arg7[%c1_28, %c0_29, %c0_30] : memref<2x16x128xf32, #tpu.memory_space<vmem>>, vector<1x16x128xf32>
    %29 = vector.shape_cast %28 : vector<1x16x128xf32> to vector<16x128xf32>
    %30 = vector.shape_cast %27 : vector<16x128xf32> to vector<1x16x128xf32>
    tpu.vector_store %arg7[%c1_28, %c0_29, %c0_30], %30 {strides = array<i32>} : memref<2x16x128xf32, #tpu.memory_space<vmem>>, vector<1x16x128xf32>,
    return
  }
  func.func @transform_0(%arg0: i32) -> (i32, i32) {
    %c0_i32 = arith.constant 0 : i32
    %c0_i32_0 = arith.constant 0 : i32
    return %arg0, %c0_i32 : i32, i32
  }
  func.func @transform_1(%arg0: i32) -> (i32, i32) {
    %c0_i32 = arith.constant 0 : i32
    %c0_i32_0 = arith.constant 0 : i32
    return %arg0, %c0_i32 : i32, i32
  }
  func.func @transform_2(%arg0: i32) -> (i32, i32) {
    %c0_i32 = arith.constant 0 : i32
    %c0_i32_0 = arith.constant 0 : i32
    %c0_i32_1 = arith.constant 0 : i32
    return %c0_i32, %c0_i32_0 : i32, i32
  }
  func.func @transform_3(%arg0: i32) -> (i32, i32, i32) {
    %c0_i32 = arith.constant 0 : i32
    %c0_i32_0 = arith.constant 0 : i32
    %c0_i32_1 = arith.constant 0 : i32
    %c0_i32_2 = arith.constant 0 : i32
    return %c0_i32, %c0_i32_0, %c0_i32_1 : i32, i32, i32
  }
  func.func @transform_4(%arg0: i32) -> (i32, i32) {
    %c0_i32 = arith.constant 0 : i32
    %c0_i32_0 = arith.constant 0 : i32
    %c0_i32_1 = arith.constant 0 : i32
    return %c0_i32, %c0_i32_0 : i32, i32
  }
  func.func @transform_5(%arg0: i32) -> (i32, i32) {
    %c0_i32 = arith.constant 0 : i32
    %c0_i32_0 = arith.constant 0 : i32
    %c0_i32_1 = arith.constant 0 : i32
    return %c0_i32, %c0_i32_0 : i32, i32
  }
  func.func @transform_6(%arg0: i32) -> (i32, i32, i32) {
    %c0_i32 = arith.constant 0 : i32
    %c0_i32_0 = arith.constant 0 : i32
    %c0_i32_1 = arith.constant 0 : i32
    return %c0_i32, %c0_i32_0, %arg0 : i32, i32, i32
  }
}

</mosaic_0001>

<llo_original>
// kernel: radioses_forward.5
$region0: #{radioses_forward.5}
  #allocation0 [shape = 'u32[]', space=smem, size = 0x4, offset = 0x4, fixed_abs, tag = 'smem constant byte address 0x4 - core index']
  #allocation1 [shape = 'u32[144,128]{1,0:T(1,128)}', space=vmem, size = 0x12000, scoped, tag = 'internal scratch']
  %s0 = inlined_call_operand.vmem [shape: f32[128,16], index: 0, kind: input, shape index: {}]
  %s1 = inlined_call_operand.vmem [shape: f32[16,256], index: 1, kind: input, shape index: {}]
  %s2 = inlined_call_operand.vmem [shape: f32[256,64], index: 2, kind: input, shape index: {}]
  %s3 = inlined_call_operand.vmem [shape: f32[128,64], index: 3, kind: output, shape index: {}]
  %s4 = sld [smem:[#allocation0]]
  $region45: #{radioses_forward.5} parent=0
    _
  %s6 = ssub.s32 1, %s4
  %s7 = scalar_select 0, %s6, %s4
  loop: start=0, step=1, limit=4
  $region2: #{radioses_forward.5} parent=0 // loop_pre_header
    _
  $region3: #{radioses_forward.5} parent=0 // loop_header
    %s9 = sphi 0, %s13
    %p10 = scmp.ge.s32.totalorder %s9, 4
    %s19 = sphi 0, %s21
    %s22 = sphi 0, %s19
    %s23 = sphi 0, %s22
    %s39 = sphi 0, %s23
    %s43 = sphi 0, %s43
    %s45 = sphi 0, %s43
    %s46 = sphi 0, %s45
    %s60 = sphi 0, %s46
    %s64 = sphi 0, %s64
    %s66 = sphi 0, %s64
    %s67 = sphi 0, %s66
    %s81 = sphi 0, %s67
    %s87 = sphi 0, %s89
    %s90 = sphi 0, %s87
    %s91 = sphi 0, %s90
    %s107 = sphi 0, %s91
  $region4: #{radioses_forward.5} parent=0 // loop_header_branch
    %12 = sbr.rel (%p10) target = $region8
  $region5: #{radioses_forward.5} parent=0 // loop_body
    %s14 = ssub.s32 %s9, 1
    %s15 = ssub.s32 %s9, 2
    %s16 = sadd.s32 %s9, 1
    %s17 = ssub.s32 %s9, %s16
    %p18 = scmp.eq.s32.totalorder %s17, 0
    %s20 = sadd.s32 %s19, 1
    %s21 = scalar_select %p18, %s19, %s20
    %p24 = pneg %p18
    %p25 = scmp.eq.s32.totalorder %s9, 1
    %p26 = por %p24, %p25
    %p27 = scmp.ne.s32.totalorder %s19, %s22
    %p28 = scmp.eq.s32.totalorder %s9, 0
    %p29 = por %p27, %p28
    %p30 = scmp.ne.s32.totalorder %s19, %s22
    %p31 = scmp.eq.s32.totalorder %s14, 1
    %p32 = por %p30, %p31
    %p33 = scmp.ne.s32.totalorder %s22, %s23
    %p34 = scmp.eq.s32.totalorder %s14, 0
    %p35 = por %p33, %p34
    %p36 = scmp.ne.s32.totalorder %s22, %s23
    %p37 = scmp.eq.s32.totalorder %s15, 1
    %p38 = por %p36, %p37
    %p40 = scmp.ne.s32.totalorder %s23, %s39
    %p41 = scmp.eq.s32.totalorder %s15, 0
    %p42 = por %p40, %p41
    %s44 = sadd.s32 %s43, 1
    %p47 = scmp.eq.s32.totalorder %s9, 1
    %p48 = scmp.ne.s32.totalorder %s43, %s45
    %p49 = scmp.eq.s32.totalorder %s9, 0
    %p50 = por %p48, %p49
    %p51 = scmp.ne.s32.totalorder %s43, %s45
    %p52 = scmp.eq.s32.totalorder %s14, 1
    %p53 = por %p51, %p52
    %p54 = scmp.ne.s32.totalorder %s45, %s46
    %p55 = scmp.eq.s32.totalorder %s14, 0
    %p56 = por %p54, %p55
    %p57 = scmp.ne.s32.totalorder %s45, %s46
    %p58 = scmp.eq.s32.totalorder %s15, 1
    %p59 = por %p57, %p58
    %p61 = scmp.ne.s32.totalorder %s46, %s60
    %p62 = scmp.eq.s32.totalorder %s15, 0
    %p63 = por %p61, %p62
    %s65 = sadd.s32 %s64, 1
    %p68 = scmp.eq.s32.totalorder %s9, 1
    %p69 = scmp.ne.s32.totalorder %s64, %s66
    %p70 = scmp.eq.s32.totalorder %s9, 0
    %p71 = por %p69, %p70
    %p72 = scmp.ne.s32.totalorder %s64, %s66
    %p73 = scmp.eq.s32.totalorder %s14, 1
    %p74 = por %p72, %p73
    %p75 = scmp.ne.s32.totalorder %s66, %s67
    %p76 = scmp.eq.s32.totalorder %s14, 0
    %p77 = por %p75, %p76
    %p78 = scmp.ne.s32.totalorder %s66, %s67
    %p79 = scmp.eq.s32.totalorder %s15, 1
    %p80 = por %p78, %p79
    %p82 = scmp.ne.s32.totalorder %s67, %s81
    %p83 = scmp.eq.s32.totalorder %s15, 0
    %p84 = por %p82, %p83
    %s85 = ssub.s32 %s9, %s16
    %p86 = scmp.eq.s32.totalorder %s85, 0
    %s88 = sadd.s32 %s87, 1
    %s89 = scalar_select %p86, %s87, %s88
    %p92 = pneg %p86
    %p93 = scmp.eq.s32.totalorder %s9, 1
    %p94 = por %p92, %p93
    %p95 = scmp.ne.s32.totalorder %s87, %s90
    %p96 = scmp.eq.s32.totalorder %s9, 0
    %p97 = por %p95, %p96
    %p98 = scmp.ne.s32.totalorder %s87, %s90
    %p99 = scmp.eq.s32.totalorder %s14, 1
    %p100 = por %p98, %p99
    %p101 = scmp.ne.s32.totalorder %s90, %s91
    %p102 = scmp.eq.s32.totalorder %s14, 0
    %p103 = por %p101, %p102
    %p104 = scmp.ne.s32.totalorder %s90, %s91
    %p105 = scmp.eq.s32.totalorder %s15, 1
    %p106 = por %p104, %p105
    %p108 = scmp.ne.s32.totalorder %s91, %s107
    %p109 = scmp.eq.s32.totalorder %s15, 0
    %p110 = por %p108, %p109
    %p111 = scmp.le.s32.totalorder 1, %s9
    %p112 = scmp.lt.s32.totalorder %s9, 3
    %p113 = pnand %p111, %p112
    %p114 = pneg %p113
    // Predicated region
    $region9: #{radioses_forward.5} parent=5 // pred_check
      _
    $region10: #{radioses_forward.5} parent=5 // pred_check_branch
      %116 = sbr.rel (%p113) target = $region12
    $region11: #{radioses_forward.5} parent=5 // pred_region
      %s117 = ssub.s32 %s9, 1
      // Predicated region
      $region13: #{radioses_forward.5} parent=11 // pred_check
        %p118 = pneg %p56
      $region14: #{radioses_forward.5} parent=11 // pred_check_branch
        %120 = sbr.rel (%p118) target = $region16
      $region15: #{radioses_forward.5} parent=11 // pred_region
        _
      $region16: #{radioses_forward.5} parent=11 // pred_fallthru
        _
      // Predicated region
      $region17: #{radioses_forward.5} parent=11 // pred_check
        %p121 = pneg %p77
      $region18: #{radioses_forward.5} parent=11 // pred_check_branch
        %123 = sbr.rel (%p121) target = $region20
      $region19: #{radioses_forward.5} parent=11 // pred_region
        _
      $region20: #{radioses_forward.5} parent=11 // pred_fallthru
        _
    $region12: #{radioses_forward.5} parent=5 // pred_fallthru
      _
    %p124 = scmp.lt.s32.totalorder %s9, 2
    // Predicated region
    $region21: #{radioses_forward.5} parent=5 // pred_check
      %p125 = pneg %p124
    $region22: #{radioses_forward.5} parent=5 // pred_check_branch
      %127 = sbr.rel (%p125) target = $region24
    $region23: #{radioses_forward.5} parent=5 // pred_region
      // Predicated region
      $region25: #{radioses_forward.5} parent=23 // pred_check
        %p128 = pneg %p29
      $region26: #{radioses_forward.5} parent=23 // pred_check_branch
        %130 = sbr.rel (%p128) target = $region28
      $region27: #{radioses_forward.5} parent=23 // pred_region
        %s131 = smul.u32 8, %s9
        %p132 = scmp.lt.s32.totalorder %s131, 15
        %s133 = scalar_select %p132, %s131, 15
        %s134 = smul.addr %s133, 8
        %s135 = scalar_lea.vmem %s0, %s134
        %s136 = smul.u32 8, %s9
      $region28: #{radioses_forward.5} parent=23 // pred_fallthru
        _
    $region24: #{radioses_forward.5} parent=5 // pred_fallthru
      _
    %p137 = scmp.le.s32.totalorder 1, %s9
    %p138 = scmp.lt.s32.totalorder %s9, 3
    %p139 = pnand %p137, %p138
    %p140 = pneg %p139
    // Predicated region
    $region29: #{radioses_forward.5} parent=5 // pred_check
      _
    $region30: #{radioses_forward.5} parent=5 // pred_check_branch
      %142 = sbr.rel (%p139) target = $region32
    $region31: #{radioses_forward.5} parent=5 // pred_region
      %s143 = ssub.s32 %s9, 1
      %s144 = smul.u32 8, %s14
      %p145 = scmp.lt.s32.totalorder %s144, 15
      %s146 = scalar_select %p145, %s144, 15
      %s147 = smul.addr %s146, 8
      %s148 = scalar_lea.vmem %s0, %s147
      %p149 = pneg %p35
      %p150 = pneg %p32
      %p151 = pneg %p56
      %p152 = pneg %p53
      %p153 = pneg %p77
      %p154 = pneg %p74
      %p155 = pneg %p103
      %p156 = pneg %p100
      %s157 = smul.u32 8, %s14
      %p158 = scmp.lt.s32.totalorder %s157, 15
      %s159 = scalar_select %p158, %s157, 15
      %s160 = smul.addr %s159, 8
      %s161 = scalar_lea.vmem %s3, %s160
      %s162 = smul.u32 8, %s14
      %p163 = scmp.lt.s32.totalorder %s162, 15
      %s164 = scalar_select %p163, %s162, 15
      %s165 = smul.addr %s164, 8
      %s166 = scalar_lea.vmem %s0, %s165
      %s167 = smul.u32 8, %s14
      %s168 = smul.u32 8, %s14
      %p169 = scmp.lt.s32.totalorder %s168, 15
      %s170 = scalar_select %p169, %s168, 15
      %s171 = smul.addr %s170, 8
      %s172 = scalar_lea.vmem %s3, %s171
      %s173 = smul.u32 8, %s14
      %v174 = vld [vmem:[%s166] sm:$0xff]
      %v175 = vld [vmem:[%s166 + $0x8] sm:$0xff]
      %v176 = vld [vmem:[%s166 + $0x10] sm:$0xff]
      %v177 = vld [vmem:[%s166 + $0x18] sm:$0xff]
      %v178 = vld [vmem:[%s166 + $0x20] sm:$0xff]
      %v179 = vld [vmem:[%s166 + $0x28] sm:$0xff]
      %v180 = vld [vmem:[%s166 + $0x30] sm:$0xff]
      %v181 = vld [vmem:[%s166 + $0x38] sm:$0xff]
      %v182 = vld [vmem:[%s1] sm:$0xff]
      %v183 = vld [vmem:[%s1 + $0x8] sm:$0xff]
      %v184 = vld [vmem:[%s1 + $0x10] sm:$0xff]
      %v185 = vld [vmem:[%s1 + $0x18] sm:$0xff]
      %vm186 = vcmask 130048
      %v188 = vsel %vm186, %v174, 0
      %v191 = vsel %vm186, %v175, 0
      %v194 = vsel %vm186, %v176, 0
      %v197 = vsel %vm186, %v177, 0
      %v200 = vsel %vm186, %v178, 0
      %v203 = vsel %vm186, %v179, 0
      %v206 = vsel %vm186, %v180, 0
      %v209 = vsel %vm186, %v181, 0
      %211 = vmatprep.subr.mxu0 %v183
      %212 = vmatpush1.msra.mxu0 %v182
      %213 = vmatprep.subr.mxu0 %v185
      %214 = vmatpush1.msra.mxu0 %v184
      %215 = vmatprep.subr.mxu0 0.0
      %216 = vmatpush1.msra.mxu0 0.0
      %217 = vmatprep.subr.mxu0 0.0
      %218 = vmatpush1.msra.mxu0 0.0
      %219 = vmatprep.subr.mxu0 0.0
      %220 = vmatpush1.msra.mxu0 0.0
      %221 = vmatprep.subr.mxu0 0.0
      %222 = vmatpush1.msra.mxu0 0.0
      %223 = vmatprep.subr.mxu0 0.0
      %224 = vmatpush1.msra.mxu0 0.0
      %225 = vmatprep.subr.mxu0 0.0
      %226 = vmatpush1.msra.mxu0 0.0
      %227 = vmatprep.subr.mxu0 0.0
      %228 = vmatpush1.msra.mxu0 0.0
      %229 = vmatprep.subr.mxu0 0.0
      %230 = vmatpush1.msra.mxu0 0.0
      %231 = vmatprep.subr.mxu0 0.0
      %232 = vmatpush1.msra.mxu0 0.0
      %233 = vmatprep.subr.mxu0 0.0
      %234 = vmatpush1.msra.mxu0 0.0
      %235 = vmatprep.subr.mxu0 0.0
      %236 = vmatpush1.msra.mxu0 0.0
      %237 = vmatprep.subr.mxu0 0.0
      %238 = vmatpush1.msra.mxu0 0.0
      %239 = vmatprep.subr.mxu0 0.0
      %240 = vmatpush1.msra.mxu0 0.0
      %241 = vmatprep.subr.mxu0 0.0
      %242 = vmatpush1.msra.mxu0 0.0
      %243 = vmatprep.subr.mxu0 0.0
      %244 = vmatpush1.msra.mxu0 0.0
      %245 = vmatprep.subr.mxu0 0.0
      %246 = vmatpush1.msra.mxu0 0.0
      %247 = vmatprep.subr.mxu0 0.0
      %248 = vmatpush1.msra.mxu0 0.0
      %249 = vmatprep.subr.mxu0 0.0
      %250 = vmatpush1.msra.mxu0 0.0
      %251 = vmatprep.subr.mxu0 0.0
      %252 = vmatpush1.msra.mxu0 0.0
      %253 = vmatprep.subr.mxu0 0.0
      %254 = vmatpush1.msra.mxu0 0.0
      %255 = vmatprep.subr.mxu0 0.0
      %256 = vmatpush1.msra.mxu0 0.0
      %257 = vmatprep.subr.mxu0 0.0
      %258 = vmatpush1.msra.mxu0 0.0
      %259 = vmatprep.subr.mxu0 0.0
      %260 = vmatpush1.msra.mxu0 0.0
      %261 = vmatprep.subr.mxu0 0.0
      %262 = vmatpush1.msra.mxu0 0.0
      %263 = vmatprep.subr.mxu0 0.0
      %264 = vmatpush1.msra.mxu0 0.0
      %265 = vmatprep.subr.mxu0 0.0
      %266 = vmatpush1.msra.mxu0 0.0
      %267 = vmatprep.subr.mxu0 0.0
      %268 = vmatpush1.msra.mxu0 0.0
      %269 = vmatprep.subr.mxu0 0.0
      %270 = vmatpush1.msra.mxu0 0.0
      %271 = vmatprep.subr.mxu0 0.0
      %272 = vmatpush1.msra.mxu0 0.0
      %273 = vmatprep.subr.mxu0 0.0
      %274 = vmatpush1.msra.mxu0 0.0
      %275 = vmatprep.mubr.f32.mxu0 0.0
      %276 = vmatmul.mubr.f32.gmra.mrb[0].mxu0 %v188
      %v277 = vpop.f32.mrb[0].mxu0
      %v278 = vadd.f32 0.0, %v277
      %v279 = vpop.f32.mrb[0].mxu0
      %v280 = vadd.f32 0.0, %v279
      %281 = vmatprep.mubr.f32.mxu0 0.0
      %282 = vmatmul.mubr.f32.gmra.mrb[0].mxu0 %v191
      %v283 = vpop.f32.mrb[0].mxu0
      %v284 = vadd.f32 0.0, %v283
      %v285 = vpop.f32.mrb[0].mxu0
      %v286 = vadd.f32 0.0, %v285
      %287 = vmatprep.mubr.f32.mxu0 0.0
      %288 = vmatmul.mubr.f32.gmra.mrb[0].mxu0 %v194
      %v289 = vpop.f32.mrb[0].mxu0
      %v290 = vadd.f32 0.0, %v289
      %v291 = vpop.f32.mrb[0].mxu0
      %v292 = vadd.f32 0.0, %v291
      %293 = vmatprep.mubr.f32.mxu0 0.0
      %294 = vmatmul.mubr.f32.gmra.mrb[0].mxu0 %v197
      %v295 = vpop.f32.mrb[0].mxu0
      %v296 = vadd.f32 0.0, %v295
      %v297 = vpop.f32.mrb[0].mxu0
      %v298 = vadd.f32 0.0, %v297
      %299 = vmatprep.mubr.f32.mxu0 0.0
      %300 = vmatmul.mubr.f32.gmra.mrb[0].mxu0 %v200
      %v301 = vpop.f32.mrb[0].mxu0
      %v302 = vadd.f32 0.0, %v301
      %v303 = vpop.f32.mrb[0].mxu0
      %v304 = vadd.f32 0.0, %v303
      %305 = vmatprep.mubr.f32.mxu0 0.0
      %306 = vmatmul.mubr.f32.gmra.mrb[0].mxu0 %v203
      %v307 = vpop.f32.mrb[0].mxu0
      %v308 = vadd.f32 0.0, %v307
      %v309 = vpop.f32.mrb[0].mxu0
      %v310 = vadd.f32 0.0, %v309
      %311 = vmatprep.mubr.f32.mxu0 0.0
      %312 = vmatmul.mubr.f32.gmra.mrb[0].mxu0 %v206
      %v313 = vpop.f32.mrb[0].mxu0
      %v314 = vadd.f32 0.0, %v313
      %v315 = vpop.f32.mrb[0].mxu0
      %v316 = vadd.f32 0.0, %v315
      %317 = vmatprep.mubr.f32.mxu0 0.0
      %318 = vmatmul.mubr.f32.gmra.mrb[0].mxu0 %v209
      %v319 = vpop.f32.mrb[0].mxu0
      %v320 = vadd.f32 0.0, %v319
      %v321 = vpop.f32.mrb[0].mxu0
      %v322 = vadd.f32 0.0, %v321
      %323 = vdwg.mxu0
      %v324 = vmax.f32 %v278, 0.0
      %v325 = vmax.f32 %v280, 0.0
      %v326 = vmax.f32 %v284, 0.0
      %v327 = vmax.f32 %v286, 0.0
      %v328 = vmax.f32 %v290, 0.0
      %v329 = vmax.f32 %v292, 0.0
      %v330 = vmax.f32 %v296, 0.0
      %v331 = vmax.f32 %v298, 0.0
      %v332 = vmax.f32 %v302, 0.0
      %v333 = vmax.f32 %v304, 0.0
      %v334 = vmax.f32 %v308, 0.0
      %v335 = vmax.f32 %v310, 0.0
      %v336 = vmax.f32 %v314, 0.0
      %v337 = vmax.f32 %v316, 0.0
      %v338 = vmax.f32 %v320, 0.0
      %v339 = vmax.f32 %v322, 0.0
      %v340 = vld [vmem:[%s2] sm:$0xff]
      %v341 = vld [vmem:[%s2 + $0x8] sm:$0xff]
      %v342 = vld [vmem:[%s2 + $0x10] sm:$0xff]
      %v343 = vld [vmem:[%s2 + $0x18] sm:$0xff]
      %v344 = vld [vmem:[%s2 + $0x20] sm:$0xff]
      %v345 = vld [vmem:[%s2 + $0x28] sm:$0xff]
      %v346 = vld [vmem:[%s2 + $0x30] sm:$0xff]
      %v347 = vld [vmem:[%s2 + $0x38] sm:$0xff]
      %v348 = vld [vmem:[%s2 + $0x40] sm:$0xff]
      %v349 = vld [vmem:[%s2 + $0x48] sm:$0xff]
      %v350 = vld [vmem:[%s2 + $0x50] sm:$0xff]
      %v351 = vld [vmem:[%s2 + $0x58] sm:$0xff]
      %v352 = vld [vmem:[%s2 + $0x60] sm:$0xff]
      %v353 = vld [vmem:[%s2 + $0x68] sm:$0xff]
      %v354 = vld [vmem:[%s2 + $0x70] sm:$0xff]
      %v355 = vld [vmem:[%s2 + $0x78] sm:$0xff]
      %v356 = vld [vmem:[%s2 + $0x80] sm:$0xff]
      %v357 = vld [vmem:[%s2 + $0x88] sm:$0xff]
      %v358 = vld [vmem:[%s2 + $0x90] sm:$0xff]
      %v359 = vld [vmem:[%s2 + $0x98] sm:$0xff]
      %v360 = vld [vmem:[%s2 + $0xa0] sm:$0xff]
      %v361 = vld [vmem:[%s2 + $0xa8] sm:$0xff]
      %v362 = vld [vmem:[%s2 + $0xb0] sm:$0xff]
      %v363 = vld [vmem:[%s2 + $0xb8] sm:$0xff]
      %v364 = vld [vmem:[%s2 + $0xc0] sm:$0xff]
      %v365 = vld [vmem:[%s2 + $0xc8] sm:$0xff]
      %v366 = vld [vmem:[%s2 + $0xd0] sm:$0xff]
      %v367 = vld [vmem:[%s2 + $0xd8] sm:$0xff]
      %v368 = vld [vmem:[%s2 + $0xe0] sm:$0xff]
      %v369 = vld [vmem:[%s2 + $0xe8] sm:$0xff]
      %v370 = vld [vmem:[%s2 + $0xf0] sm:$0xff]
      %v371 = vld [vmem:[%s2 + $0xf8] sm:$0xff]
      %372 = vmatprep.subr.mxu0 0.0
      %373 = vmatpush1.msra.mxu0 %v340
      %374 = vmatprep.subr.mxu0 0.0
      %375 = vmatpush1.msra.mxu0 %v341
      %376 = vmatprep.subr.mxu0 0.0
      %377 = vmatpush1.msra.mxu0 %v342
      %378 = vmatprep.subr.mxu0 0.0
      %379 = vmatpush1.msra.mxu0 %v343
      %380 = vmatprep.subr.mxu0 0.0
      %381 = vmatpush1.msra.mxu0 %v344
      %382 = vmatprep.subr.mxu0 0.0
      %383 = vmatpush1.msra.mxu0 %v345
      %384 = vmatprep.subr.mxu0 0.0
      %385 = vmatpush1.msra.mxu0 %v346
      %386 = vmatprep.subr.mxu0 0.0
      %387 = vmatpush1.msra.mxu0 %v347
      %388 = vmatprep.subr.mxu0 0.0
      %389 = vmatpush1.msra.mxu0 %v348
      %390 = vmatprep.subr.mxu0 0.0
      %391 = vmatpush1.msra.mxu0 %v349
      %392 = vmatprep.subr.mxu0 0.0
      %393 = vmatpush1.msra.mxu0 %v350
      %394 = vmatprep.subr.mxu0 0.0
      %395 = vmatpush1.msra.mxu0 %v351
      %396 = vmatprep.subr.mxu0 0.0
      %397 = vmatpush1.msra.mxu0 %v352
      %398 = vmatprep.subr.mxu0 0.0
      %399 = vmatpush1.msra.mxu0 %v353
      %400 = vmatprep.subr.mxu0 0.0
      %401 = vmatpush1.msra.mxu0 %v354
      %402 = vmatprep.subr.mxu0 0.0
      %403 = vmatpush1.msra.mxu0 %v355
      %404 = vmatprep.subr.mxu0 0.0
      %405 = vmatpush1.msra.mxu0 %v356
      %406 = vmatprep.subr.mxu0 0.0
      %407 = vmatpush1.msra.mxu0 %v357
      %408 = vmatprep.subr.mxu0 0.0
      %409 = vmatpush1.msra.mxu0 %v358
      %410 = vmatprep.subr.mxu0 0.0
      %411 = vmatpush1.msra.mxu0 %v359
      %412 = vmatprep.subr.mxu0 0.0
      %413 = vmatpush1.msra.mxu0 %v360
      %414 = vmatprep.subr.mxu0 0.0
      %415 = vmatpush1.msra.mxu0 %v361
      %416 = vmatprep.subr.mxu0 0.0
      %417 = vmatpush1.msra.mxu0 %v362
      %418 = vmatprep.subr.mxu0 0.0
      %419 = vmatpush1.msra.mxu0 %v363
      %420 = vmatprep.subr.mxu0 0.0
      %421 = vmatpush1.msra.mxu0 %v364
      %422 = vmatprep.subr.mxu0 0.0
      %423 = vmatpush1.msra.mxu0 %v365
      %424 = vmatprep.subr.mxu0 0.0
      %425 = vmatpush1.msra.mxu0 %v366
      %426 = vmatprep.subr.mxu0 0.0
      %427 = vmatpush1.msra.mxu0 %v367
      %428 = vmatprep.subr.mxu0 0.0
      %429 = vmatpush1.msra.mxu0 %v368
      %430 = vmatprep.subr.mxu0 0.0
      %431 = vmatpush1.msra.mxu0 %v369
      %432 = vmatprep.subr.mxu0 0.0
      %433 = vmatpush1.msra.mxu0 %v370
      %434 = vmatprep.subr.mxu0 0.0
      %435 = vmatpush1.msra.mxu0 %v371
      %436 = vmatprep.mubr.f32.mxu0 %v325
      %437 = vmatmul.mubr.f32.gmra.mrb[0].mxu0 %v324
      %v438 = vpop.f32.mrb[0].mxu0
      %v439 = vadd.f32 0.0, %v438
      %v440 = vpop.f32.mrb[0].mxu0
      %441 = vmatprep.mubr.f32.mxu0 %v327
      %442 = vmatmul.mubr.f32.gmra.mrb[0].mxu0 %v326
      %v443 = vpop.f32.mrb[0].mxu0
      %v444 = vadd.f32 0.0, %v443
      %v445 = vpop.f32.mrb[0].mxu0
      %446 = vmatprep.mubr.f32.mxu0 %v329
      %447 = vmatmul.mubr.f32.gmra.mrb[0].mxu0 %v328
      %v448 = vpop.f32.mrb[0].mxu0
      %v449 = vadd.f32 0.0, %v448
      %v450 = vpop.f32.mrb[0].mxu0
      %451 = vmatprep.mubr.f32.mxu0 %v331
      %452 = vmatmul.mubr.f32.gmra.mrb[0].mxu0 %v330
      %v453 = vpop.f32.mrb[0].mxu0
      %v454 = vadd.f32 0.0, %v453
      %v455 = vpop.f32.mrb[0].mxu0
      %456 = vmatprep.mubr.f32.mxu0 %v333
      %457 = vmatmul.mubr.f32.gmra.mrb[0].mxu0 %v332
      %v458 = vpop.f32.mrb[0].mxu0
      %v459 = vadd.f32 0.0, %v458
      %v460 = vpop.f32.mrb[0].mxu0
      %461 = vmatprep.mubr.f32.mxu0 %v335
      %462 = vmatmul.mubr.f32.gmra.mrb[0].mxu0 %v334
      %v463 = vpop.f32.mrb[0].mxu0
      %v464 = vadd.f32 0.0, %v463
      %v465 = vpop.f32.mrb[0].mxu0
      %466 = vmatprep.mubr.f32.mxu0 %v337
      %467 = vmatmul.mubr.f32.gmra.mrb[0].mxu0 %v336
      %v468 = vpop.f32.mrb[0].mxu0
      %v469 = vadd.f32 0.0, %v468
      %v470 = vpop.f32.mrb[0].mxu0
      %471 = vmatprep.mubr.f32.mxu0 %v339
      %472 = vmatmul.mubr.f32.gmra.mrb[0].mxu0 %v338
      %v473 = vpop.f32.mrb[0].mxu0
      %v474 = vadd.f32 0.0, %v473
      %v475 = vpop.f32.mrb[0].mxu0
      %476 = vdwg.mxu0
      %v477 = vmax.f32 %v439, 0.0
      %v478 = vmax.f32 %v444, 0.0
      %v479 = vmax.f32 %v449, 0.0
      %v480 = vmax.f32 %v454, 0.0
      %v481 = vmax.f32 %v459, 0.0
      %v482 = vmax.f32 %v464, 0.0
      %v483 = vmax.f32 %v469, 0.0
      %v484 = vmax.f32 %v474, 0.0
      %vm485 = vcmask 523264
      %486 = vst.msk [vmem:[%s172] sm:$0xff] %vm485, %v477
      %487 = vst.msk [vmem:[%s172 + $0x8] sm:$0xff] %vm485, %v478
      %488 = vst.msk [vmem:[%s172 + $0x10] sm:$0xff] %vm485, %v479
      %489 = vst.msk [vmem:[%s172 + $0x18] sm:$0xff] %vm485, %v480
      %490 = vst.msk [vmem:[%s172 + $0x20] sm:$0xff] %vm485, %v481
      %491 = vst.msk [vmem:[%s172 + $0x28] sm:$0xff] %vm485, %v482
      %492 = vst.msk [vmem:[%s172 + $0x30] sm:$0xff] %vm485, %v483
      %493 = vst.msk [vmem:[%s172 + $0x38] sm:$0xff] %vm485, %v484
      %s494 = smul.u32 8, %s14
      %p495 = scmp.lt.s32.totalorder %s494, 15
      %s496 = scalar_select %p495, %s494, 15
      %s497 = smul.addr %s496, 8
      %s498 = scalar_lea.vmem %s3, %s497
      // Predicated region
      $region33: #{radioses_forward.5} parent=31 // pred_check
        %p499 = pneg %p100
      $region34: #{radioses_forward.5} parent=31 // pred_check_branch
        %501 = sbr.rel (%p499) target = $region36
      $region35: #{radioses_forward.5} parent=31 // pred_region
        %s502 = smul.u32 8, %s14
      $region36: #{radioses_forward.5} parent=31 // pred_fallthru
        _
    $region32: #{radioses_forward.5} parent=5 // pred_fallthru
      _
    %p503 = scmp.le.s32.totalorder 2, %s9
    // Predicated region
    $region37: #{radioses_forward.5} parent=5 // pred_check
      %p504 = pneg %p503
    $region38: #{radioses_forward.5} parent=5 // pred_check_branch
      %506 = sbr.rel (%p504) target = $region40
    $region39: #{radioses_forward.5} parent=5 // pred_region
      %s507 = ssub.s32 %s9, 2
      // Predicated region
      $region41: #{radioses_forward.5} parent=39 // pred_check
        %p508 = pneg %p106
      $region42: #{radioses_forward.5} parent=39 // pred_check_branch
        %510 = sbr.rel (%p508) target = $region44
      $region43: #{radioses_forward.5} parent=39 // pred_region
        %s511 = smul.u32 8, %s15
        %p512 = scmp.lt.s32.totalorder %s511, 15
        %s513 = scalar_select %p512, %s511, 15
        %s514 = smul.addr %s513, 8
        %s515 = scalar_lea.vmem %s3, %s514
      $region44: #{radioses_forward.5} parent=39 // pred_fallthru
        _
    $region40: #{radioses_forward.5} parent=5 // pred_fallthru
      _
  $region6: #{radioses_forward.5} parent=0 // loop_footer
    %s13 = sadd.s32 1, %s9
  $region7: #{radioses_forward.5} parent=0 // loop_footer_branch
    %8 = sbr.rel target = $region3
  $region8: #{radioses_forward.5} parent=0 // loop_exit
    _

// kernel: radioses_forward.4
$region0: #{radioses_forward.4}
  #allocation0 [shape = 'u32[]', space=smem, size = 0x4, offset = 0x4, fixed_abs, tag = 'smem constant byte address 0x4 - core index']
  #allocation1 [shape = 'u32[144,128]{1,0:T(1,128)}', space=vmem, size = 0x12000, scoped, tag = 'internal scratch']
  %s0 = inlined_call_operand.vmem [shape: f32[128,16], index: 0, kind: input, shape index: {}]
  %s1 = inlined_call_operand.vmem [shape: f32[16,64], index: 1, kind: input, shape index: {}]
  %s2 = inlined_call_operand.vmem [shape: f32[64,16], index: 2, kind: input, shape index: {}]
  %s3 = inlined_call_operand.vmem [shape: f32[16,16], index: 3, kind: input, shape index: {}]
  %s4 = inlined_call_operand.vmem [shape: f32[16,16], index: 4, kind: input, shape index: {}]
  %s5 = inlined_call_operand.vmem [shape: f32[128,16], index: 5, kind: output, shape index: {}]
  %s6 = sld [smem:[#allocation0]]
  $region53: #{radioses_forward.4} parent=0
    _
  %s8 = ssub.s32 1, %s6
  %s9 = scalar_select 0, %s8, %s6
  loop: start=0, step=1, limit=4
  $region2: #{radioses_forward.4} parent=0 // loop_pre_header
    _
  $region3: #{radioses_forward.4} parent=0 // loop_header
    %s11 = sphi 0, %s15
    %p12 = scmp.ge.s32.totalorder %s11, 4
    %s21 = sphi 0, %s23
    %s24 = sphi 0, %s21
    %s25 = sphi 0, %s24
    %s41 = sphi 0, %s25
    %s45 = sphi 0, %s45
    %s47 = sphi 0, %s45
    %s48 = sphi 0, %s47
    %s62 = sphi 0, %s48
    %s66 = sphi 0, %s66
    %s68 = sphi 0, %s66
    %s69 = sphi 0, %s68
    %s83 = sphi 0, %s69
    %s87 = sphi 0, %s87
    %s89 = sphi 0, %s87
    %s90 = sphi 0, %s89
    %s104 = sphi 0, %s90
    %s108 = sphi 0, %s108
    %s110 = sphi 0, %s108
    %s111 = sphi 0, %s110
    %s125 = sphi 0, %s111
    %s131 = sphi 0, %s133
    %s134 = sphi 0, %s131
    %s135 = sphi 0, %s134
    %s151 = sphi 0, %s135
  $region4: #{radioses_forward.4} parent=0 // loop_header_branch
    %14 = sbr.rel (%p12) target = $region8
  $region5: #{radioses_forward.4} parent=0 // loop_body
    %s16 = ssub.s32 %s11, 1
    %s17 = ssub.s32 %s11, 2
    %s18 = sadd.s32 %s11, 1
    %s19 = ssub.s32 %s11, %s18
    %p20 = scmp.eq.s32.totalorder %s19, 0
    %s22 = sadd.s32 %s21, 1
    %s23 = scalar_select %p20, %s21, %s22
    %p26 = pneg %p20
    %p27 = scmp.eq.s32.totalorder %s11, 1
    %p28 = por %p26, %p27
    %p29 = scmp.ne.s32.totalorder %s21, %s24
    %p30 = scmp.eq.s32.totalorder %s11, 0
    %p31 = por %p29, %p30
    %p32 = scmp.ne.s32.totalorder %s21, %s24
    %p33 = scmp.eq.s32.totalorder %s16, 1
    %p34 = por %p32, %p33
    %p35 = scmp.ne.s32.totalorder %s24, %s25
    %p36 = scmp.eq.s32.totalorder %s16, 0
    %p37 = por %p35, %p36
    %p38 = scmp.ne.s32.totalorder %s24, %s25
    %p39 = scmp.eq.s32.totalorder %s17, 1
    %p40 = por %p38, %p39
    %p42 = scmp.ne.s32.totalorder %s25, %s41
    %p43 = scmp.eq.s32.totalorder %s17, 0
    %p44 = por %p42, %p43
    %s46 = sadd.s32 %s45, 1
    %p49 = scmp.eq.s32.totalorder %s11, 1
    %p50 = scmp.ne.s32.totalorder %s45, %s47
    %p51 = scmp.eq.s32.totalorder %s11, 0
    %p52 = por %p50, %p51
    %p53 = scmp.ne.s32.totalorder %s45, %s47
    %p54 = scmp.eq.s32.totalorder %s16, 1
    %p55 = por %p53, %p54
    %p56 = scmp.ne.s32.totalorder %s47, %s48
    %p57 = scmp.eq.s32.totalorder %s16, 0
    %p58 = por %p56, %p57
    %p59 = scmp.ne.s32.totalorder %s47, %s48
    %p60 = scmp.eq.s32.totalorder %s17, 1
    %p61 = por %p59, %p60
    %p63 = scmp.ne.s32.totalorder %s48, %s62
    %p64 = scmp.eq.s32.totalorder %s17, 0
    %p65 = por %p63, %p64
    %s67 = sadd.s32 %s66, 1
    %p70 = scmp.eq.s32.totalorder %s11, 1
    %p71 = scmp.ne.s32.totalorder %s66, %s68
    %p72 = scmp.eq.s32.totalorder %s11, 0
    %p73 = por %p71, %p72
    %p74 = scmp.ne.s32.totalorder %s66, %s68
    %p75 = scmp.eq.s32.totalorder %s16, 1
    %p76 = por %p74, %p75
    %p77 = scmp.ne.s32.totalorder %s68, %s69
    %p78 = scmp.eq.s32.totalorder %s16, 0
    %p79 = por %p77, %p78
    %p80 = scmp.ne.s32.totalorder %s68, %s69
    %p81 = scmp.eq.s32.totalorder %s17, 1
    %p82 = por %p80, %p81
    %p84 = scmp.ne.s32.totalorder %s69, %s83
    %p85 = scmp.eq.s32.totalorder %s17, 0
    %p86 = por %p84, %p85
    %s88 = sadd.s32 %s87, 1
    %p91 = scmp.eq.s32.totalorder %s11, 1
    %p92 = scmp.ne.s32.totalorder %s87, %s89
    %p93 = scmp.eq.s32.totalorder %s11, 0
    %p94 = por %p92, %p93
    %p95 = scmp.ne.s32.totalorder %s87, %s89
    %p96 = scmp.eq.s32.totalorder %s16, 1
    %p97 = por %p95, %p96
    %p98 = scmp.ne.s32.totalorder %s89, %s90
    %p99 = scmp.eq.s32.totalorder %s16, 0
    %p100 = por %p98, %p99
    %p101 = scmp.ne.s32.totalorder %s89, %s90
    %p102 = scmp.eq.s32.totalorder %s17, 1
    %p103 = por %p101, %p102
    %p105 = scmp.ne.s32.totalorder %s90, %s104
    %p106 = scmp.eq.s32.totalorder %s17, 0
    %p107 = por %p105, %p106
    %s109 = sadd.s32 %s108, 1
    %p112 = scmp.eq.s32.totalorder %s11, 1
    %p113 = scmp.ne.s32.totalorder %s108, %s110
    %p114 = scmp.eq.s32.totalorder %s11, 0
    %p115 = por %p113, %p114
    %p116 = scmp.ne.s32.totalorder %s108, %s110
    %p117 = scmp.eq.s32.totalorder %s16, 1
    %p118 = por %p116, %p117
    %p119 = scmp.ne.s32.totalorder %s110, %s111
    %p120 = scmp.eq.s32.totalorder %s16, 0
    %p121 = por %p119, %p120
    %p122 = scmp.ne.s32.totalorder %s110, %s111
    %p123 = scmp.eq.s32.totalorder %s17, 1
    %p124 = por %p122, %p123
    %p126 = scmp.ne.s32.totalorder %s111, %s125
    %p127 = scmp.eq.s32.totalorder %s17, 0
    %p128 = por %p126, %p127
    %s129 = ssub.s32 %s11, %s18
    %p130 = scmp.eq.s32.totalorder %s129, 0
    %s132 = sadd.s32 %s131, 1
    %s133 = scalar_select %p130, %s131, %s132
    %p136 = pneg %p130
    %p137 = scmp.eq.s32.totalorder %s11, 1
    %p138 = por %p136, %p137
    %p139 = scmp.ne.s32.totalorder %s131, %s134
    %p140 = scmp.eq.s32.totalorder %s11, 0
    %p141 = por %p139, %p140
    %p142 = scmp.ne.s32.totalorder %s131, %s134
    %p143 = scmp.eq.s32.totalorder %s16, 1
    %p144 = por %p142, %p143
    %p145 = scmp.ne.s32.totalorder %s134, %s135
    %p146 = scmp.eq.s32.totalorder %s16, 0
    %p147 = por %p145, %p146
    %p148 = scmp.ne.s32.totalorder %s134, %s135
    %p149 = scmp.eq.s32.totalorder %s17, 1
    %p150 = por %p148, %p149
    %p152 = scmp.ne.s32.totalorder %s135, %s151
    %p153 = scmp.eq.s32.totalorder %s17, 0
    %p154 = por %p152, %p153
    %p155 = scmp.le.s32.totalorder 1, %s11
    %p156 = scmp.lt.s32.totalorder %s11, 3
    %p157 = pnand %p155, %p156
    %p158 = pneg %p157
    // Predicated region
    $region9: #{radioses_forward.4} parent=5 // pred_check
      _
    $region10: #{radioses_forward.4} parent=5 // pred_check_branch
      %160 = sbr.rel (%p157) target = $region12
    $region11: #{radioses_forward.4} parent=5 // pred_region
      %s161 = ssub.s32 %s11, 1
      // Predicated region
      $region13: #{radioses_forward.4} parent=11 // pred_check
        %p162 = pneg %p58
      $region14: #{radioses_forward.4} parent=11 // pred_check_branch
        %164 = sbr.rel (%p162) target = $region16
      $region15: #{radioses_forward.4} parent=11 // pred_region
        _
      $region16: #{radioses_forward.4} parent=11 // pred_fallthru
        _
      // Predicated region
      $region17: #{radioses_forward.4} parent=11 // pred_check
        %p165 = pneg %p79
      $region18: #{radioses_forward.4} parent=11 // pred_check_branch
        %167 = sbr.rel (%p165) target = $region20
      $region19: #{radioses_forward.4} parent=11 // pred_region
        _
      $region20: #{radioses_forward.4} parent=11 // pred_fallthru
        _
      // Predicated region
      $region21: #{radioses_forward.4} parent=11 // pred_check
        %p168 = pneg %p100
      $region22: #{radioses_forward.4} parent=11 // pred_check_branch
        %170 = sbr.rel (%p168) target = $region24
      $region23: #{radioses_forward.4} parent=11 // pred_region
        _
      $region24: #{radioses_forward.4} parent=11 // pred_fallthru
        _
      // Predicated region
      $region25: #{radioses_forward.4} parent=11 // pred_check
        %p171 = pneg %p121
      $region26: #{radioses_forward.4} parent=11 // pred_check_branch
        %173 = sbr.rel (%p171) target = $region28
      $region27: #{radioses_forward.4} parent=11 // pred_region
        _
      $region28: #{radioses_forward.4} parent=11 // pred_fallthru
        _
    $region12: #{radioses_forward.4} parent=5 // pred_fallthru
      _
    %p174 = scmp.lt.s32.totalorder %s11, 2
    // Predicated region
    $region29: #{radioses_forward.4} parent=5 // pred_check
      %p175 = pneg %p174
    $region30: #{radioses_forward.4} parent=5 // pred_check_branch
      %177 = sbr.rel (%p175) target = $region32
    $region31: #{radioses_forward.4} parent=5 // pred_region
      // Predicated region
      $region33: #{radioses_forward.4} parent=31 // pred_check
        %p178 = pneg %p31
      $region34: #{radioses_forward.4} parent=31 // pred_check_branch
        %180 = sbr.rel (%p178) target = $region36
      $region35: #{radioses_forward.4} parent=31 // pred_region
        %s181 = smul.u32 8, %s11
        %p182 = scmp.lt.s32.totalorder %s181, 15
        %s183 = scalar_select %p182, %s181, 15
        %s184 = smul.addr %s183, 8
        %s185 = scalar_lea.vmem %s0, %s184
        %s186 = smul.u32 8, %s11
      $region36: #{radioses_forward.4} parent=31 // pred_fallthru
        _
    $region32: #{radioses_forward.4} parent=5 // pred_fallthru
      _
    %p187 = scmp.le.s32.totalorder 1, %s11
    %p188 = scmp.lt.s32.totalorder %s11, 3
    %p189 = pnand %p187, %p188
    %p190 = pneg %p189
    // Predicated region
    $region37: #{radioses_forward.4} parent=5 // pred_check
      _
    $region38: #{radioses_forward.4} parent=5 // pred_check_branch
      %192 = sbr.rel (%p189) target = $region40
    $region39: #{radioses_forward.4} parent=5 // pred_region
      %s193 = ssub.s32 %s11, 1
      %s194 = smul.u32 8, %s16
      %p195 = scmp.lt.s32.totalorder %s194, 15
      %s196 = scalar_select %p195, %s194, 15
      %s197 = smul.addr %s196, 8
      %s198 = scalar_lea.vmem %s0, %s197
      %p199 = pneg %p37
      %p200 = pneg %p34
      %p201 = pneg %p58
      %p202 = pneg %p55
      %p203 = pneg %p79
      %p204 = pneg %p76
      %p205 = pneg %p100
      %p206 = pneg %p97
      %p207 = pneg %p121
      %p208 = pneg %p118
      %p209 = pneg %p147
      %p210 = pneg %p144
      %s211 = smul.u32 8, %s16
      %p212 = scmp.lt.s32.totalorder %s211, 15
      %s213 = scalar_select %p212, %s211, 15
      %s214 = smul.addr %s213, 8
      %s215 = scalar_lea.vmem %s5, %s214
      %s216 = smul.u32 8, %s16
      %p217 = scmp.lt.s32.totalorder %s216, 15
      %s218 = scalar_select %p217, %s216, 15
      %s219 = smul.addr %s218, 8
      %s220 = scalar_lea.vmem %s0, %s219
      %s221 = smul.u32 8, %s16
      %s222 = smul.u32 8, %s16
      %p223 = scmp.lt.s32.totalorder %s222, 15
      %s224 = scalar_select %p223, %s222, 15
      %s225 = smul.addr %s224, 8
      %s226 = scalar_lea.vmem %s5, %s225
      %s227 = smul.u32 8, %s16
      %v228 = vld [vmem:[%s220] sm:$0xff]
      %v229 = vld [vmem:[%s220 + $0x8] sm:$0xff]
      %v230 = vld [vmem:[%s220 + $0x10] sm:$0xff]
      %v231 = vld [vmem:[%s220 + $0x18] sm:$0xff]
      %v232 = vld [vmem:[%s220 + $0x20] sm:$0xff]
      %v233 = vld [vmem:[%s220 + $0x28] sm:$0xff]
      %v234 = vld [vmem:[%s220 + $0x30] sm:$0xff]
      %v235 = vld [vmem:[%s220 + $0x38] sm:$0xff]
      %v236 = vld [vmem:[%s1] sm:$0xff]
      %v237 = vld [vmem:[%s1 + $0x8] sm:$0xff]
      %vm238 = vcmask 130048
      %v240 = vsel %vm238, %v228, 0
      %v243 = vsel %vm238, %v229, 0
      %v246 = vsel %vm238, %v230, 0
      %v249 = vsel %vm238, %v231, 0
      %v252 = vsel %vm238, %v232, 0
      %v255 = vsel %vm238, %v233, 0
      %v258 = vsel %vm238, %v234, 0
      %v261 = vsel %vm238, %v235, 0
      %263 = vmatprep.subr.mxu0 0.0
      %264 = vmatpush1.msra.mxu0 %v236
      %265 = vmatprep.subr.mxu0 0.0
      %266 = vmatpush1.msra.mxu0 %v237
      %267 = vmatprep.subr.mxu0 0.0
      %268 = vmatpush1.msra.mxu0 0.0
      %269 = vmatprep.subr.mxu0 0.0
      %270 = vmatpush1.msra.mxu0 0.0
      %271 = vmatprep.subr.mxu0 0.0
      %272 = vmatpush1.msra.mxu0 0.0
      %273 = vmatprep.subr.mxu0 0.0
      %274 = vmatpush1.msra.mxu0 0.0
      %275 = vmatprep.subr.mxu0 0.0
      %276 = vmatpush1.msra.mxu0 0.0
      %277 = vmatprep.subr.mxu0 0.0
      %278 = vmatpush1.msra.mxu0 0.0
      %279 = vmatprep.subr.mxu0 0.0
      %280 = vmatpush1.msra.mxu0 0.0
      %281 = vmatprep.subr.mxu0 0.0
      %282 = vmatpush1.msra.mxu0 0.0
      %283 = vmatprep.subr.mxu0 0.0
      %284 = vmatpush1.msra.mxu0 0.0
      %285 = vmatprep.subr.mxu0 0.0
      %286 = vmatpush1.msra.mxu0 0.0
      %287 = vmatprep.subr.mxu0 0.0
      %288 = vmatpush1.msra.mxu0 0.0
      %289 = vmatprep.subr.mxu0 0.0
      %290 = vmatpush1.msra.mxu0 0.0
      %291 = vmatprep.subr.mxu0 0.0
      %292 = vmatpush1.msra.mxu0 0.0
      %293 = vmatprep.subr.mxu0 0.0
      %294 = vmatpush1.msra.mxu0 0.0
      %295 = vmatprep.subr.mxu0 0.0
      %296 = vmatpush1.msra.mxu0 0.0
      %297 = vmatprep.subr.mxu0 0.0
      %298 = vmatpush1.msra.mxu0 0.0
      %299 = vmatprep.subr.mxu0 0.0
      %300 = vmatpush1.msra.mxu0 0.0
      %301 = vmatprep.subr.mxu0 0.0
      %302 = vmatpush1.msra.mxu0 0.0
      %303 = vmatprep.subr.mxu0 0.0
      %304 = vmatpush1.msra.mxu0 0.0
      %305 = vmatprep.subr.mxu0 0.0
      %306 = vmatpush1.msra.mxu0 0.0
      %307 = vmatprep.subr.mxu0 0.0
      %308 = vmatpush1.msra.mxu0 0.0
      %309 = vmatprep.subr.mxu0 0.0
      %310 = vmatpush1.msra.mxu0 0.0
      %311 = vmatprep.subr.mxu0 0.0
      %312 = vmatpush1.msra.mxu0 0.0
      %313 = vmatprep.subr.mxu0 0.0
      %314 = vmatpush1.msra.mxu0 0.0
      %315 = vmatprep.subr.mxu0 0.0
      %316 = vmatpush1.msra.mxu0 0.0
      %317 = vmatprep.subr.mxu0 0.0
      %318 = vmatpush1.msra.mxu0 0.0
      %319 = vmatprep.subr.mxu0 0.0
      %320 = vmatpush1.msra.mxu0 0.0
      %321 = vmatprep.subr.mxu0 0.0
      %322 = vmatpush1.msra.mxu0 0.0
      %323 = vmatprep.subr.mxu0 0.0
      %324 = vmatpush1.msra.mxu0 0.0
      %325 = vmatprep.subr.mxu0 0.0
      %326 = vmatpush1.msra.mxu0 0.0
      %327 = vmatprep.mubr.f32.mxu0 0.0
      %328 = vmatmul.mubr.f32.gmra.mrb[0].mxu0 %v240
      %v329 = vpop.f32.mrb[0].mxu0
      %v330 = vadd.f32 0.0, %v329
      %v331 = vpop.f32.mrb[0].mxu0
      %332 = vmatprep.mubr.f32.mxu0 0.0
      %333 = vmatmul.mubr.f32.gmra.mrb[0].mxu0 %v243
      %v334 = vpop.f32.mrb[0].mxu0
      %v335 = vadd.f32 0.0, %v334
      %v336 = vpop.f32.mrb[0].mxu0
      %337 = vmatprep.mubr.f32.mxu0 0.0
      %338 = vmatmul.mubr.f32.gmra.mrb[0].mxu0 %v246
      %v339 = vpop.f32.mrb[0].mxu0
      %v340 = vadd.f32 0.0, %v339
      %v341 = vpop.f32.mrb[0].mxu0
      %342 = vmatprep.mubr.f32.mxu0 0.0
      %343 = vmatmul.mubr.f32.gmra.mrb[0].mxu0 %v249
      %v344 = vpop.f32.mrb[0].mxu0
      %v345 = vadd.f32 0.0, %v344
      %v346 = vpop.f32.mrb[0].mxu0
      %347 = vmatprep.mubr.f32.mxu0 0.0
      %348 = vmatmul.mubr.f32.gmra.mrb[0].mxu0 %v252
      %v349 = vpop.f32.mrb[0].mxu0
      %v350 = vadd.f32 0.0, %v349
      %v351 = vpop.f32.mrb[0].mxu0
      %352 = vmatprep.mubr.f32.mxu0 0.0
      %353 = vmatmul.mubr.f32.gmra.mrb[0].mxu0 %v255
      %v354 = vpop.f32.mrb[0].mxu0
      %v355 = vadd.f32 0.0, %v354
      %v356 = vpop.f32.mrb[0].mxu0
      %357 = vmatprep.mubr.f32.mxu0 0.0
      %358 = vmatmul.mubr.f32.gmra.mrb[0].mxu0 %v258
      %v359 = vpop.f32.mrb[0].mxu0
      %v360 = vadd.f32 0.0, %v359
      %v361 = vpop.f32.mrb[0].mxu0
      %362 = vmatprep.mubr.f32.mxu0 0.0
      %363 = vmatmul.mubr.f32.gmra.mrb[0].mxu0 %v261
      %v364 = vpop.f32.mrb[0].mxu0
      %v365 = vadd.f32 0.0, %v364
      %v366 = vpop.f32.mrb[0].mxu0
      %367 = vdwg.mxu0
      %v368 = vmax.f32 %v330, 0.0
      %v369 = vmax.f32 %v335, 0.0
      %v370 = vmax.f32 %v340, 0.0
      %v371 = vmax.f32 %v345, 0.0
      %v372 = vmax.f32 %v350, 0.0
      %v373 = vmax.f32 %v355, 0.0
      %v374 = vmax.f32 %v360, 0.0
      %v375 = vmax.f32 %v365, 0.0
      %v376 = vld [vmem:[%s2] sm:$0xff]
      %v377 = vld [vmem:[%s2 + $0x8] sm:$0xff]
      %v378 = vld [vmem:[%s2 + $0x10] sm:$0xff]
      %v379 = vld [vmem:[%s2 + $0x18] sm:$0xff]
      %v380 = vld [vmem:[%s2 + $0x20] sm:$0xff]
      %v381 = vld [vmem:[%s2 + $0x28] sm:$0xff]
      %v382 = vld [vmem:[%s2 + $0x30] sm:$0xff]
      %v383 = vld [vmem:[%s2 + $0x38] sm:$0xff]
      %vm384 = vcmask 523264
      %v386 = vsel %vm384, %v368, 0
      %v389 = vsel %vm384, %v369, 0
      %v392 = vsel %vm384, %v370, 0
      %v395 = vsel %vm384, %v371, 0
      %v398 = vsel %vm384, %v372, 0
      %v401 = vsel %vm384, %v373, 0
      %v404 = vsel %vm384, %v374, 0
      %v407 = vsel %vm384, %v375, 0
      %409 = vmatprep.subr.mxu0 0.0
      %410 = vmatpush1.msra.mxu0 %v376
      %411 = vmatprep.subr.mxu0 0.0
      %412 = vmatpush1.msra.mxu0 %v377
      %413 = vmatprep.subr.mxu0 0.0
      %414 = vmatpush1.msra.mxu0 %v378
      %415 = vmatprep.subr.mxu0 0.0
      %416 = vmatpush1.msra.mxu0 %v379
      %417 = vmatprep.subr.mxu0 0.0
      %418 = vmatpush1.msra.mxu0 %v380
      %419 = vmatprep.subr.mxu0 0.0
      %420 = vmatpush1.msra.mxu0 %v381
      %421 = vmatprep.subr.mxu0 0.0
      %422 = vmatpush1.msra.mxu0 %v382
      %423 = vmatprep.subr.mxu0 0.0
      %424 = vmatpush1.msra.mxu0 %v383
      %425 = vmatprep.subr.mxu0 0.0
      %426 = vmatpush1.msra.mxu0 0.0
      %427 = vmatprep.subr.mxu0 0.0
      %428 = vmatpush1.msra.mxu0 0.0
      %429 = vmatprep.subr.mxu0 0.0
      %430 = vmatpush1.msra.mxu0 0.0
      %431 = vmatprep.subr.mxu0 0.0
      %432 = vmatpush1.msra.mxu0 0.0
      %433 = vmatprep.subr.mxu0 0.0
      %434 = vmatpush1.msra.mxu0 0.0
      %435 = vmatprep.subr.mxu0 0.0
      %436 = vmatpush1.msra.mxu0 0.0
      %437 = vmatprep.subr.mxu0 0.0
      %438 = vmatpush1.msra.mxu0 0.0
      %439 = vmatprep.subr.mxu0 0.0
      %440 = vmatpush1.msra.mxu0 0.0
      %441 = vmatprep.subr.mxu0 0.0
      %442 = vmatpush1.msra.mxu0 0.0
      %443 = vmatprep.subr.mxu0 0.0
      %444 = vmatpush1.msra.mxu0 0.0
      %445 = vmatprep.subr.mxu0 0.0
      %446 = vmatpush1.msra.mxu0 0.0
      %447 = vmatprep.subr.mxu0 0.0
      %448 = vmatpush1.msra.mxu0 0.0
      %449 = vmatprep.subr.mxu0 0.0
      %450 = vmatpush1.msra.mxu0 0.0
      %451 = vmatprep.subr.mxu0 0.0
      %452 = vmatpush1.msra.mxu0 0.0
      %453 = vmatprep.subr.mxu0 0.0
      %454 = vmatpush1.msra.mxu0 0.0
      %455 = vmatprep.subr.mxu0 0.0
      %456 = vmatpush1.msra.mxu0 0.0
      %457 = vmatprep.subr.mxu0 0.0
      %458 = vmatpush1.msra.mxu0 0.0
      %459 = vmatprep.subr.mxu0 0.0
      %460 = vmatpush1.msra.mxu0 0.0
      %461 = vmatprep.subr.mxu0 0.0
      %462 = vmatpush1.msra.mxu0 0.0
      %463 = vmatprep.subr.mxu0 0.0
      %464 = vmatpush1.msra.mxu0 0.0
      %465 = vmatprep.subr.mxu0 0.0
      %466 = vmatpush1.msra.mxu0 0.0
      %467 = vmatprep.subr.mxu0 0.0
      %468 = vmatpush1.msra.mxu0 0.0
      %469 = vmatprep.subr.mxu0 0.0
      %470 = vmatpush1.msra.mxu0 0.0
      %471 = vmatprep.subr.mxu0 0.0
      %472 = vmatpush1.msra.mxu0 0.0
      %473 = vmatprep.mubr.f32.mxu0 0.0
      %474 = vmatmul.mubr.f32.gmra.mrb[0].mxu0 %v386
      %v475 = vpop.f32.mrb[0].mxu0
      %v476 = vadd.f32 0.0, %v475
      %v477 = vpop.f32.mrb[0].mxu0
      %478 = vmatprep.mubr.f32.mxu0 0.0
      %479 = vmatmul.mubr.f32.gmra.mrb[0].mxu0 %v389
      %v480 = vpop.f32.mrb[0].mxu0
      %v481 = vadd.f32 0.0, %v480
      %v482 = vpop.f32.mrb[0].mxu0
      %483 = vmatprep.mubr.f32.mxu0 0.0
      %484 = vmatmul.mubr.f32.gmra.mrb[0].mxu0 %v392
      %v485 = vpop.f32.mrb[0].mxu0
      %v486 = vadd.f32 0.0, %v485
      %v487 = vpop.f32.mrb[0].mxu0
      %488 = vmatprep.mubr.f32.mxu0 0.0
      %489 = vmatmul.mubr.f32.gmra.mrb[0].mxu0 %v395
      %v490 = vpop.f32.mrb[0].mxu0
      %v491 = vadd.f32 0.0, %v490
      %v492 = vpop.f32.mrb[0].mxu0
      %493 = vmatprep.mubr.f32.mxu0 0.0
      %494 = vmatmul.mubr.f32.gmra.mrb[0].mxu0 %v398
      %v495 = vpop.f32.mrb[0].mxu0
      %v496 = vadd.f32 0.0, %v495
      %v497 = vpop.f32.mrb[0].mxu0
      %498 = vmatprep.mubr.f32.mxu0 0.0
      %499 = vmatmul.mubr.f32.gmra.mrb[0].mxu0 %v401
      %v500 = vpop.f32.mrb[0].mxu0
      %v501 = vadd.f32 0.0, %v500
      %v502 = vpop.f32.mrb[0].mxu0
      %503 = vmatprep.mubr.f32.mxu0 0.0
      %504 = vmatmul.mubr.f32.gmra.mrb[0].mxu0 %v404
      %v505 = vpop.f32.mrb[0].mxu0
      %v506 = vadd.f32 0.0, %v505
      %v507 = vpop.f32.mrb[0].mxu0
      %508 = vmatprep.mubr.f32.mxu0 0.0
      %509 = vmatmul.mubr.f32.gmra.mrb[0].mxu0 %v407
      %v510 = vpop.f32.mrb[0].mxu0
      %v511 = vadd.f32 0.0, %v510
      %v512 = vpop.f32.mrb[0].mxu0
      %513 = vdwg.mxu0
      %v514 = vmax.f32 %v476, 0.0
      %v515 = vmax.f32 %v481, 0.0
      %v516 = vmax.f32 %v486, 0.0
      %v517 = vmax.f32 %v491, 0.0
      %v518 = vmax.f32 %v496, 0.0
      %v519 = vmax.f32 %v501, 0.0
      %v520 = vmax.f32 %v506, 0.0
      %v521 = vmax.f32 %v511, 0.0
      %v522 = vld [vmem:[%s3] sm:$0xff]
      %v523 = vld [vmem:[%s3 + $0x8] sm:$0xff]
      %v525 = vsel %vm238, %v514, 0
      %v528 = vsel %vm238, %v515, 0
      %v531 = vsel %vm238, %v516, 0
      %v534 = vsel %vm238, %v517, 0
      %v537 = vsel %vm238, %v518, 0
      %v540 = vsel %vm238, %v519, 0
      %v543 = vsel %vm238, %v520, 0
      %v546 = vsel %vm238, %v521, 0
      %548 = vmatprep.subr.mxu0 0.0
      %549 = vmatpush1.msra.mxu0 %v522
      %550 = vmatprep.subr.mxu0 0.0
      %551 = vmatpush1.msra.mxu0 %v523
      %552 = vmatprep.subr.mxu0 0.0
      %553 = vmatpush1.msra.mxu0 0.0
      %554 = vmatprep.subr.mxu0 0.0
      %555 = vmatpush1.msra.mxu0 0.0
      %556 = vmatprep.subr.mxu0 0.0
      %557 = vmatpush1.msra.mxu0 0.0
      %558 = vmatprep.subr.mxu0 0.0
      %559 = vmatpush1.msra.mxu0 0.0
      %560 = vmatprep.subr.mxu0 0.0
      %561 = vmatpush1.msra.mxu0 0.0
      %562 = vmatprep.subr.mxu0 0.0
      %563 = vmatpush1.msra.mxu0 0.0
      %564 = vmatprep.subr.mxu0 0.0
      %565 = vmatpush1.msra.mxu0 0.0
      %566 = vmatprep.subr.mxu0 0.0
      %567 = vmatpush1.msra.mxu0 0.0
      %568 = vmatprep.subr.mxu0 0.0
      %569 = vmatpush1.msra.mxu0 0.0
      %570 = vmatprep.subr.mxu0 0.0
      %571 = vmatpush1.msra.mxu0 0.0
      %572 = vmatprep.subr.mxu0 0.0
      %573 = vmatpush1.msra.mxu0 0.0
      %574 = vmatprep.subr.mxu0 0.0
      %575 = vmatpush1.msra.mxu0 0.0
      %576 = vmatprep.subr.mxu0 0.0
      %577 = vmatpush1.msra.mxu0 0.0
      %578 = vmatprep.subr.mxu0 0.0
      %579 = vmatpush1.msra.mxu0 0.0
      %580 = vmatprep.subr.mxu0 0.0
      %581 = vmatpush1.msra.mxu0 0.0
      %582 = vmatprep.subr.mxu0 0.0
      %583 = vmatpush1.msra.mxu0 0.0
      %584 = vmatprep.subr.mxu0 0.0
      %585 = vmatpush1.msra.mxu0 0.0
      %586 = vmatprep.subr.mxu0 0.0
      %587 = vmatpush1.msra.mxu0 0.0
      %588 = vmatprep.subr.mxu0 0.0
      %589 = vmatpush1.msra.mxu0 0.0
      %590 = vmatprep.subr.mxu0 0.0
      %591 = vmatpush1.msra.mxu0 0.0
      %592 = vmatprep.subr.mxu0 0.0
      %593 = vmatpush1.msra.mxu0 0.0
      %594 = vmatprep.subr.mxu0 0.0
      %595 = vmatpush1.msra.mxu0 0.0
      %596 = vmatprep.subr.mxu0 0.0
      %597 = vmatpush1.msra.mxu0 0.0
      %598 = vmatprep.subr.mxu0 0.0
      %599 = vmatpush1.msra.mxu0 0.0
      %600 = vmatprep.subr.mxu0 0.0
      %601 = vmatpush1.msra.mxu0 0.0
      %602 = vmatprep.subr.mxu0 0.0
      %603 = vmatpush1.msra.mxu0 0.0
      %604 = vmatprep.subr.mxu0 0.0
      %605 = vmatpush1.msra.mxu0 0.0
      %606 = vmatprep.subr.mxu0 0.0
      %607 = vmatpush1.msra.mxu0 0.0
      %608 = vmatprep.subr.mxu0 0.0
      %609 = vmatpush1.msra.mxu0 0.0
      %610 = vmatprep.subr.mxu0 0.0
      %611 = vmatpush1.msra.mxu0 0.0
      %612 = vmatprep.mubr.f32.mxu0 0.0
      %613 = vmatmul.mubr.f32.gmra.mrb[0].mxu0 %v525
      %v614 = vpop.f32.mrb[0].mxu0
      %v615 = vadd.f32 0.0, %v614
      %v616 = vpop.f32.mrb[0].mxu0
      %617 = vmatprep.mubr.f32.mxu0 0.0
      %618 = vmatmul.mubr.f32.gmra.mrb[0].mxu0 %v528
      %v619 = vpop.f32.mrb[0].mxu0
      %v620 = vadd.f32 0.0, %v619
      %v621 = vpop.f32.mrb[0].mxu0
      %622 = vmatprep.mubr.f32.mxu0 0.0
      %623 = vmatmul.mubr.f32.gmra.mrb[0].mxu0 %v531
      %v624 = vpop.f32.mrb[0].mxu0
      %v625 = vadd.f32 0.0, %v624
      %v626 = vpop.f32.mrb[0].mxu0
      %627 = vmatprep.mubr.f32.mxu0 0.0
      %628 = vmatmul.mubr.f32.gmra.mrb[0].mxu0 %v534
      %v629 = vpop.f32.mrb[0].mxu0
      %v630 = vadd.f32 0.0, %v629
      %v631 = vpop.f32.mrb[0].mxu0
      %632 = vmatprep.mubr.f32.mxu0 0.0
      %633 = vmatmul.mubr.f32.gmra.mrb[0].mxu0 %v537
      %v634 = vpop.f32.mrb[0].mxu0
      %v635 = vadd.f32 0.0, %v634
      %v636 = vpop.f32.mrb[0].mxu0
      %637 = vmatprep.mubr.f32.mxu0 0.0
      %638 = vmatmul.mubr.f32.gmra.mrb[0].mxu0 %v540
      %v639 = vpop.f32.mrb[0].mxu0
      %v640 = vadd.f32 0.0, %v639
      %v641 = vpop.f32.mrb[0].mxu0
      %642 = vmatprep.mubr.f32.mxu0 0.0
      %643 = vmatmul.mubr.f32.gmra.mrb[0].mxu0 %v543
      %v644 = vpop.f32.mrb[0].mxu0
      %v645 = vadd.f32 0.0, %v644
      %v646 = vpop.f32.mrb[0].mxu0
      %647 = vmatprep.mubr.f32.mxu0 0.0
      %648 = vmatmul.mubr.f32.gmra.mrb[0].mxu0 %v546
      %v649 = vpop.f32.mrb[0].mxu0
      %v650 = vadd.f32 0.0, %v649
      %v651 = vpop.f32.mrb[0].mxu0
      %652 = vdwg.mxu0
      %v653 = vmax.f32 %v615, 0.0
      %v654 = vmax.f32 %v620, 0.0
      %v655 = vmax.f32 %v625, 0.0
      %v656 = vmax.f32 %v630, 0.0
      %v657 = vmax.f32 %v635, 0.0
      %v658 = vmax.f32 %v640, 0.0
      %v659 = vmax.f32 %v645, 0.0
      %v660 = vmax.f32 %v650, 0.0
      %v661 = vld [vmem:[%s4] sm:$0xff]
      %v662 = vld [vmem:[%s4 + $0x8] sm:$0xff]
      %v664 = vsel %vm238, %v653, 0
      %v667 = vsel %vm238, %v654, 0
      %v670 = vsel %vm238, %v655, 0
      %v673 = vsel %vm238, %v656, 0
      %v676 = vsel %vm238, %v657, 0
      %v679 = vsel %vm238, %v658, 0
      %v682 = vsel %vm238, %v659, 0
      %v685 = vsel %vm238, %v660, 0
      %687 = vmatprep.subr.mxu0 0.0
      %688 = vmatpush1.msra.mxu0 %v661
      %689 = vmatprep.subr.mxu0 0.0
      %690 = vmatpush1.msra.mxu0 %v662
      %691 = vmatprep.subr.mxu0 0.0
      %692 = vmatpush1.msra.mxu0 0.0
      %693 = vmatprep.subr.mxu0 0.0
      %694 = vmatpush1.msra.mxu0 0.0
      %695 = vmatprep.subr.mxu0 0.0
      %696 = vmatpush1.msra.mxu0 0.0
      %697 = vmatprep.subr.mxu0 0.0
      %698 = vmatpush1.msra.mxu0 0.0
      %699 = vmatprep.subr.mxu0 0.0
      %700 = vmatpush1.msra.mxu0 0.0
      %701 = vmatprep.subr.mxu0 0.0
      %702 = vmatpush1.msra.mxu0 0.0
      %703 = vmatprep.subr.mxu0 0.0
      %704 = vmatpush1.msra.mxu0 0.0
      %705 = vmatprep.subr.mxu0 0.0
      %706 = vmatpush1.msra.mxu0 0.0
      %707 = vmatprep.subr.mxu0 0.0
      %708 = vmatpush1.msra.mxu0 0.0
      %709 = vmatprep.subr.mxu0 0.0
      %710 = vmatpush1.msra.mxu0 0.0
      %711 = vmatprep.subr.mxu0 0.0
      %712 = vmatpush1.msra.mxu0 0.0
      %713 = vmatprep.subr.mxu0 0.0
      %714 = vmatpush1.msra.mxu0 0.0
      %715 = vmatprep.subr.mxu0 0.0
      %716 = vmatpush1.msra.mxu0 0.0
      %717 = vmatprep.subr.mxu0 0.0
      %718 = vmatpush1.msra.mxu0 0.0
      %719 = vmatprep.subr.mxu0 0.0
      %720 = vmatpush1.msra.mxu0 0.0
      %721 = vmatprep.subr.mxu0 0.0
      %722 = vmatpush1.msra.mxu0 0.0
      %723 = vmatprep.subr.mxu0 0.0
      %724 = vmatpush1.msra.mxu0 0.0
      %725 = vmatprep.subr.mxu0 0.0
      %726 = vmatpush1.msra.mxu0 0.0
      %727 = vmatprep.subr.mxu0 0.0
      %728 = vmatpush1.msra.mxu0 0.0
      %729 = vmatprep.subr.mxu0 0.0
      %730 = vmatpush1.msra.mxu0 0.0
      %731 = vmatprep.subr.mxu0 0.0
      %732 = vmatpush1.msra.mxu0 0.0
      %733 = vmatprep.subr.mxu0 0.0
      %734 = vmatpush1.msra.mxu0 0.0
      %735 = vmatprep.subr.mxu0 0.0
      %736 = vmatpush1.msra.mxu0 0.0
      %737 = vmatprep.subr.mxu0 0.0
      %738 = vmatpush1.msra.mxu0 0.0
      %739 = vmatprep.subr.mxu0 0.0
      %740 = vmatpush1.msra.mxu0 0.0
      %741 = vmatprep.subr.mxu0 0.0
      %742 = vmatpush1.msra.mxu0 0.0
      %743 = vmatprep.subr.mxu0 0.0
      %744 = vmatpush1.msra.mxu0 0.0
      %745 = vmatprep.subr.mxu0 0.0
      %746 = vmatpush1.msra.mxu0 0.0
      %747 = vmatprep.subr.mxu0 0.0
      %748 = vmatpush1.msra.mxu0 0.0
      %749 = vmatprep.subr.mxu0 0.0
      %750 = vmatpush1.msra.mxu0 0.0
      %751 = vmatprep.mubr.f32.mxu0 0.0
      %752 = vmatmul.mubr.f32.gmra.mrb[0].mxu0 %v664
      %v753 = vpop.f32.mrb[0].mxu0
      %v754 = vadd.f32 0.0, %v753
      %v755 = vpop.f32.mrb[0].mxu0
      %756 = vmatprep.mubr.f32.mxu0 0.0
      %757 = vmatmul.mubr.f32.gmra.mrb[0].mxu0 %v667
      %v758 = vpop.f32.mrb[0].mxu0
      %v759 = vadd.f32 0.0, %v758
      %v760 = vpop.f32.mrb[0].mxu0
      %761 = vmatprep.mubr.f32.mxu0 0.0
      %762 = vmatmul.mubr.f32.gmra.mrb[0].mxu0 %v670
      %v763 = vpop.f32.mrb[0].mxu0
      %v764 = vadd.f32 0.0, %v763
      %v765 = vpop.f32.mrb[0].mxu0
      %766 = vmatprep.mubr.f32.mxu0 0.0
      %767 = vmatmul.mubr.f32.gmra.mrb[0].mxu0 %v673
      %v768 = vpop.f32.mrb[0].mxu0
      %v769 = vadd.f32 0.0, %v768
      %v770 = vpop.f32.mrb[0].mxu0
      %771 = vmatprep.mubr.f32.mxu0 0.0
      %772 = vmatmul.mubr.f32.gmra.mrb[0].mxu0 %v676
      %v773 = vpop.f32.mrb[0].mxu0
      %v774 = vadd.f32 0.0, %v773
      %v775 = vpop.f32.mrb[0].mxu0
      %776 = vmatprep.mubr.f32.mxu0 0.0
      %777 = vmatmul.mubr.f32.gmra.mrb[0].mxu0 %v679
      %v778 = vpop.f32.mrb[0].mxu0
      %v779 = vadd.f32 0.0, %v778
      %v780 = vpop.f32.mrb[0].mxu0
      %781 = vmatprep.mubr.f32.mxu0 0.0
      %782 = vmatmul.mubr.f32.gmra.mrb[0].mxu0 %v682
      %v783 = vpop.f32.mrb[0].mxu0
      %v784 = vadd.f32 0.0, %v783
      %v785 = vpop.f32.mrb[0].mxu0
      %786 = vmatprep.mubr.f32.mxu0 0.0
      %787 = vmatmul.mubr.f32.gmra.mrb[0].mxu0 %v685
      %v788 = vpop.f32.mrb[0].mxu0
      %v789 = vadd.f32 0.0, %v788
      %v790 = vpop.f32.mrb[0].mxu0
      %791 = vdwg.mxu0
      %792 = vst.msk [vmem:[%s226] sm:$0xff] %vm238, %v754
      %793 = vst.msk [vmem:[%s226 + $0x8] sm:$0xff] %vm238, %v759
      %794 = vst.msk [vmem:[%s226 + $0x10] sm:$0xff] %vm238, %v764
      %795 = vst.msk [vmem:[%s226 + $0x18] sm:$0xff] %vm238, %v769
      %796 = vst.msk [vmem:[%s226 + $0x20] sm:$0xff] %vm238, %v774
      %797 = vst.msk [vmem:[%s226 + $0x28] sm:$0xff] %vm238, %v779
      %798 = vst.msk [vmem:[%s226 + $0x30] sm:$0xff] %vm238, %v784
      %799 = vst.msk [vmem:[%s226 + $0x38] sm:$0xff] %vm238, %v789
      %s800 = smul.u32 8, %s16
      %p801 = scmp.lt.s32.totalorder %s800, 15
      %s802 = scalar_select %p801, %s800, 15
      %s803 = smul.addr %s802, 8
      %s804 = scalar_lea.vmem %s5, %s803
      // Predicated region
      $region41: #{radioses_forward.4} parent=39 // pred_check
        %p805 = pneg %p144
      $region42: #{radioses_forward.4} parent=39 // pred_check_branch
        %807 = sbr.rel (%p805) target = $region44
      $region43: #{radioses_forward.4} parent=39 // pred_region
        %s808 = smul.u32 8, %s16
      $region44: #{radioses_forward.4} parent=39 // pred_fallthru
        _
    $region40: #{radioses_forward.4} parent=5 // pred_fallthru
      _
    %p809 = scmp.le.s32.totalorder 2, %s11
    // Predicated region
    $region45: #{radioses_forward.4} parent=5 // pred_check
      %p810 = pneg %p809
    $region46: #{radioses_forward.4} parent=5 // pred_check_branch
      %812 = sbr.rel (%p810) target = $region48
    $region47: #{radioses_forward.4} parent=5 // pred_region
      %s813 = ssub.s32 %s11, 2
      // Predicated region
      $region49: #{radioses_forward.4} parent=47 // pred_check
        %p814 = pneg %p150
      $region50: #{radioses_forward.4} parent=47 // pred_check_branch
        %816 = sbr.rel (%p814) target = $region52
      $region51: #{radioses_forward.4} parent=47 // pred_region
        %s817 = smul.u32 8, %s17
        %p818 = scmp.lt.s32.totalorder %s817, 15
        %s819 = scalar_select %p818, %s817, 15
        %s820 = smul.addr %s819, 8
        %s821 = scalar_lea.vmem %s5, %s820
      $region52: #{radioses_forward.4} parent=47 // pred_fallthru
        _
    $region48: #{radioses_forward.4} parent=5 // pred_fallthru
      _
  $region6: #{radioses_forward.4} parent=0 // loop_footer
    %s15 = sadd.s32 1, %s11
  $region7: #{radioses_forward.4} parent=0 // loop_footer_branch
    %10 = sbr.rel target = $region3
  $region8: #{radioses_forward.4} parent=0 // loop_exit
    _

// kernel: radioses_forward.6
$region0: #{radioses_forward.6}
  #allocation0 [shape = 'u32[]', space=smem, size = 0x4, offset = 0x4, fixed_abs, tag = 'smem constant byte address 0x4 - core index']
  #allocation1 [shape = 'u32[144,128]{1,0:T(1,128)}', space=vmem, size = 0x12000, scoped, tag = 'internal scratch']
  %s0 = inlined_call_operand.vmem [shape: f32[128,64], index: 0, kind: input, shape index: {}]
  %s1 = inlined_call_operand.vmem [shape: f32[1,64], index: 1, kind: input, shape index: {}]
  %s2 = inlined_call_operand.vmem [shape: f32[1,64], index: 2, kind: input, shape index: {}]
  %s3 = inlined_call_operand.vmem [shape: f32[64,64], index: 3, kind: input, shape index: {}]
  %s4 = inlined_call_operand.vmem [shape: f32[64,64], index: 4, kind: input, shape index: {}]
  %s5 = inlined_call_operand.vmem [shape: f32[128,64], index: 5, kind: output, shape index: {}]
  %s6 = sld [smem:[#allocation0]]
  $region53: #{radioses_forward.6} parent=0
    _
  %s8 = ssub.s32 1, %s6
  %s9 = scalar_select 0, %s8, %s6
  loop: start=0, step=1, limit=4
  $region2: #{radioses_forward.6} parent=0 // loop_pre_header
    _
  $region3: #{radioses_forward.6} parent=0 // loop_header
    %s11 = sphi 0, %s15
    %p12 = scmp.ge.s32.totalorder %s11, 4
    %s21 = sphi 0, %s23
    %s24 = sphi 0, %s21
    %s25 = sphi 0, %s24
    %s41 = sphi 0, %s25
    %s45 = sphi 0, %s45
    %s47 = sphi 0, %s45
    %s48 = sphi 0, %s47
    %s62 = sphi 0, %s48
    %s66 = sphi 0, %s66
    %s68 = sphi 0, %s66
    %s69 = sphi 0, %s68
    %s83 = sphi 0, %s69
    %s87 = sphi 0, %s87
    %s89 = sphi 0, %s87
    %s90 = sphi 0, %s89
    %s104 = sphi 0, %s90
    %s108 = sphi 0, %s108
    %s110 = sphi 0, %s108
    %s111 = sphi 0, %s110
    %s125 = sphi 0, %s111
    %s131 = sphi 0, %s133
    %s134 = sphi 0, %s131
    %s135 = sphi 0, %s134
    %s151 = sphi 0, %s135
  $region4: #{radioses_forward.6} parent=0 // loop_header_branch
    %14 = sbr.rel (%p12) target = $region8
  $region5: #{radioses_forward.6} parent=0 // loop_body
    %s16 = ssub.s32 %s11, 1
    %s17 = ssub.s32 %s11, 2
    %s18 = sadd.s32 %s11, 1
    %s19 = ssub.s32 %s11, %s18
    %p20 = scmp.eq.s32.totalorder %s19, 0
    %s22 = sadd.s32 %s21, 1
    %s23 = scalar_select %p20, %s21, %s22
    %p26 = pneg %p20
    %p27 = scmp.eq.s32.totalorder %s11, 1
    %p28 = por %p26, %p27
    %p29 = scmp.ne.s32.totalorder %s21, %s24
    %p30 = scmp.eq.s32.totalorder %s11, 0
    %p31 = por %p29, %p30
    %p32 = scmp.ne.s32.totalorder %s21, %s24
    %p33 = scmp.eq.s32.totalorder %s16, 1
    %p34 = por %p32, %p33
    %p35 = scmp.ne.s32.totalorder %s24, %s25
    %p36 = scmp.eq.s32.totalorder %s16, 0
    %p37 = por %p35, %p36
    %p38 = scmp.ne.s32.totalorder %s24, %s25
    %p39 = scmp.eq.s32.totalorder %s17, 1
    %p40 = por %p38, %p39
    %p42 = scmp.ne.s32.totalorder %s25, %s41
    %p43 = scmp.eq.s32.totalorder %s17, 0
    %p44 = por %p42, %p43
    %s46 = sadd.s32 %s45, 1
    %p49 = scmp.eq.s32.totalorder %s11, 1
    %p50 = scmp.ne.s32.totalorder %s45, %s47
    %p51 = scmp.eq.s32.totalorder %s11, 0
    %p52 = por %p50, %p51
    %p53 = scmp.ne.s32.totalorder %s45, %s47
    %p54 = scmp.eq.s32.totalorder %s16, 1
    %p55 = por %p53, %p54
    %p56 = scmp.ne.s32.totalorder %s47, %s48
    %p57 = scmp.eq.s32.totalorder %s16, 0
    %p58 = por %p56, %p57
    %p59 = scmp.ne.s32.totalorder %s47, %s48
    %p60 = scmp.eq.s32.totalorder %s17, 1
    %p61 = por %p59, %p60
    %p63 = scmp.ne.s32.totalorder %s48, %s62
    %p64 = scmp.eq.s32.totalorder %s17, 0
    %p65 = por %p63, %p64
    %s67 = sadd.s32 %s66, 1
    %p70 = scmp.eq.s32.totalorder %s11, 1
    %p71 = scmp.ne.s32.totalorder %s66, %s68
    %p72 = scmp.eq.s32.totalorder %s11, 0
    %p73 = por %p71, %p72
    %p74 = scmp.ne.s32.totalorder %s66, %s68
    %p75 = scmp.eq.s32.totalorder %s16, 1
    %p76 = por %p74, %p75
    %p77 = scmp.ne.s32.totalorder %s68, %s69
    %p78 = scmp.eq.s32.totalorder %s16, 0
    %p79 = por %p77, %p78
    %p80 = scmp.ne.s32.totalorder %s68, %s69
    %p81 = scmp.eq.s32.totalorder %s17, 1
    %p82 = por %p80, %p81
    %p84 = scmp.ne.s32.totalorder %s69, %s83
    %p85 = scmp.eq.s32.totalorder %s17, 0
    %p86 = por %p84, %p85
    %s88 = sadd.s32 %s87, 1
    %p91 = scmp.eq.s32.totalorder %s11, 1
    %p92 = scmp.ne.s32.totalorder %s87, %s89
    %p93 = scmp.eq.s32.totalorder %s11, 0
    %p94 = por %p92, %p93
    %p95 = scmp.ne.s32.totalorder %s87, %s89
    %p96 = scmp.eq.s32.totalorder %s16, 1
    %p97 = por %p95, %p96
    %p98 = scmp.ne.s32.totalorder %s89, %s90
    %p99 = scmp.eq.s32.totalorder %s16, 0
    %p100 = por %p98, %p99
    %p101 = scmp.ne.s32.totalorder %s89, %s90
    %p102 = scmp.eq.s32.totalorder %s17, 1
    %p103 = por %p101, %p102
    %p105 = scmp.ne.s32.totalorder %s90, %s104
    %p106 = scmp.eq.s32.totalorder %s17, 0
    %p107 = por %p105, %p106
    %s109 = sadd.s32 %s108, 1
    %p112 = scmp.eq.s32.totalorder %s11, 1
    %p113 = scmp.ne.s32.totalorder %s108, %s110
    %p114 = scmp.eq.s32.totalorder %s11, 0
    %p115 = por %p113, %p114
    %p116 = scmp.ne.s32.totalorder %s108, %s110
    %p117 = scmp.eq.s32.totalorder %s16, 1
    %p118 = por %p116, %p117
    %p119 = scmp.ne.s32.totalorder %s110, %s111
    %p120 = scmp.eq.s32.totalorder %s16, 0
    %p121 = por %p119, %p120
    %p122 = scmp.ne.s32.totalorder %s110, %s111
    %p123 = scmp.eq.s32.totalorder %s17, 1
    %p124 = por %p122, %p123
    %p126 = scmp.ne.s32.totalorder %s111, %s125
    %p127 = scmp.eq.s32.totalorder %s17, 0
    %p128 = por %p126, %p127
    %s129 = ssub.s32 %s11, %s18
    %p130 = scmp.eq.s32.totalorder %s129, 0
    %s132 = sadd.s32 %s131, 1
    %s133 = scalar_select %p130, %s131, %s132
    %p136 = pneg %p130
    %p137 = scmp.eq.s32.totalorder %s11, 1
    %p138 = por %p136, %p137
    %p139 = scmp.ne.s32.totalorder %s131, %s134
    %p140 = scmp.eq.s32.totalorder %s11, 0
    %p141 = por %p139, %p140
    %p142 = scmp.ne.s32.totalorder %s131, %s134
    %p143 = scmp.eq.s32.totalorder %s16, 1
    %p144 = por %p142, %p143
    %p145 = scmp.ne.s32.totalorder %s134, %s135
    %p146 = scmp.eq.s32.totalorder %s16, 0
    %p147 = por %p145, %p146
    %p148 = scmp.ne.s32.totalorder %s134, %s135
    %p149 = scmp.eq.s32.totalorder %s17, 1
    %p150 = por %p148, %p149
    %p152 = scmp.ne.s32.totalorder %s135, %s151
    %p153 = scmp.eq.s32.totalorder %s17, 0
    %p154 = por %p152, %p153
    %p155 = scmp.le.s32.totalorder 1, %s11
    %p156 = scmp.lt.s32.totalorder %s11, 3
    %p157 = pnand %p155, %p156
    %p158 = pneg %p157
    // Predicated region
    $region9: #{radioses_forward.6} parent=5 // pred_check
      _
    $region10: #{radioses_forward.6} parent=5 // pred_check_branch
      %160 = sbr.rel (%p157) target = $region12
    $region11: #{radioses_forward.6} parent=5 // pred_region
      %s161 = ssub.s32 %s11, 1
      // Predicated region
      $region13: #{radioses_forward.6} parent=11 // pred_check
        %p162 = pneg %p58
      $region14: #{radioses_forward.6} parent=11 // pred_check_branch
        %164 = sbr.rel (%p162) target = $region16
      $region15: #{radioses_forward.6} parent=11 // pred_region
        _
      $region16: #{radioses_forward.6} parent=11 // pred_fallthru
        _
      // Predicated region
      $region17: #{radioses_forward.6} parent=11 // pred_check
        %p165 = pneg %p79
      $region18: #{radioses_forward.6} parent=11 // pred_check_branch
        %167 = sbr.rel (%p165) target = $region20
      $region19: #{radioses_forward.6} parent=11 // pred_region
        _
      $region20: #{radioses_forward.6} parent=11 // pred_fallthru
        _
      // Predicated region
      $region21: #{radioses_forward.6} parent=11 // pred_check
        %p168 = pneg %p100
      $region22: #{radioses_forward.6} parent=11 // pred_check_branch
        %170 = sbr.rel (%p168) target = $region24
      $region23: #{radioses_forward.6} parent=11 // pred_region
        _
      $region24: #{radioses_forward.6} parent=11 // pred_fallthru
        _
      // Predicated region
      $region25: #{radioses_forward.6} parent=11 // pred_check
        %p171 = pneg %p121
      $region26: #{radioses_forward.6} parent=11 // pred_check_branch
        %173 = sbr.rel (%p171) target = $region28
      $region27: #{radioses_forward.6} parent=11 // pred_region
        _
      $region28: #{radioses_forward.6} parent=11 // pred_fallthru
        _
    $region12: #{radioses_forward.6} parent=5 // pred_fallthru
      _
    %p174 = scmp.lt.s32.totalorder %s11, 2
    // Predicated region
    $region29: #{radioses_forward.6} parent=5 // pred_check
      %p175 = pneg %p174
    $region30: #{radioses_forward.6} parent=5 // pred_check_branch
      %177 = sbr.rel (%p175) target = $region32
    $region31: #{radioses_forward.6} parent=5 // pred_region
      // Predicated region
      $region33: #{radioses_forward.6} parent=31 // pred_check
        %p178 = pneg %p31
      $region34: #{radioses_forward.6} parent=31 // pred_check_branch
        %180 = sbr.rel (%p178) target = $region36
      $region35: #{radioses_forward.6} parent=31 // pred_region
        %s181 = smul.u32 8, %s11
        %p182 = scmp.lt.s32.totalorder %s181, 15
        %s183 = scalar_select %p182, %s181, 15
        %s184 = smul.addr %s183, 8
        %s185 = scalar_lea.vmem %s0, %s184
        %s186 = smul.u32 8, %s11
      $region36: #{radioses_forward.6} parent=31 // pred_fallthru
        _
    $region32: #{radioses_forward.6} parent=5 // pred_fallthru
      _
    %p187 = scmp.le.s32.totalorder 1, %s11
    %p188 = scmp.lt.s32.totalorder %s11, 3
    %p189 = pnand %p187, %p188
    %p190 = pneg %p189
    // Predicated region
    $region37: #{radioses_forward.6} parent=5 // pred_check
      _
    $region38: #{radioses_forward.6} parent=5 // pred_check_branch
      %192 = sbr.rel (%p189) target = $region40
    $region39: #{radioses_forward.6} parent=5 // pred_region
      %s193 = ssub.s32 %s11, 1
      %s194 = smul.u32 8, %s16
      %p195 = scmp.lt.s32.totalorder %s194, 15
      %s196 = scalar_select %p195, %s194, 15
      %s197 = smul.addr %s196, 8
      %s198 = scalar_lea.vmem %s0, %s197
      %p199 = pneg %p37
      %p200 = pneg %p34
      %p201 = pneg %p58
      %p202 = pneg %p55
      %p203 = pneg %p79
      %p204 = pneg %p76
      %p205 = pneg %p100
      %p206 = pneg %p97
      %p207 = pneg %p121
      %p208 = pneg %p118
      %p209 = pneg %p147
      %p210 = pneg %p144
      %s211 = smul.u32 8, %s16
      %p212 = scmp.lt.s32.totalorder %s211, 15
      %s213 = scalar_select %p212, %s211, 15
      %s214 = smul.addr %s213, 8
      %s215 = scalar_lea.vmem %s5, %s214
      %s216 = smul.u32 8, %s16
      %p217 = scmp.lt.s32.totalorder %s216, 15
      %s218 = scalar_select %p217, %s216, 15
      %s219 = smul.addr %s218, 8
      %s220 = scalar_lea.vmem %s0, %s219
      %s221 = smul.u32 8, %s16
      %s222 = smul.u32 8, %s16
      %p223 = scmp.lt.s32.totalorder %s222, 15
      %s224 = scalar_select %p223, %s222, 15
      %s225 = smul.addr %s224, 8
      %s226 = scalar_lea.vmem %s5, %s225
      %s227 = smul.u32 8, %s16
      %v228 = vld [vmem:[%s220] sm:$0xff]
      %v229 = vld [vmem:[%s220 + $0x8] sm:$0xff]
      %v230 = vld [vmem:[%s220 + $0x10] sm:$0xff]
      %v231 = vld [vmem:[%s220 + $0x18] sm:$0xff]
      %v232 = vld [vmem:[%s220 + $0x20] sm:$0xff]
      %v233 = vld [vmem:[%s220 + $0x28] sm:$0xff]
      %v234 = vld [vmem:[%s220 + $0x30] sm:$0xff]
      %v235 = vld [vmem:[%s220 + $0x38] sm:$0xff]
      %v236 = vlaneseq
      %v237 = vshrl.u32 %v236, 7
      %v238 = vadd.s32 %v237, 8
      %v239 = vadd.s32 %v237, 16
      %v240 = vadd.s32 %v237, 24
      %v241 = vadd.s32 %v237, 32
      %v242 = vadd.s32 %v237, 40
      %v243 = vadd.s32 %v237, 48
      %v244 = vadd.s32 %v237, 56
      %vm245 = vcmp.lt.s32.totalorder %v237, 63
      %vm246 = vcmp.lt.s32.totalorder %v238, 63
      %vm247 = vcmp.lt.s32.totalorder %v239, 63
      %vm248 = vcmp.lt.s32.totalorder %v240, 63
      %vm249 = vcmp.lt.s32.totalorder %v241, 63
      %vm250 = vcmp.lt.s32.totalorder %v242, 63
      %vm251 = vcmp.lt.s32.totalorder %v243, 63
      %vm252 = vcmp.lt.s32.totalorder %v244, 63
      %v253 = vsel %vm245, %v228, 0.0
      %v254 = vsel %vm246, %v229, 0.0
      %v255 = vsel %vm247, %v230, 0.0
      %v256 = vsel %vm248, %v231, 0.0
      %v257 = vsel %vm249, %v232, 0.0
      %v258 = vsel %vm250, %v233, 0.0
      %v259 = vsel %vm251, %v234, 0.0
      %v260 = vsel %vm252, %v235, 0.0
      %vm261 = vcmask 523264
      %v262 = vsel %vm261, %v253, 0.0
      %v263 = vsel %vm261, %v254, 0.0
      %v264 = vadd.f32 %v262, %v263
      %v265 = vsel %vm261, %v255, 0.0
      %v266 = vadd.f32 %v264, %v265
      %v267 = vsel %vm261, %v256, 0.0
      %v268 = vadd.f32 %v266, %v267
      %v269 = vsel %vm261, %v257, 0.0
      %v270 = vadd.f32 %v268, %v269
      %v271 = vsel %vm261, %v258, 0.0
      %v272 = vadd.f32 %v270, %v271
      %v273 = vsel %vm261, %v259, 0.0
      %v274 = vadd.f32 %v272, %v273
      %v275 = vsel %vm261, %v260, 0.0
      %v276 = vadd.f32 %v274, %v275
      %277 = vadd.xlane.f32.xlu0 %v276
      %v278 = vpop.xlane.xlu0 %277
      %v279 = vrot.slane %v278, 4
      %v280 = vadd.f32 %v278, %v279
      %v281 = vrot.slane %v280, 2
      %v282 = vadd.f32 %v280, %v281
      %v283 = vrot.slane %v282, 1
      %v284 = vadd.f32 %v282, %v283
      %s285 = vtos %v284
      %v286 = vrcp.pop 4032.0
      %s287 = vtos %v286
      %s288 = smul.f32 %s285, %s287
      %v289 = vstv %s288
      %v290 = vsub.f32 %v228, %v289
      %v291 = vsub.f32 %v229, %v289
      %v292 = vsub.f32 %v230, %v289
      %v293 = vsub.f32 %v231, %v289
      %v294 = vsub.f32 %v232, %v289
      %v295 = vsub.f32 %v233, %v289
      %v296 = vsub.f32 %v234, %v289
      %v297 = vsub.f32 %v235, %v289
      %v298 = vmul.f32 %v290, %v290
      %v299 = vmul.f32 %v291, %v291
      %v300 = vmul.f32 %v292, %v292
      %v301 = vmul.f32 %v293, %v293
      %v302 = vmul.f32 %v294, %v294
      %v303 = vmul.f32 %v295, %v295
      %v304 = vmul.f32 %v296, %v296
      %v305 = vmul.f32 %v297, %v297
      %v306 = vsel %vm245, %v298, 0.0
      %v307 = vsel %vm246, %v299, 0.0
      %v308 = vsel %vm247, %v300, 0.0
      %v309 = vsel %vm248, %v301, 0.0
      %v310 = vsel %vm249, %v302, 0.0
      %v311 = vsel %vm250, %v303, 0.0
      %v312 = vsel %vm251, %v304, 0.0
      %v313 = vsel %vm252, %v305, 0.0
      %v314 = vsel %vm261, %v306, 0.0
      %v315 = vsel %vm261, %v307, 0.0
      %v316 = vadd.f32 %v314, %v315
      %v317 = vsel %vm261, %v308, 0.0
      %v318 = vadd.f32 %v316, %v317
      %v319 = vsel %vm261, %v309, 0.0
      %v320 = vadd.f32 %v318, %v319
      %v321 = vsel %vm261, %v310, 0.0
      %v322 = vadd.f32 %v320, %v321
      %v323 = vsel %vm261, %v311, 0.0
      %v324 = vadd.f32 %v322, %v323
      %v325 = vsel %vm261, %v312, 0.0
      %v326 = vadd.f32 %v324, %v325
      %v327 = vsel %vm261, %v313, 0.0
      %v328 = vadd.f32 %v326, %v327
      %329 = vadd.xlane.f32.xlu0 %v328
      %v330 = vpop.xlane.xlu0 %329
      %v331 = vrot.slane %v330, 4
      %v332 = vadd.f32 %v330, %v331
      %v333 = vrot.slane %v332, 2
      %v334 = vadd.f32 %v332, %v333
      %v335 = vrot.slane %v334, 1
      %v336 = vadd.f32 %v334, %v335
      %s337 = vtos %v336
      %v338 = vrcp.pop 4032.0
      %s339 = vtos %v338
      %s340 = smul.f32 %s337, %s339
      %s341 = sadd.f32 %s340, 1e-08
      %v342 = vstv %s341
      %v343 = vrsqrt.pop %v342
      %s344 = vtos %v343
      %v345 = vstv %s344
      %v346 = vmul.f32 %v290, %v345
      %v347 = vmul.f32 %v291, %v345
      %v348 = vmul.f32 %v292, %v345
      %v349 = vmul.f32 %v293, %v345
      %v350 = vmul.f32 %v294, %v345
      %v351 = vmul.f32 %v295, %v345
      %v352 = vmul.f32 %v296, %v345
      %v353 = vmul.f32 %v297, %v345
      %v354 = vld [vmem:[%s1] sm:$0x1]
      %v356 = vlaneseq
      %v357 = vshrl.u32 %v356, 7
      %v358 = vsub.s32 0, %v357
      %v359 = vrot.slane %v354, %v358
      %v361 = vmul.f32 %v346, %v359
      %v362 = vmul.f32 %v347, %v359
      %v363 = vmul.f32 %v348, %v359
      %v364 = vmul.f32 %v349, %v359
      %v365 = vmul.f32 %v350, %v359
      %v366 = vmul.f32 %v351, %v359
      %v367 = vmul.f32 %v352, %v359
      %v368 = vmul.f32 %v353, %v359
      %v369 = vld [vmem:[%s2] sm:$0x1]
      %v371 = vlaneseq
      %v372 = vshrl.u32 %v371, 7
      %v373 = vsub.s32 0, %v372
      %v374 = vrot.slane %v369, %v373
      %v376 = vadd.f32 %v361, %v374
      %v377 = vadd.f32 %v362, %v374
      %v378 = vadd.f32 %v363, %v374
      %v379 = vadd.f32 %v364, %v374
      %v380 = vadd.f32 %v365, %v374
      %v381 = vadd.f32 %v366, %v374
      %v382 = vadd.f32 %v367, %v374
      %v383 = vadd.f32 %v368, %v374
      %v384 = vld [vmem:[%s3] sm:$0xff]
      %v385 = vld [vmem:[%s3 + $0x8] sm:$0xff]
      %v386 = vld [vmem:[%s3 + $0x10] sm:$0xff]
      %v387 = vld [vmem:[%s3 + $0x18] sm:$0xff]
      %v388 = vld [vmem:[%s3 + $0x20] sm:$0xff]
      %v389 = vld [vmem:[%s3 + $0x28] sm:$0xff]
      %v390 = vld [vmem:[%s3 + $0x30] sm:$0xff]
      %v391 = vld [vmem:[%s3 + $0x38] sm:$0xff]
      %v393 = vsel %vm261, %v376, 0
      %v396 = vsel %vm261, %v377, 0
      %v399 = vsel %vm261, %v378, 0
      %v402 = vsel %vm261, %v379, 0
      %v405 = vsel %vm261, %v380, 0
      %v408 = vsel %vm261, %v381, 0
      %v411 = vsel %vm261, %v382, 0
      %v414 = vsel %vm261, %v383, 0
      %416 = vmatprep.subr.mxu0 0.0
      %417 = vmatpush1.msra.mxu0 %v384
      %418 = vmatprep.subr.mxu0 0.0
      %419 = vmatpush1.msra.mxu0 %v385
      %420 = vmatprep.subr.mxu0 0.0
      %421 = vmatpush1.msra.mxu0 %v386
      %422 = vmatprep.subr.mxu0 0.0
      %423 = vmatpush1.msra.mxu0 %v387
      %424 = vmatprep.subr.mxu0 0.0
      %425 = vmatpush1.msra.mxu0 %v388
      %426 = vmatprep.subr.mxu0 0.0
      %427 = vmatpush1.msra.mxu0 %v389
      %428 = vmatprep.subr.mxu0 0.0
      %429 = vmatpush1.msra.mxu0 %v390
      %430 = vmatprep.subr.mxu0 0.0
      %431 = vmatpush1.msra.mxu0 %v391
      %432 = vmatprep.subr.mxu0 0.0
      %433 = vmatpush1.msra.mxu0 0.0
      %434 = vmatprep.subr.mxu0 0.0
      %435 = vmatpush1.msra.mxu0 0.0
      %436 = vmatprep.subr.mxu0 0.0
      %437 = vmatpush1.msra.mxu0 0.0
      %438 = vmatprep.subr.mxu0 0.0
      %439 = vmatpush1.msra.mxu0 0.0
      %440 = vmatprep.subr.mxu0 0.0
      %441 = vmatpush1.msra.mxu0 0.0
      %442 = vmatprep.subr.mxu0 0.0
      %443 = vmatpush1.msra.mxu0 0.0
      %444 = vmatprep.subr.mxu0 0.0
      %445 = vmatpush1.msra.mxu0 0.0
      %446 = vmatprep.subr.mxu0 0.0
      %447 = vmatpush1.msra.mxu0 0.0
      %448 = vmatprep.subr.mxu0 0.0
      %449 = vmatpush1.msra.mxu0 0.0
      %450 = vmatprep.subr.mxu0 0.0
      %451 = vmatpush1.msra.mxu0 0.0
      %452 = vmatprep.subr.mxu0 0.0
      %453 = vmatpush1.msra.mxu0 0.0
      %454 = vmatprep.subr.mxu0 0.0
      %455 = vmatpush1.msra.mxu0 0.0
      %456 = vmatprep.subr.mxu0 0.0
      %457 = vmatpush1.msra.mxu0 0.0
      %458 = vmatprep.subr.mxu0 0.0
      %459 = vmatpush1.msra.mxu0 0.0
      %460 = vmatprep.subr.mxu0 0.0
      %461 = vmatpush1.msra.mxu0 0.0
      %462 = vmatprep.subr.mxu0 0.0
      %463 = vmatpush1.msra.mxu0 0.0
      %464 = vmatprep.subr.mxu0 0.0
      %465 = vmatpush1.msra.mxu0 0.0
      %466 = vmatprep.subr.mxu0 0.0
      %467 = vmatpush1.msra.mxu0 0.0
      %468 = vmatprep.subr.mxu0 0.0
      %469 = vmatpush1.msra.mxu0 0.0
      %470 = vmatprep.subr.mxu0 0.0
      %471 = vmatpush1.msra.mxu0 0.0
      %472 = vmatprep.subr.mxu0 0.0
      %473 = vmatpush1.msra.mxu0 0.0
      %474 = vmatprep.subr.mxu0 0.0
      %475 = vmatpush1.msra.mxu0 0.0
      %476 = vmatprep.subr.mxu0 0.0
      %477 = vmatpush1.msra.mxu0 0.0
      %478 = vmatprep.subr.mxu0 0.0
      %479 = vmatpush1.msra.mxu0 0.0
      %480 = vmatprep.mubr.f32.mxu0 0.0
      %481 = vmatmul.mubr.f32.gmra.mrb[0].mxu0 %v393
      %v482 = vpop.f32.mrb[0].mxu0
      %v483 = vadd.f32 0.0, %v482
      %v484 = vpop.f32.mrb[0].mxu0
      %485 = vmatprep.mubr.f32.mxu0 0.0
      %486 = vmatmul.mubr.f32.gmra.mrb[0].mxu0 %v396
      %v487 = vpop.f32.mrb[0].mxu0
      %v488 = vadd.f32 0.0, %v487
      %v489 = vpop.f32.mrb[0].mxu0
      %490 = vmatprep.mubr.f32.mxu0 0.0
      %491 = vmatmul.mubr.f32.gmra.mrb[0].mxu0 %v399
      %v492 = vpop.f32.mrb[0].mxu0
      %v493 = vadd.f32 0.0, %v492
      %v494 = vpop.f32.mrb[0].mxu0
      %495 = vmatprep.mubr.f32.mxu0 0.0
      %496 = vmatmul.mubr.f32.gmra.mrb[0].mxu0 %v402
      %v497 = vpop.f32.mrb[0].mxu0
      %v498 = vadd.f32 0.0, %v497
      %v499 = vpop.f32.mrb[0].mxu0
      %500 = vmatprep.mubr.f32.mxu0 0.0
      %501 = vmatmul.mubr.f32.gmra.mrb[0].mxu0 %v405
      %v502 = vpop.f32.mrb[0].mxu0
      %v503 = vadd.f32 0.0, %v502
      %v504 = vpop.f32.mrb[0].mxu0
      %505 = vmatprep.mubr.f32.mxu0 0.0
      %506 = vmatmul.mubr.f32.gmra.mrb[0].mxu0 %v408
      %v507 = vpop.f32.mrb[0].mxu0
      %v508 = vadd.f32 0.0, %v507
      %v509 = vpop.f32.mrb[0].mxu0
      %510 = vmatprep.mubr.f32.mxu0 0.0
      %511 = vmatmul.mubr.f32.gmra.mrb[0].mxu0 %v411
      %v512 = vpop.f32.mrb[0].mxu0
      %v513 = vadd.f32 0.0, %v512
      %v514 = vpop.f32.mrb[0].mxu0
      %515 = vmatprep.mubr.f32.mxu0 0.0
      %516 = vmatmul.mubr.f32.gmra.mrb[0].mxu0 %v414
      %v517 = vpop.f32.mrb[0].mxu0
      %v518 = vadd.f32 0.0, %v517
      %v519 = vpop.f32.mrb[0].mxu0
      %520 = vdwg.mxu0
      %v521 = vmax.f32 %v483, 0.0
      %v522 = vmax.f32 %v488, 0.0
      %v523 = vmax.f32 %v493, 0.0
      %v524 = vmax.f32 %v498, 0.0
      %v525 = vmax.f32 %v503, 0.0
      %v526 = vmax.f32 %v508, 0.0
      %v527 = vmax.f32 %v513, 0.0
      %v528 = vmax.f32 %v518, 0.0
      %v529 = vld [vmem:[%s4] sm:$0xff]
      %v530 = vld [vmem:[%s4 + $0x8] sm:$0xff]
      %v531 = vld [vmem:[%s4 + $0x10] sm:$0xff]
      %v532 = vld [vmem:[%s4 + $0x18] sm:$0xff]
      %v533 = vld [vmem:[%s4 + $0x20] sm:$0xff]
      %v534 = vld [vmem:[%s4 + $0x28] sm:$0xff]
      %v535 = vld [vmem:[%s4 + $0x30] sm:$0xff]
      %v536 = vld [vmem:[%s4 + $0x38] sm:$0xff]
      %v538 = vsel %vm261, %v521, 0
      %v541 = vsel %vm261, %v522, 0
      %v544 = vsel %vm261, %v523, 0
      %v547 = vsel %vm261, %v524, 0
      %v550 = vsel %vm261, %v525, 0
      %v553 = vsel %vm261, %v526, 0
      %v556 = vsel %vm261, %v527, 0
      %v559 = vsel %vm261, %v528, 0
      %561 = vmatprep.subr.mxu0 0.0
      %562 = vmatpush1.msra.mxu0 %v529
      %563 = vmatprep.subr.mxu0 0.0
      %564 = vmatpush1.msra.mxu0 %v530
      %565 = vmatprep.subr.mxu0 0.0
      %566 = vmatpush1.msra.mxu0 %v531
      %567 = vmatprep.subr.mxu0 0.0
      %568 = vmatpush1.msra.mxu0 %v532
      %569 = vmatprep.subr.mxu0 0.0
      %570 = vmatpush1.msra.mxu0 %v533
      %571 = vmatprep.subr.mxu0 0.0
      %572 = vmatpush1.msra.mxu0 %v534
      %573 = vmatprep.subr.mxu0 0.0
      %574 = vmatpush1.msra.mxu0 %v535
      %575 = vmatprep.subr.mxu0 0.0
      %576 = vmatpush1.msra.mxu0 %v536
      %577 = vmatprep.subr.mxu0 0.0
      %578 = vmatpush1.msra.mxu0 0.0
      %579 = vmatprep.subr.mxu0 0.0
      %580 = vmatpush1.msra.mxu0 0.0
      %581 = vmatprep.subr.mxu0 0.0
      %582 = vmatpush1.msra.mxu0 0.0
      %583 = vmatprep.subr.mxu0 0.0
      %584 = vmatpush1.msra.mxu0 0.0
      %585 = vmatprep.subr.mxu0 0.0
      %586 = vmatpush1.msra.mxu0 0.0
      %587 = vmatprep.subr.mxu0 0.0
      %588 = vmatpush1.msra.mxu0 0.0
      %589 = vmatprep.subr.mxu0 0.0
      %590 = vmatpush1.msra.mxu0 0.0
      %591 = vmatprep.subr.mxu0 0.0
      %592 = vmatpush1.msra.mxu0 0.0
      %593 = vmatprep.subr.mxu0 0.0
      %594 = vmatpush1.msra.mxu0 0.0
      %595 = vmatprep.subr.mxu0 0.0
      %596 = vmatpush1.msra.mxu0 0.0
      %597 = vmatprep.subr.mxu0 0.0
      %598 = vmatpush1.msra.mxu0 0.0
      %599 = vmatprep.subr.mxu0 0.0
      %600 = vmatpush1.msra.mxu0 0.0
      %601 = vmatprep.subr.mxu0 0.0
      %602 = vmatpush1.msra.mxu0 0.0
      %603 = vmatprep.subr.mxu0 0.0
      %604 = vmatpush1.msra.mxu0 0.0
      %605 = vmatprep.subr.mxu0 0.0
      %606 = vmatpush1.msra.mxu0 0.0
      %607 = vmatprep.subr.mxu0 0.0
      %608 = vmatpush1.msra.mxu0 0.0
      %609 = vmatprep.subr.mxu0 0.0
      %610 = vmatpush1.msra.mxu0 0.0
      %611 = vmatprep.subr.mxu0 0.0
      %612 = vmatpush1.msra.mxu0 0.0
      %613 = vmatprep.subr.mxu0 0.0
      %614 = vmatpush1.msra.mxu0 0.0
      %615 = vmatprep.subr.mxu0 0.0
      %616 = vmatpush1.msra.mxu0 0.0
      %617 = vmatprep.subr.mxu0 0.0
      %618 = vmatpush1.msra.mxu0 0.0
      %619 = vmatprep.subr.mxu0 0.0
      %620 = vmatpush1.msra.mxu0 0.0
      %621 = vmatprep.subr.mxu0 0.0
      %622 = vmatpush1.msra.mxu0 0.0
      %623 = vmatprep.subr.mxu0 0.0
      %624 = vmatpush1.msra.mxu0 0.0
      %625 = vmatprep.mubr.f32.mxu0 0.0
      %626 = vmatmul.mubr.f32.gmra.mrb[0].mxu0 %v538
      %v627 = vpop.f32.mrb[0].mxu0
      %v628 = vadd.f32 0.0, %v627
      %v629 = vpop.f32.mrb[0].mxu0
      %630 = vmatprep.mubr.f32.mxu0 0.0
      %631 = vmatmul.mubr.f32.gmra.mrb[0].mxu0 %v541
      %v632 = vpop.f32.mrb[0].mxu0
      %v633 = vadd.f32 0.0, %v632
      %v634 = vpop.f32.mrb[0].mxu0
      %635 = vmatprep.mubr.f32.mxu0 0.0
      %636 = vmatmul.mubr.f32.gmra.mrb[0].mxu0 %v544
      %v637 = vpop.f32.mrb[0].mxu0
      %v638 = vadd.f32 0.0, %v637
      %v639 = vpop.f32.mrb[0].mxu0
      %640 = vmatprep.mubr.f32.mxu0 0.0
      %641 = vmatmul.mubr.f32.gmra.mrb[0].mxu0 %v547
      %v642 = vpop.f32.mrb[0].mxu0
      %v643 = vadd.f32 0.0, %v642
      %v644 = vpop.f32.mrb[0].mxu0
      %645 = vmatprep.mubr.f32.mxu0 0.0
      %646 = vmatmul.mubr.f32.gmra.mrb[0].mxu0 %v550
      %v647 = vpop.f32.mrb[0].mxu0
      %v648 = vadd.f32 0.0, %v647
      %v649 = vpop.f32.mrb[0].mxu0
      %650 = vmatprep.mubr.f32.mxu0 0.0
      %651 = vmatmul.mubr.f32.gmra.mrb[0].mxu0 %v553
      %v652 = vpop.f32.mrb[0].mxu0
      %v653 = vadd.f32 0.0, %v652
      %v654 = vpop.f32.mrb[0].mxu0
      %655 = vmatprep.mubr.f32.mxu0 0.0
      %656 = vmatmul.mubr.f32.gmra.mrb[0].mxu0 %v556
      %v657 = vpop.f32.mrb[0].mxu0
      %v658 = vadd.f32 0.0, %v657
      %v659 = vpop.f32.mrb[0].mxu0
      %660 = vmatprep.mubr.f32.mxu0 0.0
      %661 = vmatmul.mubr.f32.gmra.mrb[0].mxu0 %v559
      %v662 = vpop.f32.mrb[0].mxu0
      %v663 = vadd.f32 0.0, %v662
      %v664 = vpop.f32.mrb[0].mxu0
      %665 = vdwg.mxu0
      %666 = vst.msk [vmem:[%s226] sm:$0xff] %vm261, %v628
      %667 = vst.msk [vmem:[%s226 + $0x8] sm:$0xff] %vm261, %v633
      %668 = vst.msk [vmem:[%s226 + $0x10] sm:$0xff] %vm261, %v638
      %669 = vst.msk [vmem:[%s226 + $0x18] sm:$0xff] %vm261, %v643
      %670 = vst.msk [vmem:[%s226 + $0x20] sm:$0xff] %vm261, %v648
      %671 = vst.msk [vmem:[%s226 + $0x28] sm:$0xff] %vm261, %v653
      %672 = vst.msk [vmem:[%s226 + $0x30] sm:$0xff] %vm261, %v658
      %673 = vst.msk [vmem:[%s226 + $0x38] sm:$0xff] %vm261, %v663
      %s674 = smul.u32 8, %s16
      %p675 = scmp.lt.s32.totalorder %s674, 15
      %s676 = scalar_select %p675, %s674, 15
      %s677 = smul.addr %s676, 8
      %s678 = scalar_lea.vmem %s5, %s677
      // Predicated region
      $region41: #{radioses_forward.6} parent=39 // pred_check
        %p679 = pneg %p144
      $region42: #{radioses_forward.6} parent=39 // pred_check_branch
        %681 = sbr.rel (%p679) target = $region44
      $region43: #{radioses_forward.6} parent=39 // pred_region
        %s682 = smul.u32 8, %s16
      $region44: #{radioses_forward.6} parent=39 // pred_fallthru
        _
    $region40: #{radioses_forward.6} parent=5 // pred_fallthru
      _
    %p683 = scmp.le.s32.totalorder 2, %s11
    // Predicated region
    $region45: #{radioses_forward.6} parent=5 // pred_check
      %p684 = pneg %p683
    $region46: #{radioses_forward.6} parent=5 // pred_check_branch
      %686 = sbr.rel (%p684) target = $region48
    $region47: #{radioses_forward.6} parent=5 // pred_region
      %s687 = ssub.s32 %s11, 2
      // Predicated region
      $region49: #{radioses_forward.6} parent=47 // pred_check
        %p688 = pneg %p150
      $region50: #{radioses_forward.6} parent=47 // pred_check_branch
        %690 = sbr.rel (%p688) target = $region52
      $region51: #{radioses_forward.6} parent=47 // pred_region
        %s691 = smul.u32 8, %s17
        %p692 = scmp.lt.s32.totalorder %s691, 15
        %s693 = scalar_select %p692, %s691, 15
        %s694 = smul.addr %s693, 8
        %s695 = scalar_lea.vmem %s5, %s694
      $region52: #{radioses_forward.6} parent=47 // pred_fallthru
        _
    $region48: #{radioses_forward.6} parent=5 // pred_fallthru
      _
  $region6: #{radioses_forward.6} parent=0 // loop_footer
    %s15 = sadd.s32 1, %s11
  $region7: #{radioses_forward.6} parent=0 // loop_footer_branch
    %10 = sbr.rel target = $region3
  $region8: #{radioses_forward.6} parent=0 // loop_exit
    _

// kernel: radioses_forward.7
$region0: #{radioses_forward.7}
  #allocation0 [shape = 'u32[]', space=smem, size = 0x4, offset = 0x4, fixed_abs, tag = 'smem constant byte address 0x4 - core index']
  #allocation1 [shape = 'u32[144,128]{1,0:T(1,128)}', space=vmem, size = 0x12000, scoped, tag = 'internal scratch']
  %s0 = inlined_call_operand.vmem [shape: f32[128,96], index: 0, kind: input, shape index: {}]
  %s1 = inlined_call_operand.vmem [shape: f32[128,64], index: 1, kind: input, shape index: {}]
  %s2 = inlined_call_operand.vmem [shape: f32[96,96], index: 2, kind: input, shape index: {}]
  %s3 = inlined_call_operand.vmem [shape: f32[2,96,96], index: 3, kind: input, shape index: {}]
  %s4 = inlined_call_operand.vmem [shape: f32[96,64], index: 4, kind: input, shape index: {}]
  %s5 = inlined_call_operand.vmem [shape: f32[16,64], index: 5, kind: input, shape index: {}]
  %s6 = inlined_call_operand.vmem [shape: f32[2,16,128], index: 6, kind: output, shape index: {}]
  %s7 = sld [smem:[#allocation0]]
  $region34: #{radioses_forward.7} parent=0
    _
  %s9 = ssub.s32 1, %s7
  %s10 = scalar_select 0, %s9, %s7
  // Predicated region
  $region2: #{radioses_forward.7} parent=0 // pred_check
    _
  $region3: #{radioses_forward.7} parent=0 // pred_check_branch
    %12 = sbr.rel (0) target = $region5
  $region4: #{radioses_forward.7} parent=0 // pred_region
    _
  $region5: #{radioses_forward.7} parent=0 // pred_fallthru
    _
  // Predicated region
  $region6: #{radioses_forward.7} parent=0 // pred_check
    _
  $region7: #{radioses_forward.7} parent=0 // pred_check_branch
    %14 = sbr.rel (0) target = $region9
  $region8: #{radioses_forward.7} parent=0 // pred_region
    _
  $region9: #{radioses_forward.7} parent=0 // pred_fallthru
    _
  // Predicated region
  $region10: #{radioses_forward.7} parent=0 // pred_check
    _
  $region11: #{radioses_forward.7} parent=0 // pred_check_branch
    %16 = sbr.rel (0) target = $region13
  $region12: #{radioses_forward.7} parent=0 // pred_region
    _
  $region13: #{radioses_forward.7} parent=0 // pred_fallthru
    _
  // Predicated region
  $region14: #{radioses_forward.7} parent=0 // pred_check
    _
  $region15: #{radioses_forward.7} parent=0 // pred_check_branch
    %18 = sbr.rel (0) target = $region17
  $region16: #{radioses_forward.7} parent=0 // pred_region
    _
  $region17: #{radioses_forward.7} parent=0 // pred_fallthru
    _
  // Predicated region
  $region18: #{radioses_forward.7} parent=0 // pred_check
    _
  $region19: #{radioses_forward.7} parent=0 // pred_check_branch
    %20 = sbr.rel (0) target = $region21
  $region20: #{radioses_forward.7} parent=0 // pred_region
    _
  $region21: #{radioses_forward.7} parent=0 // pred_fallthru
    _
  // Predicated region
  $region22: #{radioses_forward.7} parent=0 // pred_check
    _
  $region23: #{radioses_forward.7} parent=0 // pred_check_branch
    %22 = sbr.rel (0) target = $region25
  $region24: #{radioses_forward.7} parent=0 // pred_region
    _
  $region25: #{radioses_forward.7} parent=0 // pred_fallthru
    _
  %v23 = vld [vmem:[%s0] sm:$0xff]
  %v24 = vld [vmem:[%s0 + $0x8] sm:$0xff]
  %v25 = vld [vmem:[%s0 + $0x10] sm:$0xff]
  %v26 = vld [vmem:[%s0 + $0x18] sm:$0xff]
  %v27 = vld [vmem:[%s0 + $0x20] sm:$0xff]
  %v28 = vld [vmem:[%s0 + $0x28] sm:$0xff]
  %v29 = vld [vmem:[%s0 + $0x30] sm:$0xff]
  %v30 = vld [vmem:[%s0 + $0x38] sm:$0xff]
  %v31 = vld [vmem:[%s0 + $0x40] sm:$0xff]
  %v32 = vld [vmem:[%s0 + $0x48] sm:$0xff]
  %v33 = vld [vmem:[%s0 + $0x50] sm:$0xff]
  %v34 = vld [vmem:[%s0 + $0x58] sm:$0xff]
  %v35 = vld [vmem:[%s0 + $0x60] sm:$0xff]
  %v36 = vld [vmem:[%s0 + $0x68] sm:$0xff]
  %v37 = vld [vmem:[%s0 + $0x70] sm:$0xff]
  %v38 = vld [vmem:[%s0 + $0x78] sm:$0xff]
  %v39 = vld [vmem:[%s1] sm:$0xff]
  %v40 = vld [vmem:[%s1 + $0x8] sm:$0xff]
  %v41 = vld [vmem:[%s1 + $0x10] sm:$0xff]
  %v42 = vld [vmem:[%s1 + $0x18] sm:$0xff]
  %v43 = vld [vmem:[%s1 + $0x20] sm:$0xff]
  %v44 = vld [vmem:[%s1 + $0x28] sm:$0xff]
  %v45 = vld [vmem:[%s1 + $0x30] sm:$0xff]
  %v46 = vld [vmem:[%s1 + $0x38] sm:$0xff]
  %v47 = vld [vmem:[%s1 + $0x40] sm:$0xff]
  %v48 = vld [vmem:[%s1 + $0x48] sm:$0xff]
  %v49 = vld [vmem:[%s1 + $0x50] sm:$0xff]
  %v50 = vld [vmem:[%s1 + $0x58] sm:$0xff]
  %v51 = vld [vmem:[%s1 + $0x60] sm:$0xff]
  %v52 = vld [vmem:[%s1 + $0x68] sm:$0xff]
  %v53 = vld [vmem:[%s1 + $0x70] sm:$0xff]
  %v54 = vld [vmem:[%s1 + $0x78] sm:$0xff]
  %v55 = vld [vmem:[%s2] sm:$0xff]
  %v56 = vld [vmem:[%s2 + $0x8] sm:$0xff]
  %v57 = vld [vmem:[%s2 + $0x10] sm:$0xff]
  %v58 = vld [vmem:[%s2 + $0x18] sm:$0xff]
  %v59 = vld [vmem:[%s2 + $0x20] sm:$0xff]
  %v60 = vld [vmem:[%s2 + $0x28] sm:$0xff]
  %v61 = vld [vmem:[%s2 + $0x30] sm:$0xff]
  %v62 = vld [vmem:[%s2 + $0x38] sm:$0xff]
  %v63 = vld [vmem:[%s2 + $0x40] sm:$0xff]
  %v64 = vld [vmem:[%s2 + $0x48] sm:$0xff]
  %v65 = vld [vmem:[%s2 + $0x50] sm:$0xff]
  %v66 = vld [vmem:[%s2 + $0x58] sm:$0xff]
  %vm67 = vcmask 785408
  %v69 = vsel %vm67, %v23, 0
  %v72 = vsel %vm67, %v24, 0
  %v75 = vsel %vm67, %v25, 0
  %v78 = vsel %vm67, %v26, 0
  %v81 = vsel %vm67, %v27, 0
  %v84 = vsel %vm67, %v28, 0
  %v87 = vsel %vm67, %v29, 0
  %v90 = vsel %vm67, %v30, 0
  %v93 = vsel %vm67, %v31, 0
  %v96 = vsel %vm67, %v32, 0
  %v99 = vsel %vm67, %v33, 0
  %v102 = vsel %vm67, %v34, 0
  %v105 = vsel %vm67, %v35, 0
  %v108 = vsel %vm67, %v36, 0
  %v111 = vsel %vm67, %v37, 0
  %v114 = vsel %vm67, %v38, 0
  %116 = vmatprep.subr.mxu0 0.0
  %117 = vmatpush1.msra.mxu0 %v55
  %118 = vmatprep.subr.mxu0 0.0
  %119 = vmatpush1.msra.mxu0 %v56
  %120 = vmatprep.subr.mxu0 0.0
  %121 = vmatpush1.msra.mxu0 %v57
  %122 = vmatprep.subr.mxu0 0.0
  %123 = vmatpush1.msra.mxu0 %v58
  %124 = vmatprep.subr.mxu0 0.0
  %125 = vmatpush1.msra.mxu0 %v59
  %126 = vmatprep.subr.mxu0 0.0
  %127 = vmatpush1.msra.mxu0 %v60
  %128 = vmatprep.subr.mxu0 0.0
  %129 = vmatpush1.msra.mxu0 %v61
  %130 = vmatprep.subr.mxu0 0.0
  %131 = vmatpush1.msra.mxu0 %v62
  %132 = vmatprep.subr.mxu0 0.0
  %133 = vmatpush1.msra.mxu0 %v63
  %134 = vmatprep.subr.mxu0 0.0
  %135 = vmatpush1.msra.mxu0 %v64
  %136 = vmatprep.subr.mxu0 0.0
  %137 = vmatpush1.msra.mxu0 %v65
  %138 = vmatprep.subr.mxu0 0.0
  %139 = vmatpush1.msra.mxu0 %v66
  %140 = vmatprep.subr.mxu0 0.0
  %141 = vmatpush1.msra.mxu0 0.0
  %142 = vmatprep.subr.mxu0 0.0
  %143 = vmatpush1.msra.mxu0 0.0
  %144 = vmatprep.subr.mxu0 0.0
  %145 = vmatpush1.msra.mxu0 0.0
  %146 = vmatprep.subr.mxu0 0.0
  %147 = vmatpush1.msra.mxu0 0.0
  %148 = vmatprep.subr.mxu0 0.0
  %149 = vmatpush1.msra.mxu0 0.0
  %150 = vmatprep.subr.mxu0 0.0
  %151 = vmatpush1.msra.mxu0 0.0
  %152 = vmatprep.subr.mxu0 0.0
  %153 = vmatpush1.msra.mxu0 0.0
  %154 = vmatprep.subr.mxu0 0.0
  %155 = vmatpush1.msra.mxu0 0.0
  %156 = vmatprep.subr.mxu0 0.0
  %157 = vmatpush1.msra.mxu0 0.0
  %158 = vmatprep.subr.mxu0 0.0
  %159 = vmatpush1.msra.mxu0 0.0
  %160 = vmatprep.subr.mxu0 0.0
  %161 = vmatpush1.msra.mxu0 0.0
  %162 = vmatprep.subr.mxu0 0.0
  %163 = vmatpush1.msra.mxu0 0.0
  %164 = vmatprep.subr.mxu0 0.0
  %165 = vmatpush1.msra.mxu0 0.0
  %166 = vmatprep.subr.mxu0 0.0
  %167 = vmatpush1.msra.mxu0 0.0
  %168 = vmatprep.subr.mxu0 0.0
  %169 = vmatpush1.msra.mxu0 0.0
  %170 = vmatprep.subr.mxu0 0.0
  %171 = vmatpush1.msra.mxu0 0.0
  %172 = vmatprep.subr.mxu0 0.0
  %173 = vmatpush1.msra.mxu0 0.0
  %174 = vmatprep.subr.mxu0 0.0
  %175 = vmatpush1.msra.mxu0 0.0
  %176 = vmatprep.subr.mxu0 0.0
  %177 = vmatpush1.msra.mxu0 0.0
  %178 = vmatprep.subr.mxu0 0.0
  %179 = vmatpush1.msra.mxu0 0.0
  %180 = vmatprep.mubr.f32.mxu0 0.0
  %181 = vmatmul.mubr.f32.gmra.mrb[0].mxu0 %v69
  %v182 = vpop.f32.mrb[0].mxu0
  %v183 = vadd.f32 0.0, %v182
  %v184 = vpop.f32.mrb[0].mxu0
  %185 = vmatprep.mubr.f32.mxu0 0.0
  %186 = vmatmul.mubr.f32.gmra.mrb[0].mxu0 %v72
  %v187 = vpop.f32.mrb[0].mxu0
  %v188 = vadd.f32 0.0, %v187
  %v189 = vpop.f32.mrb[0].mxu0
  %190 = vmatprep.mubr.f32.mxu0 0.0
  %191 = vmatmul.mubr.f32.gmra.mrb[0].mxu0 %v75
  %v192 = vpop.f32.mrb[0].mxu0
  %v193 = vadd.f32 0.0, %v192
  %v194 = vpop.f32.mrb[0].mxu0
  %195 = vmatprep.mubr.f32.mxu0 0.0
  %196 = vmatmul.mubr.f32.gmra.mrb[0].mxu0 %v78
  %v197 = vpop.f32.mrb[0].mxu0
  %v198 = vadd.f32 0.0, %v197
  %v199 = vpop.f32.mrb[0].mxu0
  %200 = vmatprep.mubr.f32.mxu0 0.0
  %201 = vmatmul.mubr.f32.gmra.mrb[0].mxu0 %v81
  %v202 = vpop.f32.mrb[0].mxu0
  %v203 = vadd.f32 0.0, %v202
  %v204 = vpop.f32.mrb[0].mxu0
  %205 = vmatprep.mubr.f32.mxu0 0.0
  %206 = vmatmul.mubr.f32.gmra.mrb[0].mxu0 %v84
  %v207 = vpop.f32.mrb[0].mxu0
  %v208 = vadd.f32 0.0, %v207
  %v209 = vpop.f32.mrb[0].mxu0
  %210 = vmatprep.mubr.f32.mxu0 0.0
  %211 = vmatmul.mubr.f32.gmra.mrb[0].mxu0 %v87
  %v212 = vpop.f32.mrb[0].mxu0
  %v213 = vadd.f32 0.0, %v212
  %v214 = vpop.f32.mrb[0].mxu0
  %215 = vmatprep.mubr.f32.mxu0 0.0
  %216 = vmatmul.mubr.f32.gmra.mrb[0].mxu0 %v90
  %v217 = vpop.f32.mrb[0].mxu0
  %v218 = vadd.f32 0.0, %v217
  %v219 = vpop.f32.mrb[0].mxu0
  %220 = vmatprep.mubr.f32.mxu0 0.0
  %221 = vmatmul.mubr.f32.gmra.mrb[0].mxu0 %v93
  %v222 = vpop.f32.mrb[0].mxu0
  %v223 = vadd.f32 0.0, %v222
  %v224 = vpop.f32.mrb[0].mxu0
  %225 = vmatprep.mubr.f32.mxu0 0.0
  %226 = vmatmul.mubr.f32.gmra.mrb[0].mxu0 %v96
  %v227 = vpop.f32.mrb[0].mxu0
  %v228 = vadd.f32 0.0, %v227
  %v229 = vpop.f32.mrb[0].mxu0
  %230 = vmatprep.mubr.f32.mxu0 0.0
  %231 = vmatmul.mubr.f32.gmra.mrb[0].mxu0 %v99
  %v232 = vpop.f32.mrb[0].mxu0
  %v233 = vadd.f32 0.0, %v232
  %v234 = vpop.f32.mrb[0].mxu0
  %235 = vmatprep.mubr.f32.mxu0 0.0
  %236 = vmatmul.mubr.f32.gmra.mrb[0].mxu0 %v102
  %v237 = vpop.f32.mrb[0].mxu0
  %v238 = vadd.f32 0.0, %v237
  %v239 = vpop.f32.mrb[0].mxu0
  %240 = vmatprep.mubr.f32.mxu0 0.0
  %241 = vmatmul.mubr.f32.gmra.mrb[0].mxu0 %v105
  %v242 = vpop.f32.mrb[0].mxu0
  %v243 = vadd.f32 0.0, %v242
  %v244 = vpop.f32.mrb[0].mxu0
  %245 = vmatprep.mubr.f32.mxu0 0.0
  %246 = vmatmul.mubr.f32.gmra.mrb[0].mxu0 %v108
  %v247 = vpop.f32.mrb[0].mxu0
  %v248 = vadd.f32 0.0, %v247
  %v249 = vpop.f32.mrb[0].mxu0
  %250 = vmatprep.mubr.f32.mxu0 0.0
  %251 = vmatmul.mubr.f32.gmra.mrb[0].mxu0 %v111
  %v252 = vpop.f32.mrb[0].mxu0
  %v253 = vadd.f32 0.0, %v252
  %v254 = vpop.f32.mrb[0].mxu0
  %255 = vmatprep.mubr.f32.mxu0 0.0
  %256 = vmatmul.mubr.f32.gmra.mrb[0].mxu0 %v114
  %v257 = vpop.f32.mrb[0].mxu0
  %v258 = vadd.f32 0.0, %v257
  %v259 = vpop.f32.mrb[0].mxu0
  %260 = vdwg.mxu0
  %v261 = vmax.f32 %v183, 0.0
  %v262 = vmax.f32 %v188, 0.0
  %v263 = vmax.f32 %v193, 0.0
  %v264 = vmax.f32 %v198, 0.0
  %v265 = vmax.f32 %v203, 0.0
  %v266 = vmax.f32 %v208, 0.0
  %v267 = vmax.f32 %v213, 0.0
  %v268 = vmax.f32 %v218, 0.0
  %v269 = vmax.f32 %v223, 0.0
  %v270 = vmax.f32 %v228, 0.0
  %v271 = vmax.f32 %v233, 0.0
  %v272 = vmax.f32 %v238, 0.0
  %v273 = vmax.f32 %v243, 0.0
  %v274 = vmax.f32 %v248, 0.0
  %v275 = vmax.f32 %v253, 0.0
  %v276 = vmax.f32 %v258, 0.0
  %v277 = vld [vmem:[%s5] sm:$0xff]
  %v278 = vld [vmem:[%s5 + $0x8] sm:$0xff]
  %v279 = vld [vmem:[%s3] sm:$0xff]
  %v280 = vld [vmem:[%s3 + $0x8] sm:$0xff]
  %v281 = vld [vmem:[%s3 + $0x10] sm:$0xff]
  %v282 = vld [vmem:[%s3 + $0x18] sm:$0xff]
  %v283 = vld [vmem:[%s3 + $0x20] sm:$0xff]
  %v284 = vld [vmem:[%s3 + $0x28] sm:$0xff]
  %v285 = vld [vmem:[%s3 + $0x30] sm:$0xff]
  %v286 = vld [vmem:[%s3 + $0x38] sm:$0xff]
  %v287 = vld [vmem:[%s3 + $0x40] sm:$0xff]
  %v288 = vld [vmem:[%s3 + $0x48] sm:$0xff]
  %v289 = vld [vmem:[%s3 + $0x50] sm:$0xff]
  %v290 = vld [vmem:[%s3 + $0x58] sm:$0xff]
  %v292 = vsel %vm67, %v261, 0
  %v295 = vsel %vm67, %v262, 0
  %v298 = vsel %vm67, %v263, 0
  %v301 = vsel %vm67, %v264, 0
  %v304 = vsel %vm67, %v265, 0
  %v307 = vsel %vm67, %v266, 0
  %v310 = vsel %vm67, %v267, 0
  %v313 = vsel %vm67, %v268, 0
  %v316 = vsel %vm67, %v269, 0
  %v319 = vsel %vm67, %v270, 0
  %v322 = vsel %vm67, %v271, 0
  %v325 = vsel %vm67, %v272, 0
  %v328 = vsel %vm67, %v273, 0
  %v331 = vsel %vm67, %v274, 0
  %v334 = vsel %vm67, %v275, 0
  %v337 = vsel %vm67, %v276, 0
  %339 = vmatprep.subr.mxu0 0.0
  %340 = vmatpush1.msra.mxu0 %v279
  %341 = vmatprep.subr.mxu0 0.0
  %342 = vmatpush1.msra.mxu0 %v280
  %343 = vmatprep.subr.mxu0 0.0
  %344 = vmatpush1.msra.mxu0 %v281
  %345 = vmatprep.subr.mxu0 0.0
  %346 = vmatpush1.msra.mxu0 %v282
  %347 = vmatprep.subr.mxu0 0.0
  %348 = vmatpush1.msra.mxu0 %v283
  %349 = vmatprep.subr.mxu0 0.0
  %350 = vmatpush1.msra.mxu0 %v284
  %351 = vmatprep.subr.mxu0 0.0
  %352 = vmatpush1.msra.mxu0 %v285
  %353 = vmatprep.subr.mxu0 0.0
  %354 = vmatpush1.msra.mxu0 %v286
  %355 = vmatprep.subr.mxu0 0.0
  %356 = vmatpush1.msra.mxu0 %v287
  %357 = vmatprep.subr.mxu0 0.0
  %358 = vmatpush1.msra.mxu0 %v288
  %359 = vmatprep.subr.mxu0 0.0
  %360 = vmatpush1.msra.mxu0 %v289
  %361 = vmatprep.subr.mxu0 0.0
  %362 = vmatpush1.msra.mxu0 %v290
  %363 = vmatprep.subr.mxu0 0.0
  %364 = vmatpush1.msra.mxu0 0.0
  %365 = vmatprep.subr.mxu0 0.0
  %366 = vmatpush1.msra.mxu0 0.0
  %367 = vmatprep.subr.mxu0 0.0
  %368 = vmatpush1.msra.mxu0 0.0
  %369 = vmatprep.subr.mxu0 0.0
  %370 = vmatpush1.msra.mxu0 0.0
  %371 = vmatprep.subr.mxu0 0.0
  %372 = vmatpush1.msra.mxu0 0.0
  %373 = vmatprep.subr.mxu0 0.0
  %374 = vmatpush1.msra.mxu0 0.0
  %375 = vmatprep.subr.mxu0 0.0
  %376 = vmatpush1.msra.mxu0 0.0
  %377 = vmatprep.subr.mxu0 0.0
  %378 = vmatpush1.msra.mxu0 0.0
  %379 = vmatprep.subr.mxu0 0.0
  %380 = vmatpush1.msra.mxu0 0.0
  %381 = vmatprep.subr.mxu0 0.0
  %382 = vmatpush1.msra.mxu0 0.0
  %383 = vmatprep.subr.mxu0 0.0
  %384 = vmatpush1.msra.mxu0 0.0
  %385 = vmatprep.subr.mxu0 0.0
  %386 = vmatpush1.msra.mxu0 0.0
  %387 = vmatprep.subr.mxu0 0.0
  %388 = vmatpush1.msra.mxu0 0.0
  %389 = vmatprep.subr.mxu0 0.0
  %390 = vmatpush1.msra.mxu0 0.0
  %391 = vmatprep.subr.mxu0 0.0
  %392 = vmatpush1.msra.mxu0 0.0
  %393 = vmatprep.subr.mxu0 0.0
  %394 = vmatpush1.msra.mxu0 0.0
  %395 = vmatprep.subr.mxu0 0.0
  %396 = vmatpush1.msra.mxu0 0.0
  %397 = vmatprep.subr.mxu0 0.0
  %398 = vmatpush1.msra.mxu0 0.0
  %399 = vmatprep.subr.mxu0 0.0
  %400 = vmatpush1.msra.mxu0 0.0
  %401 = vmatprep.subr.mxu0 0.0
  %402 = vmatpush1.msra.mxu0 0.0
  %403 = vmatprep.mubr.f32.mxu0 0.0
  %404 = vmatmul.mubr.f32.gmra.mrb[0].mxu0 %v292
  %v405 = vpop.f32.mrb[0].mxu0
  %v406 = vadd.f32 0.0, %v405
  %v407 = vpop.f32.mrb[0].mxu0
  %408 = vmatprep.mubr.f32.mxu0 0.0
  %409 = vmatmul.mubr.f32.gmra.mrb[0].mxu0 %v295
  %v410 = vpop.f32.mrb[0].mxu0
  %v411 = vadd.f32 0.0, %v410
  %v412 = vpop.f32.mrb[0].mxu0
  %413 = vmatprep.mubr.f32.mxu0 0.0
  %414 = vmatmul.mubr.f32.gmra.mrb[0].mxu0 %v298
  %v415 = vpop.f32.mrb[0].mxu0
  %v416 = vadd.f32 0.0, %v415
  %v417 = vpop.f32.mrb[0].mxu0
  %418 = vmatprep.mubr.f32.mxu0 0.0
  %419 = vmatmul.mubr.f32.gmra.mrb[0].mxu0 %v301
  %v420 = vpop.f32.mrb[0].mxu0
  %v421 = vadd.f32 0.0, %v420
  %v422 = vpop.f32.mrb[0].mxu0
  %423 = vmatprep.mubr.f32.mxu0 0.0
  %424 = vmatmul.mubr.f32.gmra.mrb[0].mxu0 %v304
  %v425 = vpop.f32.mrb[0].mxu0
  %v426 = vadd.f32 0.0, %v425
  %v427 = vpop.f32.mrb[0].mxu0
  %428 = vmatprep.mubr.f32.mxu0 0.0
  %429 = vmatmul.mubr.f32.gmra.mrb[0].mxu0 %v307
  %v430 = vpop.f32.mrb[0].mxu0
  %v431 = vadd.f32 0.0, %v430
  %v432 = vpop.f32.mrb[0].mxu0
  %433 = vmatprep.mubr.f32.mxu0 0.0
  %434 = vmatmul.mubr.f32.gmra.mrb[0].mxu0 %v310
  %v435 = vpop.f32.mrb[0].mxu0
  %v436 = vadd.f32 0.0, %v435
  %v437 = vpop.f32.mrb[0].mxu0
  %438 = vmatprep.mubr.f32.mxu0 0.0
  %439 = vmatmul.mubr.f32.gmra.mrb[0].mxu0 %v313
  %v440 = vpop.f32.mrb[0].mxu0
  %v441 = vadd.f32 0.0, %v440
  %v442 = vpop.f32.mrb[0].mxu0
  %443 = vmatprep.mubr.f32.mxu0 0.0
  %444 = vmatmul.mubr.f32.gmra.mrb[0].mxu0 %v316
  %v445 = vpop.f32.mrb[0].mxu0
  %v446 = vadd.f32 0.0, %v445
  %v447 = vpop.f32.mrb[0].mxu0
  %448 = vmatprep.mubr.f32.mxu0 0.0
  %449 = vmatmul.mubr.f32.gmra.mrb[0].mxu0 %v319
  %v450 = vpop.f32.mrb[0].mxu0
  %v451 = vadd.f32 0.0, %v450
  %v452 = vpop.f32.mrb[0].mxu0
  %453 = vmatprep.mubr.f32.mxu0 0.0
  %454 = vmatmul.mubr.f32.gmra.mrb[0].mxu0 %v322
  %v455 = vpop.f32.mrb[0].mxu0
  %v456 = vadd.f32 0.0, %v455
  %v457 = vpop.f32.mrb[0].mxu0
  %458 = vmatprep.mubr.f32.mxu0 0.0
  %459 = vmatmul.mubr.f32.gmra.mrb[0].mxu0 %v325
  %v460 = vpop.f32.mrb[0].mxu0
  %v461 = vadd.f32 0.0, %v460
  %v462 = vpop.f32.mrb[0].mxu0
  %463 = vmatprep.mubr.f32.mxu0 0.0
  %464 = vmatmul.mubr.f32.gmra.mrb[0].mxu0 %v328
  %v465 = vpop.f32.mrb[0].mxu0
  %v466 = vadd.f32 0.0, %v465
  %v467 = vpop.f32.mrb[0].mxu0
  %468 = vmatprep.mubr.f32.mxu0 0.0
  %469 = vmatmul.mubr.f32.gmra.mrb[0].mxu0 %v331
  %v470 = vpop.f32.mrb[0].mxu0
  %v471 = vadd.f32 0.0, %v470
  %v472 = vpop.f32.mrb[0].mxu0
  %473 = vmatprep.mubr.f32.mxu0 0.0
  %474 = vmatmul.mubr.f32.gmra.mrb[0].mxu0 %v334
  %v475 = vpop.f32.mrb[0].mxu0
  %v476 = vadd.f32 0.0, %v475
  %v477 = vpop.f32.mrb[0].mxu0
  %478 = vmatprep.mubr.f32.mxu0 0.0
  %479 = vmatmul.mubr.f32.gmra.mrb[0].mxu0 %v337
  %v480 = vpop.f32.mrb[0].mxu0
  %v481 = vadd.f32 0.0, %v480
  %v482 = vpop.f32.mrb[0].mxu0
  %483 = vdwg.mxu0
  %v484 = vld [vmem:[%s4] sm:$0xff]
  %v485 = vld [vmem:[%s4 + $0x8] sm:$0xff]
  %v486 = vld [vmem:[%s4 + $0x10] sm:$0xff]
  %v487 = vld [vmem:[%s4 + $0x18] sm:$0xff]
  %v488 = vld [vmem:[%s4 + $0x20] sm:$0xff]
  %v489 = vld [vmem:[%s4 + $0x28] sm:$0xff]
  %v490 = vld [vmem:[%s4 + $0x30] sm:$0xff]
  %v491 = vld [vmem:[%s4 + $0x38] sm:$0xff]
  %v492 = vld [vmem:[%s4 + $0x40] sm:$0xff]
  %v493 = vld [vmem:[%s4 + $0x48] sm:$0xff]
  %v494 = vld [vmem:[%s4 + $0x50] sm:$0xff]
  %v495 = vld [vmem:[%s4 + $0x58] sm:$0xff]
  %v497 = vsel %vm67, %v406, 0
  %v500 = vsel %vm67, %v411, 0
  %v503 = vsel %vm67, %v416, 0
  %v506 = vsel %vm67, %v421, 0
  %v509 = vsel %vm67, %v426, 0
  %v512 = vsel %vm67, %v431, 0
  %v515 = vsel %vm67, %v436, 0
  %v518 = vsel %vm67, %v441, 0
  %v521 = vsel %vm67, %v446, 0
  %v524 = vsel %vm67, %v451, 0
  %v527 = vsel %vm67, %v456, 0
  %v530 = vsel %vm67, %v461, 0
  %v533 = vsel %vm67, %v466, 0
  %v536 = vsel %vm67, %v471, 0
  %v539 = vsel %vm67, %v476, 0
  %v542 = vsel %vm67, %v481, 0
  %544 = vmatprep.subr.mxu0 0.0
  %545 = vmatpush1.msra.mxu0 %v484
  %546 = vmatprep.subr.mxu0 0.0
  %547 = vmatpush1.msra.mxu0 %v485
  %548 = vmatprep.subr.mxu0 0.0
  %549 = vmatpush1.msra.mxu0 %v486
  %550 = vmatprep.subr.mxu0 0.0
  %551 = vmatpush1.msra.mxu0 %v487
  %552 = vmatprep.subr.mxu0 0.0
  %553 = vmatpush1.msra.mxu0 %v488
  %554 = vmatprep.subr.mxu0 0.0
  %555 = vmatpush1.msra.mxu0 %v489
  %556 = vmatprep.subr.mxu0 0.0
  %557 = vmatpush1.msra.mxu0 %v490
  %558 = vmatprep.subr.mxu0 0.0
  %559 = vmatpush1.msra.mxu0 %v491
  %560 = vmatprep.subr.mxu0 0.0
  %561 = vmatpush1.msra.mxu0 %v492
  %562 = vmatprep.subr.mxu0 0.0
  %563 = vmatpush1.msra.mxu0 %v493
  %564 = vmatprep.subr.mxu0 0.0
  %565 = vmatpush1.msra.mxu0 %v494
  %566 = vmatprep.subr.mxu0 0.0
  %567 = vmatpush1.msra.mxu0 %v495
  %568 = vmatprep.subr.mxu0 0.0
  %569 = vmatpush1.msra.mxu0 0.0
  %570 = vmatprep.subr.mxu0 0.0
  %571 = vmatpush1.msra.mxu0 0.0
  %572 = vmatprep.subr.mxu0 0.0
  %573 = vmatpush1.msra.mxu0 0.0
  %574 = vmatprep.subr.mxu0 0.0
  %575 = vmatpush1.msra.mxu0 0.0
  %576 = vmatprep.subr.mxu0 0.0
  %577 = vmatpush1.msra.mxu0 0.0
  %578 = vmatprep.subr.mxu0 0.0
  %579 = vmatpush1.msra.mxu0 0.0
  %580 = vmatprep.subr.mxu0 0.0
  %581 = vmatpush1.msra.mxu0 0.0
  %582 = vmatprep.subr.mxu0 0.0
  %583 = vmatpush1.msra.mxu0 0.0
  %584 = vmatprep.subr.mxu0 0.0
  %585 = vmatpush1.msra.mxu0 0.0
  %586 = vmatprep.subr.mxu0 0.0
  %587 = vmatpush1.msra.mxu0 0.0
  %588 = vmatprep.subr.mxu0 0.0
  %589 = vmatpush1.msra.mxu0 0.0
  %590 = vmatprep.subr.mxu0 0.0
  %591 = vmatpush1.msra.mxu0 0.0
  %592 = vmatprep.subr.mxu0 0.0
  %593 = vmatpush1.msra.mxu0 0.0
  %594 = vmatprep.subr.mxu0 0.0
  %595 = vmatpush1.msra.mxu0 0.0
  %596 = vmatprep.subr.mxu0 0.0
  %597 = vmatpush1.msra.mxu0 0.0
  %598 = vmatprep.subr.mxu0 0.0
  %599 = vmatpush1.msra.mxu0 0.0
  %600 = vmatprep.subr.mxu0 0.0
  %601 = vmatpush1.msra.mxu0 0.0
  %602 = vmatprep.subr.mxu0 0.0
  %603 = vmatpush1.msra.mxu0 0.0
  %604 = vmatprep.subr.mxu0 0.0
  %605 = vmatpush1.msra.mxu0 0.0
  %606 = vmatprep.subr.mxu0 0.0
  %607 = vmatpush1.msra.mxu0 0.0
  %608 = vmatprep.mubr.f32.mxu0 0.0
  %609 = vmatmul.mubr.f32.gmra.mrb[0].mxu0 %v497
  %v610 = vpop.f32.mrb[0].mxu0
  %v611 = vadd.f32 0.0, %v610
  %v612 = vpop.f32.mrb[0].mxu0
  %613 = vmatprep.mubr.f32.mxu0 0.0
  %614 = vmatmul.mubr.f32.gmra.mrb[0].mxu0 %v500
  %v615 = vpop.f32.mrb[0].mxu0
  %v616 = vadd.f32 0.0, %v615
  %v617 = vpop.f32.mrb[0].mxu0
  %618 = vmatprep.mubr.f32.mxu0 0.0
  %619 = vmatmul.mubr.f32.gmra.mrb[0].mxu0 %v503
  %v620 = vpop.f32.mrb[0].mxu0
  %v621 = vadd.f32 0.0, %v620
  %v622 = vpop.f32.mrb[0].mxu0
  %623 = vmatprep.mubr.f32.mxu0 0.0
  %624 = vmatmul.mubr.f32.gmra.mrb[0].mxu0 %v506
  %v625 = vpop.f32.mrb[0].mxu0
  %v626 = vadd.f32 0.0, %v625
  %v627 = vpop.f32.mrb[0].mxu0
  %628 = vmatprep.mubr.f32.mxu0 0.0
  %629 = vmatmul.mubr.f32.gmra.mrb[0].mxu0 %v509
  %v630 = vpop.f32.mrb[0].mxu0
  %v631 = vadd.f32 0.0, %v630
  %v632 = vpop.f32.mrb[0].mxu0
  %633 = vmatprep.mubr.f32.mxu0 0.0
  %634 = vmatmul.mubr.f32.gmra.mrb[0].mxu0 %v512
  %v635 = vpop.f32.mrb[0].mxu0
  %v636 = vadd.f32 0.0, %v635
  %v637 = vpop.f32.mrb[0].mxu0
  %638 = vmatprep.mubr.f32.mxu0 0.0
  %639 = vmatmul.mubr.f32.gmra.mrb[0].mxu0 %v515
  %v640 = vpop.f32.mrb[0].mxu0
  %v641 = vadd.f32 0.0, %v640
  %v642 = vpop.f32.mrb[0].mxu0
  %643 = vmatprep.mubr.f32.mxu0 0.0
  %644 = vmatmul.mubr.f32.gmra.mrb[0].mxu0 %v518
  %v645 = vpop.f32.mrb[0].mxu0
  %v646 = vadd.f32 0.0, %v645
  %v647 = vpop.f32.mrb[0].mxu0
  %648 = vmatprep.mubr.f32.mxu0 0.0
  %649 = vmatmul.mubr.f32.gmra.mrb[0].mxu0 %v521
  %v650 = vpop.f32.mrb[0].mxu0
  %v651 = vadd.f32 0.0, %v650
  %v652 = vpop.f32.mrb[0].mxu0
  %653 = vmatprep.mubr.f32.mxu0 0.0
  %654 = vmatmul.mubr.f32.gmra.mrb[0].mxu0 %v524
  %v655 = vpop.f32.mrb[0].mxu0
  %v656 = vadd.f32 0.0, %v655
  %v657 = vpop.f32.mrb[0].mxu0
  %658 = vmatprep.mubr.f32.mxu0 0.0
  %659 = vmatmul.mubr.f32.gmra.mrb[0].mxu0 %v527
  %v660 = vpop.f32.mrb[0].mxu0
  %v661 = vadd.f32 0.0, %v660
  %v662 = vpop.f32.mrb[0].mxu0
  %663 = vmatprep.mubr.f32.mxu0 0.0
  %664 = vmatmul.mubr.f32.gmra.mrb[0].mxu0 %v530
  %v665 = vpop.f32.mrb[0].mxu0
  %v666 = vadd.f32 0.0, %v665
  %v667 = vpop.f32.mrb[0].mxu0
  %668 = vmatprep.mubr.f32.mxu0 0.0
  %669 = vmatmul.mubr.f32.gmra.mrb[0].mxu0 %v533
  %v670 = vpop.f32.mrb[0].mxu0
  %v671 = vadd.f32 0.0, %v670
  %v672 = vpop.f32.mrb[0].mxu0
  %673 = vmatprep.mubr.f32.mxu0 0.0
  %674 = vmatmul.mubr.f32.gmra.mrb[0].mxu0 %v536
  %v675 = vpop.f32.mrb[0].mxu0
  %v676 = vadd.f32 0.0, %v675
  %v677 = vpop.f32.mrb[0].mxu0
  %678 = vmatprep.mubr.f32.mxu0 0.0
  %679 = vmatmul.mubr.f32.gmra.mrb[0].mxu0 %v539
  %v680 = vpop.f32.mrb[0].mxu0
  %v681 = vadd.f32 0.0, %v680
  %v682 = vpop.f32.mrb[0].mxu0
  %683 = vmatprep.mubr.f32.mxu0 0.0
  %684 = vmatmul.mubr.f32.gmra.mrb[0].mxu0 %v542
  %v685 = vpop.f32.mrb[0].mxu0
  %v686 = vadd.f32 0.0, %v685
  %v687 = vpop.f32.mrb[0].mxu0
  %688 = vdwg.mxu0
  %v689 = vmax.f32 %v611, 0.0
  %v690 = vmax.f32 %v616, 0.0
  %v691 = vmax.f32 %v621, 0.0
  %v692 = vmax.f32 %v626, 0.0
  %v693 = vmax.f32 %v631, 0.0
  %v694 = vmax.f32 %v636, 0.0
  %v695 = vmax.f32 %v641, 0.0
  %v696 = vmax.f32 %v646, 0.0
  %v697 = vmax.f32 %v651, 0.0
  %v698 = vmax.f32 %v656, 0.0
  %v699 = vmax.f32 %v661, 0.0
  %v700 = vmax.f32 %v666, 0.0
  %v701 = vmax.f32 %v671, 0.0
  %v702 = vmax.f32 %v676, 0.0
  %v703 = vmax.f32 %v681, 0.0
  %v704 = vmax.f32 %v686, 0.0
  %v705 = vmul.f32 %v689, %v39
  %v706 = vmul.f32 %v690, %v40
  %v707 = vmul.f32 %v691, %v41
  %v708 = vmul.f32 %v692, %v42
  %v709 = vmul.f32 %v693, %v43
  %v710 = vmul.f32 %v694, %v44
  %v711 = vmul.f32 %v695, %v45
  %v712 = vmul.f32 %v696, %v46
  %v713 = vmul.f32 %v697, %v47
  %v714 = vmul.f32 %v698, %v48
  %v715 = vmul.f32 %v699, %v49
  %v716 = vmul.f32 %v700, %v50
  %v717 = vmul.f32 %v701, %v51
  %v718 = vmul.f32 %v702, %v52
  %v719 = vmul.f32 %v703, %v53
  %v720 = vmul.f32 %v704, %v54
  %vm721 = vcmask 523264
  %v723 = vsel %vm721, %v277, 0
  %v726 = vsel %vm721, %v278, 0
  %v729 = vsel %vm721, %v705, 0
  %v732 = vsel %vm721, %v706, 0
  %v735 = vsel %vm721, %v707, 0
  %v738 = vsel %vm721, %v708, 0
  %v741 = vsel %vm721, %v709, 0
  %v744 = vsel %vm721, %v710, 0
  %v747 = vsel %vm721, %v711, 0
  %v750 = vsel %vm721, %v712, 0
  %v753 = vsel %vm721, %v713, 0
  %v756 = vsel %vm721, %v714, 0
  %v759 = vsel %vm721, %v715, 0
  %v762 = vsel %vm721, %v716, 0
  %v765 = vsel %vm721, %v717, 0
  %v768 = vsel %vm721, %v718, 0
  %v771 = vsel %vm721, %v719, 0
  %v774 = vsel %vm721, %v720, 0
  %776 = vmatprep.subr.mxu0 0.0
  %777 = vmatpush1.xpose.msra.mxu0 %v729
  %778 = vmatprep.subr.mxu0 0.0
  %779 = vmatpush1.xpose.msra.mxu0 %v732
  %780 = vmatprep.subr.mxu0 0.0
  %781 = vmatpush1.xpose.msra.mxu0 %v735
  %782 = vmatprep.subr.mxu0 0.0
  %783 = vmatpush1.xpose.msra.mxu0 %v738
  %784 = vmatprep.subr.mxu0 0.0
  %785 = vmatpush1.xpose.msra.mxu0 %v741
  %786 = vmatprep.subr.mxu0 0.0
  %787 = vmatpush1.xpose.msra.mxu0 %v744
  %788 = vmatprep.subr.mxu0 0.0
  %789 = vmatpush1.xpose.msra.mxu0 %v747
  %790 = vmatprep.subr.mxu0 0.0
  %791 = vmatpush1.xpose.msra.mxu0 %v750
  %792 = vmatprep.subr.mxu0 0.0
  %793 = vmatpush1.xpose.msra.mxu0 %v753
  %794 = vmatprep.subr.mxu0 0.0
  %795 = vmatpush1.xpose.msra.mxu0 %v756
  %796 = vmatprep.subr.mxu0 0.0
  %797 = vmatpush1.xpose.msra.mxu0 %v759
  %798 = vmatprep.subr.mxu0 0.0
  %799 = vmatpush1.xpose.msra.mxu0 %v762
  %800 = vmatprep.subr.mxu0 0.0
  %801 = vmatpush1.xpose.msra.mxu0 %v765
  %802 = vmatprep.subr.mxu0 0.0
  %803 = vmatpush1.xpose.msra.mxu0 %v768
  %804 = vmatprep.subr.mxu0 0.0
  %805 = vmatpush1.xpose.msra.mxu0 %v771
  %806 = vmatprep.subr.mxu0 0.0
  %807 = vmatpush1.xpose.msra.mxu0 %v774
  %808 = vmatprep.subr.mxu0 0.0
  %809 = vmatpush1.xpose.msra.mxu0 0.0
  %810 = vmatprep.subr.mxu0 0.0
  %811 = vmatpush1.xpose.msra.mxu0 0.0
  %812 = vmatprep.subr.mxu0 0.0
  %813 = vmatpush1.xpose.msra.mxu0 0.0
  %814 = vmatprep.subr.mxu0 0.0
  %815 = vmatpush1.xpose.msra.mxu0 0.0
  %816 = vmatprep.subr.mxu0 0.0
  %817 = vmatpush1.xpose.msra.mxu0 0.0
  %818 = vmatprep.subr.mxu0 0.0
  %819 = vmatpush1.xpose.msra.mxu0 0.0
  %820 = vmatprep.subr.mxu0 0.0
  %821 = vmatpush1.xpose.msra.mxu0 0.0
  %822 = vmatprep.subr.mxu0 0.0
  %823 = vmatpush1.xpose.msra.mxu0 0.0
  %824 = vmatprep.subr.mxu0 0.0
  %825 = vmatpush1.xpose.msra.mxu0 0.0
  %826 = vmatprep.subr.mxu0 0.0
  %827 = vmatpush1.xpose.msra.mxu0 0.0
  %828 = vmatprep.subr.mxu0 0.0
  %829 = vmatpush1.xpose.msra.mxu0 0.0
  %830 = vmatprep.subr.mxu0 0.0
  %831 = vmatpush1.xpose.msra.mxu0 0.0
  %832 = vmatprep.subr.mxu0 0.0
  %833 = vmatpush1.xpose.msra.mxu0 0.0
  %834 = vmatprep.subr.mxu0 0.0
  %835 = vmatpush1.xpose.msra.mxu0 0.0
  %836 = vmatprep.subr.mxu0 0.0
  %837 = vmatpush1.xpose.msra.mxu0 0.0
  %838 = vmatprep.subr.mxu0 0.0
  %839 = vmatpush1.xpose.msra.mxu0 0.0
  %840 = vmatprep.mubr.f32.mxu0 0.0
  %841 = vmatmul.mubr.f32.gmra.mrb[0].mxu0 %v723
  %v842 = vpop.f32.mrb[0].mxu0
  %v843 = vadd.f32 0.0, %v842
  %v844 = vpop.f32.mrb[0].mxu0
  %845 = vmatprep.mubr.f32.mxu0 0.0
  %846 = vmatmul.mubr.f32.gmra.mrb[0].mxu0 %v726
  %v847 = vpop.f32.mrb[0].mxu0
  %v848 = vadd.f32 0.0, %v847
  %v849 = vpop.f32.mrb[0].mxu0
  %850 = vdwg.mxu0
  %851 = vst [vmem:[%s6] sm:$0xff] %v843
  %852 = vst [vmem:[%s6 + $0x8] sm:$0xff] %v848
  %s853 = scalar_lea.vmem %s3, 96
  %v854 = vld [vmem:[%s853] sm:$0xff]
  %v855 = vld [vmem:[%s853 + $0x8] sm:$0xff]
  %v856 = vld [vmem:[%s853 + $0x10] sm:$0xff]
  %v857 = vld [vmem:[%s853 + $0x18] sm:$0xff]
  %v858 = vld [vmem:[%s853 + $0x20] sm:$0xff]
  %v859 = vld [vmem:[%s853 + $0x28] sm:$0xff]
  %v860 = vld [vmem:[%s853 + $0x30] sm:$0xff]
  %v861 = vld [vmem:[%s853 + $0x38] sm:$0xff]
  %v862 = vld [vmem:[%s853 + $0x40] sm:$0xff]
  %v863 = vld [vmem:[%s853 + $0x48] sm:$0xff]
  %v864 = vld [vmem:[%s853 + $0x50] sm:$0xff]
  %v865 = vld [vmem:[%s853 + $0x58] sm:$0xff]
  %866 = vmatprep.subr.mxu0 0.0
  %867 = vmatpush1.msra.mxu0 %v854
  %868 = vmatprep.subr.mxu0 0.0
  %869 = vmatpush1.msra.mxu0 %v855
  %870 = vmatprep.subr.mxu0 0.0
  %871 = vmatpush1.msra.mxu0 %v856
  %872 = vmatprep.subr.mxu0 0.0
  %873 = vmatpush1.msra.mxu0 %v857
  %874 = vmatprep.subr.mxu0 0.0
  %875 = vmatpush1.msra.mxu0 %v858
  %876 = vmatprep.subr.mxu0 0.0
  %877 = vmatpush1.msra.mxu0 %v859
  %878 = vmatprep.subr.mxu0 0.0
  %879 = vmatpush1.msra.mxu0 %v860
  %880 = vmatprep.subr.mxu0 0.0
  %881 = vmatpush1.msra.mxu0 %v861
  %882 = vmatprep.subr.mxu0 0.0
  %883 = vmatpush1.msra.mxu0 %v862
  %884 = vmatprep.subr.mxu0 0.0
  %885 = vmatpush1.msra.mxu0 %v863
  %886 = vmatprep.subr.mxu0 0.0
  %887 = vmatpush1.msra.mxu0 %v864
  %888 = vmatprep.subr.mxu0 0.0
  %889 = vmatpush1.msra.mxu0 %v865
  %890 = vmatprep.subr.mxu0 0.0
  %891 = vmatpush1.msra.mxu0 0.0
  %892 = vmatprep.subr.mxu0 0.0
  %893 = vmatpush1.msra.mxu0 0.0
  %894 = vmatprep.subr.mxu0 0.0
  %895 = vmatpush1.msra.mxu0 0.0
  %896 = vmatprep.subr.mxu0 0.0
  %897 = vmatpush1.msra.mxu0 0.0
  %898 = vmatprep.subr.mxu0 0.0
  %899 = vmatpush1.msra.mxu0 0.0
  %900 = vmatprep.subr.mxu0 0.0
  %901 = vmatpush1.msra.mxu0 0.0
  %902 = vmatprep.subr.mxu0 0.0
  %903 = vmatpush1.msra.mxu0 0.0
  %904 = vmatprep.subr.mxu0 0.0
  %905 = vmatpush1.msra.mxu0 0.0
  %906 = vmatprep.subr.mxu0 0.0
  %907 = vmatpush1.msra.mxu0 0.0
  %908 = vmatprep.subr.mxu0 0.0
  %909 = vmatpush1.msra.mxu0 0.0
  %910 = vmatprep.subr.mxu0 0.0
  %911 = vmatpush1.msra.mxu0 0.0
  %912 = vmatprep.subr.mxu0 0.0
  %913 = vmatpush1.msra.mxu0 0.0
  %914 = vmatprep.subr.mxu0 0.0
  %915 = vmatpush1.msra.mxu0 0.0
  %916 = vmatprep.subr.mxu0 0.0
  %917 = vmatpush1.msra.mxu0 0.0
  %918 = vmatprep.subr.mxu0 0.0
  %919 = vmatpush1.msra.mxu0 0.0
  %920 = vmatprep.subr.mxu0 0.0
  %921 = vmatpush1.msra.mxu0 0.0
  %922 = vmatprep.subr.mxu0 0.0
  %923 = vmatpush1.msra.mxu0 0.0
  %924 = vmatprep.subr.mxu0 0.0
  %925 = vmatpush1.msra.mxu0 0.0
  %926 = vmatprep.subr.mxu0 0.0
  %927 = vmatpush1.msra.mxu0 0.0
  %928 = vmatprep.subr.mxu0 0.0
  %929 = vmatpush1.msra.mxu0 0.0
  %930 = vmatprep.mubr.f32.mxu0 0.0
  %931 = vmatmul.mubr.f32.gmra.mrb[0].mxu0 %v292
  %v932 = vpop.f32.mrb[0].mxu0
  %v933 = vadd.f32 0.0, %v932
  %v934 = vpop.f32.mrb[0].mxu0
  %935 = vmatprep.mubr.f32.mxu0 0.0
  %936 = vmatmul.mubr.f32.gmra.mrb[0].mxu0 %v295
  %v937 = vpop.f32.mrb[0].mxu0
  %v938 = vadd.f32 0.0, %v937
  %v939 = vpop.f32.mrb[0].mxu0
  %940 = vmatprep.mubr.f32.mxu0 0.0
  %941 = vmatmul.mubr.f32.gmra.mrb[0].mxu0 %v298
  %v942 = vpop.f32.mrb[0].mxu0
  %v943 = vadd.f32 0.0, %v942
  %v944 = vpop.f32.mrb[0].mxu0
  %945 = vmatprep.mubr.f32.mxu0 0.0
  %946 = vmatmul.mubr.f32.gmra.mrb[0].mxu0 %v301
  %v947 = vpop.f32.mrb[0].mxu0
  %v948 = vadd.f32 0.0, %v947
  %v949 = vpop.f32.mrb[0].mxu0
  %950 = vmatprep.mubr.f32.mxu0 0.0
  %951 = vmatmul.mubr.f32.gmra.mrb[0].mxu0 %v304
  %v952 = vpop.f32.mrb[0].mxu0
  %v953 = vadd.f32 0.0, %v952
  %v954 = vpop.f32.mrb[0].mxu0
  %955 = vmatprep.mubr.f32.mxu0 0.0
  %956 = vmatmul.mubr.f32.gmra.mrb[0].mxu0 %v307
  %v957 = vpop.f32.mrb[0].mxu0
  %v958 = vadd.f32 0.0, %v957
  %v959 = vpop.f32.mrb[0].mxu0
  %960 = vmatprep.mubr.f32.mxu0 0.0
  %961 = vmatmul.mubr.f32.gmra.mrb[0].mxu0 %v310
  %v962 = vpop.f32.mrb[0].mxu0
  %v963 = vadd.f32 0.0, %v962
  %v964 = vpop.f32.mrb[0].mxu0
  %965 = vmatprep.mubr.f32.mxu0 0.0
  %966 = vmatmul.mubr.f32.gmra.mrb[0].mxu0 %v313
  %v967 = vpop.f32.mrb[0].mxu0
  %v968 = vadd.f32 0.0, %v967
  %v969 = vpop.f32.mrb[0].mxu0
  %970 = vmatprep.mubr.f32.mxu0 0.0
  %971 = vmatmul.mubr.f32.gmra.mrb[0].mxu0 %v316
  %v972 = vpop.f32.mrb[0].mxu0
  %v973 = vadd.f32 0.0, %v972
  %v974 = vpop.f32.mrb[0].mxu0
  %975 = vmatprep.mubr.f32.mxu0 0.0
  %976 = vmatmul.mubr.f32.gmra.mrb[0].mxu0 %v319
  %v977 = vpop.f32.mrb[0].mxu0
  %v978 = vadd.f32 0.0, %v977
  %v979 = vpop.f32.mrb[0].mxu0
  %980 = vmatprep.mubr.f32.mxu0 0.0
  %981 = vmatmul.mubr.f32.gmra.mrb[0].mxu0 %v322
  %v982 = vpop.f32.mrb[0].mxu0
  %v983 = vadd.f32 0.0, %v982
  %v984 = vpop.f32.mrb[0].mxu0
  %985 = vmatprep.mubr.f32.mxu0 0.0
  %986 = vmatmul.mubr.f32.gmra.mrb[0].mxu0 %v325
  %v987 = vpop.f32.mrb[0].mxu0
  %v988 = vadd.f32 0.0, %v987
  %v989 = vpop.f32.mrb[0].mxu0
  %990 = vmatprep.mubr.f32.mxu0 0.0
  %991 = vmatmul.mubr.f32.gmra.mrb[0].mxu0 %v328
  %v992 = vpop.f32.mrb[0].mxu0
  %v993 = vadd.f32 0.0, %v992
  %v994 = vpop.f32.mrb[0].mxu0
  %995 = vmatprep.mubr.f32.mxu0 0.0
  %996 = vmatmul.mubr.f32.gmra.mrb[0].mxu0 %v331
  %v997 = vpop.f32.mrb[0].mxu0
  %v998 = vadd.f32 0.0, %v997
  %v999 = vpop.f32.mrb[0].mxu0
  %1000 = vmatprep.mubr.f32.mxu0 0.0
  %1001 = vmatmul.mubr.f32.gmra.mrb[0].mxu0 %v334
  %v1002 = vpop.f32.mrb[0].mxu0
  %v1003 = vadd.f32 0.0, %v1002
  %v1004 = vpop.f32.mrb[0].mxu0
  %1005 = vmatprep.mubr.f32.mxu0 0.0
  %1006 = vmatmul.mubr.f32.gmra.mrb[0].mxu0 %v337
  %v1007 = vpop.f32.mrb[0].mxu0
  %v1008 = vadd.f32 0.0, %v1007
  %v1009 = vpop.f32.mrb[0].mxu0
  %1010 = vdwg.mxu0
  %v1011 = vld [vmem:[%s4] sm:$0xff]
  %v1012 = vld [vmem:[%s4 + $0x8] sm:$0xff]
  %v1013 = vld [vmem:[%s4 + $0x10] sm:$0xff]
  %v1014 = vld [vmem:[%s4 + $0x18] sm:$0xff]
  %v1015 = vld [vmem:[%s4 + $0x20] sm:$0xff]
  %v1016 = vld [vmem:[%s4 + $0x28] sm:$0xff]
  %v1017 = vld [vmem:[%s4 + $0x30] sm:$0xff]
  %v1018 = vld [vmem:[%s4 + $0x38] sm:$0xff]
  %v1019 = vld [vmem:[%s4 + $0x40] sm:$0xff]
  %v1020 = vld [vmem:[%s4 + $0x48] sm:$0xff]
  %v1021 = vld [vmem:[%s4 + $0x50] sm:$0xff]
  %v1022 = vld [vmem:[%s4 + $0x58] sm:$0xff]
  %v1024 = vsel %vm67, %v933, 0
  %v1027 = vsel %vm67, %v938, 0
  %v1030 = vsel %vm67, %v943, 0
  %v1033 = vsel %vm67, %v948, 0
  %v1036 = vsel %vm67, %v953, 0
  %v1039 = vsel %vm67, %v958, 0
  %v1042 = vsel %vm67, %v963, 0
  %v1045 = vsel %vm67, %v968, 0
  %v1048 = vsel %vm67, %v973, 0
  %v1051 = vsel %vm67, %v978, 0
  %v1054 = vsel %vm67, %v983, 0
  %v1057 = vsel %vm67, %v988, 0
  %v1060 = vsel %vm67, %v993, 0
  %v1063 = vsel %vm67, %v998, 0
  %v1066 = vsel %vm67, %v1003, 0
  %v1069 = vsel %vm67, %v1008, 0
  %1071 = vmatprep.subr.mxu0 0.0
  %1072 = vmatpush1.msra.mxu0 %v1011
  %1073 = vmatprep.subr.mxu0 0.0
  %1074 = vmatpush1.msra.mxu0 %v1012
  %1075 = vmatprep.subr.mxu0 0.0
  %1076 = vmatpush1.msra.mxu0 %v1013
  %1077 = vmatprep.subr.mxu0 0.0
  %1078 = vmatpush1.msra.mxu0 %v1014
  %1079 = vmatprep.subr.mxu0 0.0
  %1080 = vmatpush1.msra.mxu0 %v1015
  %1081 = vmatprep.subr.mxu0 0.0
  %1082 = vmatpush1.msra.mxu0 %v1016
  %1083 = vmatprep.subr.mxu0 0.0
  %1084 = vmatpush1.msra.mxu0 %v1017
  %1085 = vmatprep.subr.mxu0 0.0
  %1086 = vmatpush1.msra.mxu0 %v1018
  %1087 = vmatprep.subr.mxu0 0.0
  %1088 = vmatpush1.msra.mxu0 %v1019
  %1089 = vmatprep.subr.mxu0 0.0
  %1090 = vmatpush1.msra.mxu0 %v1020
  %1091 = vmatprep.subr.mxu0 0.0
  %1092 = vmatpush1.msra.mxu0 %v1021
  %1093 = vmatprep.subr.mxu0 0.0
  %1094 = vmatpush1.msra.mxu0 %v1022
  %1095 = vmatprep.subr.mxu0 0.0
  %1096 = vmatpush1.msra.mxu0 0.0
  %1097 = vmatprep.subr.mxu0 0.0
  %1098 = vmatpush1.msra.mxu0 0.0
  %1099 = vmatprep.subr.mxu0 0.0
  %1100 = vmatpush1.msra.mxu0 0.0
  %1101 = vmatprep.subr.mxu0 0.0
  %1102 = vmatpush1.msra.mxu0 0.0
  %1103 = vmatprep.subr.mxu0 0.0
  %1104 = vmatpush1.msra.mxu0 0.0
  %1105 = vmatprep.subr.mxu0 0.0
  %1106 = vmatpush1.msra.mxu0 0.0
  %1107 = vmatprep.subr.mxu0 0.0
  %1108 = vmatpush1.msra.mxu0 0.0
  %1109 = vmatprep.subr.mxu0 0.0
  %1110 = vmatpush1.msra.mxu0 0.0
  %1111 = vmatprep.subr.mxu0 0.0
  %1112 = vmatpush1.msra.mxu0 0.0
  %1113 = vmatprep.subr.mxu0 0.0
  %1114 = vmatpush1.msra.mxu0 0.0
  %1115 = vmatprep.subr.mxu0 0.0
  %1116 = vmatpush1.msra.mxu0 0.0
  %1117 = vmatprep.subr.mxu0 0.0
  %1118 = vmatpush1.msra.mxu0 0.0
  %1119 = vmatprep.subr.mxu0 0.0
  %1120 = vmatpush1.msra.mxu0 0.0
  %1121 = vmatprep.subr.mxu0 0.0
  %1122 = vmatpush1.msra.mxu0 0.0
  %1123 = vmatprep.subr.mxu0 0.0
  %1124 = vmatpush1.msra.mxu0 0.0
  %1125 = vmatprep.subr.mxu0 0.0
  %1126 = vmatpush1.msra.mxu0 0.0
  %1127 = vmatprep.subr.mxu0 0.0
  %1128 = vmatpush1.msra.mxu0 0.0
  %1129 = vmatprep.subr.mxu0 0.0
  %1130 = vmatpush1.msra.mxu0 0.0
  %1131 = vmatprep.subr.mxu0 0.0
  %1132 = vmatpush1.msra.mxu0 0.0
  %1133 = vmatprep.subr.mxu0 0.0
  %1134 = vmatpush1.msra.mxu0 0.0
  %1135 = vmatprep.mubr.f32.mxu0 0.0
  %1136 = vmatmul.mubr.f32.gmra.mrb[0].mxu0 %v1024
  %v1137 = vpop.f32.mrb[0].mxu0
  %v1138 = vadd.f32 0.0, %v1137
  %v1139 = vpop.f32.mrb[0].mxu0
  %1140 = vmatprep.mubr.f32.mxu0 0.0
  %1141 = vmatmul.mubr.f32.gmra.mrb[0].mxu0 %v1027
  %v1142 = vpop.f32.mrb[0].mxu0
  %v1143 = vadd.f32 0.0, %v1142
  %v1144 = vpop.f32.mrb[0].mxu0
  %1145 = vmatprep.mubr.f32.mxu0 0.0
  %1146 = vmatmul.mubr.f32.gmra.mrb[0].mxu0 %v1030
  %v1147 = vpop.f32.mrb[0].mxu0
  %v1148 = vadd.f32 0.0, %v1147
  %v1149 = vpop.f32.mrb[0].mxu0
  %1150 = vmatprep.mubr.f32.mxu0 0.0
  %1151 = vmatmul.mubr.f32.gmra.mrb[0].mxu0 %v1033
  %v1152 = vpop.f32.mrb[0].mxu0
  %v1153 = vadd.f32 0.0, %v1152
  %v1154 = vpop.f32.mrb[0].mxu0
  %1155 = vmatprep.mubr.f32.mxu0 0.0
  %1156 = vmatmul.mubr.f32.gmra.mrb[0].mxu0 %v1036
  %v1157 = vpop.f32.mrb[0].mxu0
  %v1158 = vadd.f32 0.0, %v1157
  %v1159 = vpop.f32.mrb[0].mxu0
  %1160 = vmatprep.mubr.f32.mxu0 0.0
  %1161 = vmatmul.mubr.f32.gmra.mrb[0].mxu0 %v1039
  %v1162 = vpop.f32.mrb[0].mxu0
  %v1163 = vadd.f32 0.0, %v1162
  %v1164 = vpop.f32.mrb[0].mxu0
  %1165 = vmatprep.mubr.f32.mxu0 0.0
  %1166 = vmatmul.mubr.f32.gmra.mrb[0].mxu0 %v1042
  %v1167 = vpop.f32.mrb[0].mxu0
  %v1168 = vadd.f32 0.0, %v1167
  %v1169 = vpop.f32.mrb[0].mxu0
  %1170 = vmatprep.mubr.f32.mxu0 0.0
  %1171 = vmatmul.mubr.f32.gmra.mrb[0].mxu0 %v1045
  %v1172 = vpop.f32.mrb[0].mxu0
  %v1173 = vadd.f32 0.0, %v1172
  %v1174 = vpop.f32.mrb[0].mxu0
  %1175 = vmatprep.mubr.f32.mxu0 0.0
  %1176 = vmatmul.mubr.f32.gmra.mrb[0].mxu0 %v1048
  %v1177 = vpop.f32.mrb[0].mxu0
  %v1178 = vadd.f32 0.0, %v1177
  %v1179 = vpop.f32.mrb[0].mxu0
  %1180 = vmatprep.mubr.f32.mxu0 0.0
  %1181 = vmatmul.mubr.f32.gmra.mrb[0].mxu0 %v1051
  %v1182 = vpop.f32.mrb[0].mxu0
  %v1183 = vadd.f32 0.0, %v1182
  %v1184 = vpop.f32.mrb[0].mxu0
  %1185 = vmatprep.mubr.f32.mxu0 0.0
  %1186 = vmatmul.mubr.f32.gmra.mrb[0].mxu0 %v1054
  %v1187 = vpop.f32.mrb[0].mxu0
  %v1188 = vadd.f32 0.0, %v1187
  %v1189 = vpop.f32.mrb[0].mxu0
  %1190 = vmatprep.mubr.f32.mxu0 0.0
  %1191 = vmatmul.mubr.f32.gmra.mrb[0].mxu0 %v1057
  %v1192 = vpop.f32.mrb[0].mxu0
  %v1193 = vadd.f32 0.0, %v1192
  %v1194 = vpop.f32.mrb[0].mxu0
  %1195 = vmatprep.mubr.f32.mxu0 0.0
  %1196 = vmatmul.mubr.f32.gmra.mrb[0].mxu0 %v1060
  %v1197 = vpop.f32.mrb[0].mxu0
  %v1198 = vadd.f32 0.0, %v1197
  %v1199 = vpop.f32.mrb[0].mxu0
  %1200 = vmatprep.mubr.f32.mxu0 0.0
  %1201 = vmatmul.mubr.f32.gmra.mrb[0].mxu0 %v1063
  %v1202 = vpop.f32.mrb[0].mxu0
  %v1203 = vadd.f32 0.0, %v1202
  %v1204 = vpop.f32.mrb[0].mxu0
  %1205 = vmatprep.mubr.f32.mxu0 0.0
  %1206 = vmatmul.mubr.f32.gmra.mrb[0].mxu0 %v1066
  %v1207 = vpop.f32.mrb[0].mxu0
  %v1208 = vadd.f32 0.0, %v1207
  %v1209 = vpop.f32.mrb[0].mxu0
  %1210 = vmatprep.mubr.f32.mxu0 0.0
  %1211 = vmatmul.mubr.f32.gmra.mrb[0].mxu0 %v1069
  %v1212 = vpop.f32.mrb[0].mxu0
  %v1213 = vadd.f32 0.0, %v1212
  %v1214 = vpop.f32.mrb[0].mxu0
  %1215 = vdwg.mxu0
  %v1216 = vmax.f32 %v1138, 0.0
  %v1217 = vmax.f32 %v1143, 0.0
  %v1218 = vmax.f32 %v1148, 0.0
  %v1219 = vmax.f32 %v1153, 0.0
  %v1220 = vmax.f32 %v1158, 0.0
  %v1221 = vmax.f32 %v1163, 0.0
  %v1222 = vmax.f32 %v1168, 0.0
  %v1223 = vmax.f32 %v1173, 0.0
  %v1224 = vmax.f32 %v1178, 0.0
  %v1225 = vmax.f32 %v1183, 0.0
  %v1226 = vmax.f32 %v1188, 0.0
  %v1227 = vmax.f32 %v1193, 0.0
  %v1228 = vmax.f32 %v1198, 0.0
  %v1229 = vmax.f32 %v1203, 0.0
  %v1230 = vmax.f32 %v1208, 0.0
  %v1231 = vmax.f32 %v1213, 0.0
  %v1232 = vmul.f32 %v1216, %v39
  %v1233 = vmul.f32 %v1217, %v40
  %v1234 = vmul.f32 %v1218, %v41
  %v1235 = vmul.f32 %v1219, %v42
  %v1236 = vmul.f32 %v1220, %v43
  %v1237 = vmul.f32 %v1221, %v44
  %v1238 = vmul.f32 %v1222, %v45
  %v1239 = vmul.f32 %v1223, %v46
  %v1240 = vmul.f32 %v1224, %v47
  %v1241 = vmul.f32 %v1225, %v48
  %v1242 = vmul.f32 %v1226, %v49
  %v1243 = vmul.f32 %v1227, %v50
  %v1244 = vmul.f32 %v1228, %v51
  %v1245 = vmul.f32 %v1229, %v52
  %v1246 = vmul.f32 %v1230, %v53
  %v1247 = vmul.f32 %v1231, %v54
  %v1249 = vsel %vm721, %v1232, 0
  %v1252 = vsel %vm721, %v1233, 0
  %v1255 = vsel %vm721, %v1234, 0
  %v1258 = vsel %vm721, %v1235, 0
  %v1261 = vsel %vm721, %v1236, 0
  %v1264 = vsel %vm721, %v1237, 0
  %v1267 = vsel %vm721, %v1238, 0
  %v1270 = vsel %vm721, %v1239, 0
  %v1273 = vsel %vm721, %v1240, 0
  %v1276 = vsel %vm721, %v1241, 0
  %v1279 = vsel %vm721, %v1242, 0
  %v1282 = vsel %vm721, %v1243, 0
  %v1285 = vsel %vm721, %v1244, 0
  %v1288 = vsel %vm721, %v1245, 0
  %v1291 = vsel %vm721, %v1246, 0
  %v1294 = vsel %vm721, %v1247, 0
  %1296 = vmatprep.subr.mxu0 0.0
  %1297 = vmatpush1.xpose.msra.mxu0 %v1249
  %1298 = vmatprep.subr.mxu0 0.0
  %1299 = vmatpush1.xpose.msra.mxu0 %v1252
  %1300 = vmatprep.subr.mxu0 0.0
  %1301 = vmatpush1.xpose.msra.mxu0 %v1255
  %1302 = vmatprep.subr.mxu0 0.0
  %1303 = vmatpush1.xpose.msra.mxu0 %v1258
  %1304 = vmatprep.subr.mxu0 0.0
  %1305 = vmatpush1.xpose.msra.mxu0 %v1261
  %1306 = vmatprep.subr.mxu0 0.0
  %1307 = vmatpush1.xpose.msra.mxu0 %v1264
  %1308 = vmatprep.subr.mxu0 0.0
  %1309 = vmatpush1.xpose.msra.mxu0 %v1267
  %1310 = vmatprep.subr.mxu0 0.0
  %1311 = vmatpush1.xpose.msra.mxu0 %v1270
  %1312 = vmatprep.subr.mxu0 0.0
  %1313 = vmatpush1.xpose.msra.mxu0 %v1273
  %1314 = vmatprep.subr.mxu0 0.0
  %1315 = vmatpush1.xpose.msra.mxu0 %v1276
  %1316 = vmatprep.subr.mxu0 0.0
  %1317 = vmatpush1.xpose.msra.mxu0 %v1279
  %1318 = vmatprep.subr.mxu0 0.0
  %1319 = vmatpush1.xpose.msra.mxu0 %v1282
  %1320 = vmatprep.subr.mxu0 0.0
  %1321 = vmatpush1.xpose.msra.mxu0 %v1285
  %1322 = vmatprep.subr.mxu0 0.0
  %1323 = vmatpush1.xpose.msra.mxu0 %v1288
  %1324 = vmatprep.subr.mxu0 0.0
  %1325 = vmatpush1.xpose.msra.mxu0 %v1291
  %1326 = vmatprep.subr.mxu0 0.0
  %1327 = vmatpush1.xpose.msra.mxu0 %v1294
  %1328 = vmatprep.subr.mxu0 0.0
  %1329 = vmatpush1.xpose.msra.mxu0 0.0
  %1330 = vmatprep.subr.mxu0 0.0
  %1331 = vmatpush1.xpose.msra.mxu0 0.0
  %1332 = vmatprep.subr.mxu0 0.0
  %1333 = vmatpush1.xpose.msra.mxu0 0.0
  %1334 = vmatprep.subr.mxu0 0.0
  %1335 = vmatpush1.xpose.msra.mxu0 0.0
  %1336 = vmatprep.subr.mxu0 0.0
  %1337 = vmatpush1.xpose.msra.mxu0 0.0
  %1338 = vmatprep.subr.mxu0 0.0
  %1339 = vmatpush1.xpose.msra.mxu0 0.0
  %1340 = vmatprep.subr.mxu0 0.0
  %1341 = vmatpush1.xpose.msra.mxu0 0.0
  %1342 = vmatprep.subr.mxu0 0.0
  %1343 = vmatpush1.xpose.msra.mxu0 0.0
  %1344 = vmatprep.subr.mxu0 0.0
  %1345 = vmatpush1.xpose.msra.mxu0 0.0
  %1346 = vmatprep.subr.mxu0 0.0
  %1347 = vmatpush1.xpose.msra.mxu0 0.0
  %1348 = vmatprep.subr.mxu0 0.0
  %1349 = vmatpush1.xpose.msra.mxu0 0.0
  %1350 = vmatprep.subr.mxu0 0.0
  %1351 = vmatpush1.xpose.msra.mxu0 0.0
  %1352 = vmatprep.subr.mxu0 0.0
  %1353 = vmatpush1.xpose.msra.mxu0 0.0
  %1354 = vmatprep.subr.mxu0 0.0
  %1355 = vmatpush1.xpose.msra.mxu0 0.0
  %1356 = vmatprep.subr.mxu0 0.0
  %1357 = vmatpush1.xpose.msra.mxu0 0.0
  %1358 = vmatprep.subr.mxu0 0.0
  %1359 = vmatpush1.xpose.msra.mxu0 0.0
  %1360 = vmatprep.mubr.f32.mxu0 0.0
  %1361 = vmatmul.mubr.f32.gmra.mrb[0].mxu0 %v723
  %v1362 = vpop.f32.mrb[0].mxu0
  %v1363 = vadd.f32 0.0, %v1362
  %v1364 = vpop.f32.mrb[0].mxu0
  %1365 = vmatprep.mubr.f32.mxu0 0.0
  %1366 = vmatmul.mubr.f32.gmra.mrb[0].mxu0 %v726
  %v1367 = vpop.f32.mrb[0].mxu0
  %v1368 = vadd.f32 0.0, %v1367
  %v1369 = vpop.f32.mrb[0].mxu0
  %1370 = vdwg.mxu0
  %s1371 = scalar_lea.vmem %s6, 16
  %1372 = vst [vmem:[%s1371] sm:$0xff] %v1363
  %1373 = vst [vmem:[%s1371 + $0x8] sm:$0xff] %v1368
  // Predicated region
  $region26: #{radioses_forward.7} parent=0 // pred_check
    _
  $region27: #{radioses_forward.7} parent=0 // pred_check_branch
    %1375 = sbr.rel (0) target = $region29
  $region28: #{radioses_forward.7} parent=0 // pred_region
    _
  $region29: #{radioses_forward.7} parent=0 // pred_fallthru
    _
  // Predicated region
  $region30: #{radioses_forward.7} parent=0 // pred_check
    _
  $region31: #{radioses_forward.7} parent=0 // pred_check_branch
    %1377 = sbr.rel (0) target = $region33
  $region32: #{radioses_forward.7} parent=0 // pred_region
    _
  $region33: #{radioses_forward.7} parent=0 // pred_fallthru
    _

</llo_original>
